<compile_context>
chip_gen: v7x
topology: tpu7x:2x2x1
jax: 0.10.0
libtpu: 0.0.40
codegen_flags: <defaults>
</compile_context>

<pallas_src>
import functools

import jax
import jax.numpy as jnp
import numpy as np
from jax.experimental import pallas as pl
from jax.experimental.pallas import tpu as pltpu


def split_layer(total_channels, num_groups):
    split = [int(np.ceil(total_channels / num_groups)) for _ in range(num_groups)]
    split[num_groups - 1] += total_channels - sum(split)
    return split


# --------------------------------------------------------------------------
# Fused Pallas kernel: one (batch, channel-block) slab per grid step.
# Depthwise k_max x k_max conv (scale folded into taps) + bias (as acc init).
# --------------------------------------------------------------------------
def _mdconv_fused_kernel(w_ref, b_ref, x_ref, o_ref, *, kmax, cb):
    # w_ref: (C_pad*kmax*kmax,) f32 SMEM   per-channel taps, scale folded in
    # b_ref: (C_pad,)           f32 SMEM   per-channel bias
    # x_ref: (1, cb, Hp, Wp)    VMEM       zero-padded input planes (NCHW block)
    # o_ref: (1, cb, H,  W )    VMEM       stride-1 output planes (NCHW block)
    Ho = o_ref.shape[2]
    Wo = o_ref.shape[3]
    c0 = pl.program_id(1) * cb

    for cl in range(cb):                       # static unroll over the channel block
        cg = c0 + cl                           # global channel index (dynamic scalar)
        base = cg * (kmax * kmax)
        # Seed the accumulator with the bias: saves the epilogue add pass.
        acc = jnp.full((Ho, Wo), b_ref[cg], dtype=jnp.float32)
        for i in range(kmax):                  # static unroll over taps (<= kmax^2)
            for j in range(kmax):
                # shifted window read straight from the ref; tap is an SMEM
                # scalar splat into the VPU multiply.
                win = x_ref[0, cl, pl.ds(i, Ho), pl.ds(j, Wo)]
                acc = acc + win.astype(jnp.float32) * w_ref[base + i * kmax + j]
        o_ref[0, cl, :, :] = acc.astype(o_ref.dtype)


# --------------------------------------------------------------------------
# MDConv forward: fuse all chunks into one pallas_call.
# --------------------------------------------------------------------------
def mdconv_forward(x_nchw, params, split_out_channels, stride=1, cb_max=8):
    N, C, H, W = x_nchw.shape
    assert sum(split_out_channels) == C, (split_out_channels, C)
    n_chunks = len(split_out_channels)
    kmax = 2 * (n_chunks - 1) + 3
    pad_max = (kmax - 1) // 2

    # Host-side parameter fusion: fold scale into taps, zero-pad each chunk's
    # k x k taps to kmax x kmax (centered), concat over chunks.
    w_rows, b_rows = [], []
    for idx, cs in enumerate(split_out_channels):
        k = 2 * idx + 3
        p = params[idx]
        w = p["w"][:, 0, :, :].astype(jnp.float32) * p["scale"][:, None, None]
        off = (kmax - k) // 2
        w_full = jnp.zeros((cs, kmax, kmax), jnp.float32)
        w_full = w_full.at[:, off:off + k, off:off + k].set(w)
        w_rows.append(w_full)
        b_rows.append(p["bias"].astype(jnp.float32))
    w_all = jnp.concatenate(w_rows, axis=0)          # (C, kmax, kmax)
    b_all = jnp.concatenate(b_rows, axis=0)          # (C,)

    # Channel-block size: bounded by cb_max to cap trace size / VMEM.
    cb = max(1, min(C, cb_max))
    n_cblk = -(-C // cb)
    C_pad = n_cblk * cb
    if C_pad != C:
        # Pad channels with zero taps / zero bias so every block is full;
        # padded output channels are sliced off below.
        x_nchw = jnp.pad(x_nchw, ((0, 0), (0, C_pad - C), (0, 0), (0, 0)))
        w_all = jnp.pad(w_all, ((0, C_pad - C), (0, 0), (0, 0)))
        b_all = jnp.pad(b_all, ((0, C_pad - C),))
    w_flat = w_all.reshape(C_pad * kmax * kmax)

    # Single zero-pad (largest halo) shared by every chunk.
    x_pad = jnp.pad(x_nchw, ((0, 0), (0, 0), (pad_max, pad_max), (pad_max, pad_max)))
    Hp, Wp = H + 2 * pad_max, W + 2 * pad_max

    kernel = functools.partial(_mdconv_fused_kernel, kmax=kmax, cb=cb)

    out = pl.pallas_call(
        kernel,
        out_shape=jax.ShapeDtypeStruct((N, C_pad, H, W), x_nchw.dtype),
        grid=(N, n_cblk),
        in_specs=[
            pl.BlockSpec(memory_space=pltpu.MemorySpace.SMEM),         # taps
            pl.BlockSpec(memory_space=pltpu.MemorySpace.SMEM),         # bias
            pl.BlockSpec((1, cb, Hp, Wp), lambda n, c: (n, c, 0, 0)),  # input slab
        ],
        out_specs=pl.BlockSpec((1, cb, H, W), lambda n, c: (n, c, 0, 0)),
        compiler_params=pltpu.CompilerParams(
            dimension_semantics=("parallel", "parallel")),
    )(w_flat, b_all, x_pad)

    if C_pad != C:
        out = out[:, :C]
    if stride > 1:
        # "same"-padded depthwise conv with stride s == stride-1 conv subsampled.
        out = out[:, :, ::stride, ::stride]
    return out


# --------------------------------------------------------------------------
# Pure-JAX reference (lax conv, per chunk) for correctness checking.
# --------------------------------------------------------------------------
def mdconv_reference(x_nchw, params, split_out_channels, stride=1):
    outs = []
    c0 = 0
    for idx, cs in enumerate(split_out_channels):
        k = 2 * idx + 3
        pad = (k - 1) // 2
        xc = x_nchw[:, c0:c0 + cs]
        c0 += cs
        p = params[idx]
        y = jax.lax.conv_general_dilated(
            xc, p["w"], (stride, stride), ((pad, pad), (pad, pad)),
            dimension_numbers=("NCHW", "OIHW", "NCHW"),
            feature_group_count=cs,
        )
        y = y * p["scale"].reshape(1, -1, 1, 1) + p["bias"].reshape(1, -1, 1, 1)
        outs.append(y)
    return jnp.concatenate(outs, axis=1)


def init_params(key, split_out_channels):
    """Deterministic synthetic parameters (shapes match the PyTorch module)."""
    params = []
    for idx, cs in enumerate(split_out_channels):
        k = 2 * idx + 3
        key, kw, ks, kb = jax.random.split(key, 4)
        params.append({
            # nn.Conv2d(groups=C) depthwise weight: (C, 1, k, k)
            "w": jax.random.normal(kw, (cs, 1, k, k), jnp.float32) * 0.1,
            # Conv2D_INT: scale init ones, bias init zeros -> perturb so the
            # scale/bias path is actually exercised (still deterministic).
            "scale": 1.0 + 0.05 * jax.random.normal(ks, (cs,), jnp.float32),
            "bias": 0.05 * jax.random.normal(kb, (cs,), jnp.float32),
        })
    return params


if __name__ == "__main__":
    # Small shapes consistent with the module: MDConv(out_channels=4, n_chunks=2)
    N, C, H, W = 2, 4, 16, 16
    n_chunks = 2
    splits = split_layer(C, n_chunks)   # -> [2, 2]; kernel sizes 3 and 5

    key = jax.random.PRNGKey(0)
    key, kx = jax.random.split(key)
    x = jax.random.normal(kx, (N, C, H, W), jnp.float32)
    params = init_params(key, splits)

    # stride=1 (module default) and stride=2 (checks the kmax-fusion is exact
    # for strided blocks as well).
    for stride in (1, 2):
        out = jax.block_until_ready(mdconv_forward(x, params, splits, stride=stride))
        ref = jax.block_until_ready(mdconv_reference(x, params, splits, stride=stride))
        assert out.shape == ref.shape, (stride, out.shape, ref.shape)
        err = float(jnp.max(jnp.abs(out - ref)))
        assert jnp.allclose(out, ref, atol=1e-5, rtol=1e-5), (
            f"Pallas MDConv mismatch vs reference at stride={stride}, max err {err}"
        )

    print("KERNEL_OK")
</pallas_src>

<mosaic_0001>
module attributes {stable_mosaic.version = 11 : i64} {
  func.func @_mdconv_fused_kernel(%arg0: i32, %arg1: i32, %arg2: memref<100xf32, #tpu.memory_space<smem>>, %arg3: memref<4xf32, #tpu.memory_space<smem>>, %arg4: memref<1x4x20x20xf32, #tpu.memory_space<vmem>>, %arg5: memref<1x4x16x16xf32, #tpu.memory_space<vmem>>) attributes {dimension_semantics = [#tpu.dimension_semantics<parallel>, #tpu.dimension_semantics<parallel>], iteration_bounds = array<i64: 2, 1>, scalar_prefetch = 0 : i64, scratch_operands = 0 : i64, tpu.core_type = #tpu.core_type<tc>, window_params = [{transform_indices = @transform_0, window_bounds = array<i64: 100>}, {transform_indices = @transform_1, window_bounds = array<i64: 4>}, {transform_indices = @transform_2, window_bounds = array<i64: 1, 4, 20, 20>}, {transform_indices = @transform_3, window_bounds = array<i64: 1, 4, 16, 16>}]} {
    %c4_i32 = arith.constant 4 : i32
    %0 = arith.muli %arg1, %c4_i32 : i32
    %c0_i32 = arith.constant 0 : i32
    %1 = arith.addi %0, %c0_i32 : i32
    %c25_i32 = arith.constant 25 : i32
    %2 = arith.muli %1, %c25_i32 : i32
    %3 = arith.index_cast %1 : i32 to index
    %4 = memref.load %arg3[%3] : memref<4xf32, #tpu.memory_space<smem>>
    %5 = vector.broadcast %4 : f32 to vector<16x16xf32>
    %c0 = arith.constant 0 : index
    %c0_0 = arith.constant 0 : index
    %c0_1 = arith.constant 0 : index
    %c0_2 = arith.constant 0 : index
    %6 = vector.load %arg4[%c0, %c0_0, %c0_1, %c0_2] : memref<1x4x20x20xf32, #tpu.memory_space<vmem>>, vector<1x1x16x16xf32>
    %7 = vector.shape_cast %6 : vector<1x1x16x16xf32> to vector<16x16xf32>
    %c0_i32_3 = arith.constant 0 : i32
    %8 = arith.addi %2, %c0_i32_3 : i32
    %c0_i32_4 = arith.constant 0 : i32
    %9 = arith.addi %8, %c0_i32_4 : i32
    %10 = arith.index_cast %9 : i32 to index
    %11 = memref.load %arg2[%10] : memref<100xf32, #tpu.memory_space<smem>>
    %12 = vector.broadcast %11 : f32 to vector<16x16xf32>
    %13 = arith.mulf %7, %12 : vector<16x16xf32>
    %14 = arith.addf %5, %13 : vector<16x16xf32>
    %c0_5 = arith.constant 0 : index
    %c0_6 = arith.constant 0 : index
    %c0_7 = arith.constant 0 : index
    %c1 = arith.constant 1 : index
    %15 = vector.load %arg4[%c0_5, %c0_6, %c0_7, %c1] : memref<1x4x20x20xf32, #tpu.memory_space<vmem>>, vector<1x1x16x16xf32>
    %16 = vector.shape_cast %15 : vector<1x1x16x16xf32> to vector<16x16xf32>
    %c0_i32_8 = arith.constant 0 : i32
    %17 = arith.addi %2, %c0_i32_8 : i32
    %c1_i32 = arith.constant 1 : i32
    %18 = arith.addi %17, %c1_i32 : i32
    %19 = arith.index_cast %18 : i32 to index
    %20 = memref.load %arg2[%19] : memref<100xf32, #tpu.memory_space<smem>>
    %21 = vector.broadcast %20 : f32 to vector<16x16xf32>
    %22 = arith.mulf %16, %21 : vector<16x16xf32>
    %23 = arith.addf %14, %22 : vector<16x16xf32>
    %c0_9 = arith.constant 0 : index
    %c0_10 = arith.constant 0 : index
    %c0_11 = arith.constant 0 : index
    %c2 = arith.constant 2 : index
    %24 = vector.load %arg4[%c0_9, %c0_10, %c0_11, %c2] : memref<1x4x20x20xf32, #tpu.memory_space<vmem>>, vector<1x1x16x16xf32>
    %25 = vector.shape_cast %24 : vector<1x1x16x16xf32> to vector<16x16xf32>
    %c0_i32_12 = arith.constant 0 : i32
    %26 = arith.addi %2, %c0_i32_12 : i32
    %c2_i32 = arith.constant 2 : i32
    %27 = arith.addi %26, %c2_i32 : i32
    %28 = arith.index_cast %27 : i32 to index
    %29 = memref.load %arg2[%28] : memref<100xf32, #tpu.memory_space<smem>>
    %30 = vector.broadcast %29 : f32 to vector<16x16xf32>
    %31 = arith.mulf %25, %30 : vector<16x16xf32>
    %32 = arith.addf %23, %31 : vector<16x16xf32>
    %c0_13 = arith.constant 0 : index
    %c0_14 = arith.constant 0 : index
    %c0_15 = arith.constant 0 : index
    %c3 = arith.constant 3 : index
    %33 = vector.load %arg4[%c0_13, %c0_14, %c0_15, %c3] : memref<1x4x20x20xf32, #tpu.memory_space<vmem>>, vector<1x1x16x16xf32>
    %34 = vector.shape_cast %33 : vector<1x1x16x16xf32> to vector<16x16xf32>
    %c0_i32_16 = arith.constant 0 : i32
    %35 = arith.addi %2, %c0_i32_16 : i32
    %c3_i32 = arith.constant 3 : i32
    %36 = arith.addi %35, %c3_i32 : i32
    %37 = arith.index_cast %36 : i32 to index
    %38 = memref.load %arg2[%37] : memref<100xf32, #tpu.memory_space<smem>>
    %39 = vector.broadcast %38 : f32 to vector<16x16xf32>
    %40 = arith.mulf %34, %39 : vector<16x16xf32>
    %41 = arith.addf %32, %40 : vector<16x16xf32>
    %c0_17 = arith.constant 0 : index
    %c0_18 = arith.constant 0 : index
    %c0_19 = arith.constant 0 : index
    %c4 = arith.constant 4 : index
    %42 = vector.load %arg4[%c0_17, %c0_18, %c0_19, %c4] : memref<1x4x20x20xf32, #tpu.memory_space<vmem>>, vector<1x1x16x16xf32>
    %43 = vector.shape_cast %42 : vector<1x1x16x16xf32> to vector<16x16xf32>
    %c0_i32_20 = arith.constant 0 : i32
    %44 = arith.addi %2, %c0_i32_20 : i32
    %c4_i32_21 = arith.constant 4 : i32
    %45 = arith.addi %44, %c4_i32_21 : i32
    %46 = arith.index_cast %45 : i32 to index
    %47 = memref.load %arg2[%46] : memref<100xf32, #tpu.memory_space<smem>>
    %48 = vector.broadcast %47 : f32 to vector<16x16xf32>
    %49 = arith.mulf %43, %48 : vector<16x16xf32>
    %50 = arith.addf %41, %49 : vector<16x16xf32>
    %c0_22 = arith.constant 0 : index
    %c0_23 = arith.constant 0 : index
    %c1_24 = arith.constant 1 : index
    %c0_25 = arith.constant 0 : index
    %51 = vector.load %arg4[%c0_22, %c0_23, %c1_24, %c0_25] : memref<1x4x20x20xf32, #tpu.memory_space<vmem>>, vector<1x1x16x16xf32>
    %52 = vector.shape_cast %51 : vector<1x1x16x16xf32> to vector<16x16xf32>
    %c5_i32 = arith.constant 5 : i32
    %53 = arith.addi %2, %c5_i32 : i32
    %c0_i32_26 = arith.constant 0 : i32
    %54 = arith.addi %53, %c0_i32_26 : i32
    %55 = arith.index_cast %54 : i32 to index
    %56 = memref.load %arg2[%55] : memref<100xf32, #tpu.memory_space<smem>>
    %57 = vector.broadcast %56 : f32 to vector<16x16xf32>
    %58 = arith.mulf %52, %57 : vector<16x16xf32>
    %59 = arith.addf %50, %58 : vector<16x16xf32>
    %c0_27 = arith.constant 0 : index
    %c0_28 = arith.constant 0 : index
    %c1_29 = arith.constant 1 : index
    %c1_30 = arith.constant 1 : index
    %60 = vector.load %arg4[%c0_27, %c0_28, %c1_29, %c1_30] : memref<1x4x20x20xf32, #tpu.memory_space<vmem>>, vector<1x1x16x16xf32>
    %61 = vector.shape_cast %60 : vector<1x1x16x16xf32> to vector<16x16xf32>
    %c5_i32_31 = arith.constant 5 : i32
    %62 = arith.addi %2, %c5_i32_31 : i32
    %c1_i32_32 = arith.constant 1 : i32
    %63 = arith.addi %62, %c1_i32_32 : i32
    %64 = arith.index_cast %63 : i32 to index
    %65 = memref.load %arg2[%64] : memref<100xf32, #tpu.memory_space<smem>>
    %66 = vector.broadcast %65 : f32 to vector<16x16xf32>
    %67 = arith.mulf %61, %66 : vector<16x16xf32>
    %68 = arith.addf %59, %67 : vector<16x16xf32>
    %c0_33 = arith.constant 0 : index
    %c0_34 = arith.constant 0 : index
    %c1_35 = arith.constant 1 : index
    %c2_36 = arith.constant 2 : index
    %69 = vector.load %arg4[%c0_33, %c0_34, %c1_35, %c2_36] : memref<1x4x20x20xf32, #tpu.memory_space<vmem>>, vector<1x1x16x16xf32>
    %70 = vector.shape_cast %69 : vector<1x1x16x16xf32> to vector<16x16xf32>
    %c5_i32_37 = arith.constant 5 : i32
    %71 = arith.addi %2, %c5_i32_37 : i32
    %c2_i32_38 = arith.constant 2 : i32
    %72 = arith.addi %71, %c2_i32_38 : i32
    %73 = arith.index_cast %72 : i32 to index
    %74 = memref.load %arg2[%73] : memref<100xf32, #tpu.memory_space<smem>>
    %75 = vector.broadcast %74 : f32 to vector<16x16xf32>
    %76 = arith.mulf %70, %75 : vector<16x16xf32>
    %77 = arith.addf %68, %76 : vector<16x16xf32>
    %c0_39 = arith.constant 0 : index
    %c0_40 = arith.constant 0 : index
    %c1_41 = arith.constant 1 : index
    %c3_42 = arith.constant 3 : index
    %78 = vector.load %arg4[%c0_39, %c0_40, %c1_41, %c3_42] : memref<1x4x20x20xf32, #tpu.memory_space<vmem>>, vector<1x1x16x16xf32>
    %79 = vector.shape_cast %78 : vector<1x1x16x16xf32> to vector<16x16xf32>
    %c5_i32_43 = arith.constant 5 : i32
    %80 = arith.addi %2, %c5_i32_43 : i32
    %c3_i32_44 = arith.constant 3 : i32
    %81 = arith.addi %80, %c3_i32_44 : i32
    %82 = arith.index_cast %81 : i32 to index
    %83 = memref.load %arg2[%82] : memref<100xf32, #tpu.memory_space<smem>>
    %84 = vector.broadcast %83 : f32 to vector<16x16xf32>
    %85 = arith.mulf %79, %84 : vector<16x16xf32>
    %86 = arith.addf %77, %85 : vector<16x16xf32>
    %c0_45 = arith.constant 0 : index
    %c0_46 = arith.constant 0 : index
    %c1_47 = arith.constant 1 : index
    %c4_48 = arith.constant 4 : index
    %87 = vector.load %arg4[%c0_45, %c0_46, %c1_47, %c4_48] : memref<1x4x20x20xf32, #tpu.memory_space<vmem>>, vector<1x1x16x16xf32>
    %88 = vector.shape_cast %87 : vector<1x1x16x16xf32> to vector<16x16xf32>
    %c5_i32_49 = arith.constant 5 : i32
    %89 = arith.addi %2, %c5_i32_49 : i32
    %c4_i32_50 = arith.constant 4 : i32
    %90 = arith.addi %89, %c4_i32_50 : i32
    %91 = arith.index_cast %90 : i32 to index
    %92 = memref.load %arg2[%91] : memref<100xf32, #tpu.memory_space<smem>>
    %93 = vector.broadcast %92 : f32 to vector<16x16xf32>
    %94 = arith.mulf %88, %93 : vector<16x16xf32>
    %95 = arith.addf %86, %94 : vector<16x16xf32>
    %c0_51 = arith.constant 0 : index
    %c0_52 = arith.constant 0 : index
    %c2_53 = arith.constant 2 : index
    %c0_54 = arith.constant 0 : index
    %96 = vector.load %arg4[%c0_51, %c0_52, %c2_53, %c0_54] : memref<1x4x20x20xf32, #tpu.memory_space<vmem>>, vector<1x1x16x16xf32>
    %97 = vector.shape_cast %96 : vector<1x1x16x16xf32> to vector<16x16xf32>
    %c10_i32 = arith.constant 10 : i32
    %98 = arith.addi %2, %c10_i32 : i32
    %c0_i32_55 = arith.constant 0 : i32
    %99 = arith.addi %98, %c0_i32_55 : i32
    %100 = arith.index_cast %99 : i32 to index
    %101 = memref.load %arg2[%100] : memref<100xf32, #tpu.memory_space<smem>>
    %102 = vector.broadcast %101 : f32 to vector<16x16xf32>
    %103 = arith.mulf %97, %102 : vector<16x16xf32>
    %104 = arith.addf %95, %103 : vector<16x16xf32>
    %c0_56 = arith.constant 0 : index
    %c0_57 = arith.constant 0 : index
    %c2_58 = arith.constant 2 : index
    %c1_59 = arith.constant 1 : index
    %105 = vector.load %arg4[%c0_56, %c0_57, %c2_58, %c1_59] : memref<1x4x20x20xf32, #tpu.memory_space<vmem>>, vector<1x1x16x16xf32>
    %106 = vector.shape_cast %105 : vector<1x1x16x16xf32> to vector<16x16xf32>
    %c10_i32_60 = arith.constant 10 : i32
    %107 = arith.addi %2, %c10_i32_60 : i32
    %c1_i32_61 = arith.constant 1 : i32
    %108 = arith.addi %107, %c1_i32_61 : i32
    %109 = arith.index_cast %108 : i32 to index
    %110 = memref.load %arg2[%109] : memref<100xf32, #tpu.memory_space<smem>>
    %111 = vector.broadcast %110 : f32 to vector<16x16xf32>
    %112 = arith.mulf %106, %111 : vector<16x16xf32>
    %113 = arith.addf %104, %112 : vector<16x16xf32>
    %c0_62 = arith.constant 0 : index
    %c0_63 = arith.constant 0 : index
    %c2_64 = arith.constant 2 : index
    %c2_65 = arith.constant 2 : index
    %114 = vector.load %arg4[%c0_62, %c0_63, %c2_64, %c2_65] : memref<1x4x20x20xf32, #tpu.memory_space<vmem>>, vector<1x1x16x16xf32>
    %115 = vector.shape_cast %114 : vector<1x1x16x16xf32> to vector<16x16xf32>
    %c10_i32_66 = arith.constant 10 : i32
    %116 = arith.addi %2, %c10_i32_66 : i32
    %c2_i32_67 = arith.constant 2 : i32
    %117 = arith.addi %116, %c2_i32_67 : i32
    %118 = arith.index_cast %117 : i32 to index
    %119 = memref.load %arg2[%118] : memref<100xf32, #tpu.memory_space<smem>>
    %120 = vector.broadcast %119 : f32 to vector<16x16xf32>
    %121 = arith.mulf %115, %120 : vector<16x16xf32>
    %122 = arith.addf %113, %121 : vector<16x16xf32>
    %c0_68 = arith.constant 0 : index
    %c0_69 = arith.constant 0 : index
    %c2_70 = arith.constant 2 : index
    %c3_71 = arith.constant 3 : index
    %123 = vector.load %arg4[%c0_68, %c0_69, %c2_70, %c3_71] : memref<1x4x20x20xf32, #tpu.memory_space<vmem>>, vector<1x1x16x16xf32>
    %124 = vector.shape_cast %123 : vector<1x1x16x16xf32> to vector<16x16xf32>
    %c10_i32_72 = arith.constant 10 : i32
    %125 = arith.addi %2, %c10_i32_72 : i32
    %c3_i32_73 = arith.constant 3 : i32
    %126 = arith.addi %125, %c3_i32_73 : i32
    %127 = arith.index_cast %126 : i32 to index
    %128 = memref.load %arg2[%127] : memref<100xf32, #tpu.memory_space<smem>>
    %129 = vector.broadcast %128 : f32 to vector<16x16xf32>
    %130 = arith.mulf %124, %129 : vector<16x16xf32>
    %131 = arith.addf %122, %130 : vector<16x16xf32>
    %c0_74 = arith.constant 0 : index
    %c0_75 = arith.constant 0 : index
    %c2_76 = arith.constant 2 : index
    %c4_77 = arith.constant 4 : index
    %132 = vector.load %arg4[%c0_74, %c0_75, %c2_76, %c4_77] : memref<1x4x20x20xf32, #tpu.memory_space<vmem>>, vector<1x1x16x16xf32>
    %133 = vector.shape_cast %132 : vector<1x1x16x16xf32> to vector<16x16xf32>
    %c10_i32_78 = arith.constant 10 : i32
    %134 = arith.addi %2, %c10_i32_78 : i32
    %c4_i32_79 = arith.constant 4 : i32
    %135 = arith.addi %134, %c4_i32_79 : i32
    %136 = arith.index_cast %135 : i32 to index
    %137 = memref.load %arg2[%136] : memref<100xf32, #tpu.memory_space<smem>>
    %138 = vector.broadcast %137 : f32 to vector<16x16xf32>
    %139 = arith.mulf %133, %138 : vector<16x16xf32>
    %140 = arith.addf %131, %139 : vector<16x16xf32>
    %c0_80 = arith.constant 0 : index
    %c0_81 = arith.constant 0 : index
    %c3_82 = arith.constant 3 : index
    %c0_83 = arith.constant 0 : index
    %141 = vector.load %arg4[%c0_80, %c0_81, %c3_82, %c0_83] : memref<1x4x20x20xf32, #tpu.memory_space<vmem>>, vector<1x1x16x16xf32>
    %142 = vector.shape_cast %141 : vector<1x1x16x16xf32> to vector<16x16xf32>
    %c15_i32 = arith.constant 15 : i32
    %143 = arith.addi %2, %c15_i32 : i32
    %c0_i32_84 = arith.constant 0 : i32
    %144 = arith.addi %143, %c0_i32_84 : i32
    %145 = arith.index_cast %144 : i32 to index
    %146 = memref.load %arg2[%145] : memref<100xf32, #tpu.memory_space<smem>>
    %147 = vector.broadcast %146 : f32 to vector<16x16xf32>
    %148 = arith.mulf %142, %147 : vector<16x16xf32>
    %149 = arith.addf %140, %148 : vector<16x16xf32>
    %c0_85 = arith.constant 0 : index
    %c0_86 = arith.constant 0 : index
    %c3_87 = arith.constant 3 : index
    %c1_88 = arith.constant 1 : index
    %150 = vector.load %arg4[%c0_85, %c0_86, %c3_87, %c1_88] : memref<1x4x20x20xf32, #tpu.memory_space<vmem>>, vector<1x1x16x16xf32>
    %151 = vector.shape_cast %150 : vector<1x1x16x16xf32> to vector<16x16xf32>
    %c15_i32_89 = arith.constant 15 : i32
    %152 = arith.addi %2, %c15_i32_89 : i32
    %c1_i32_90 = arith.constant 1 : i32
    %153 = arith.addi %152, %c1_i32_90 : i32
    %154 = arith.index_cast %153 : i32 to index
    %155 = memref.load %arg2[%154] : memref<100xf32, #tpu.memory_space<smem>>
    %156 = vector.broadcast %155 : f32 to vector<16x16xf32>
    %157 = arith.mulf %151, %156 : vector<16x16xf32>
    %158 = arith.addf %149, %157 : vector<16x16xf32>
    %c0_91 = arith.constant 0 : index
    %c0_92 = arith.constant 0 : index
    %c3_93 = arith.constant 3 : index
    %c2_94 = arith.constant 2 : index
    %159 = vector.load %arg4[%c0_91, %c0_92, %c3_93, %c2_94] : memref<1x4x20x20xf32, #tpu.memory_space<vmem>>, vector<1x1x16x16xf32>
    %160 = vector.shape_cast %159 : vector<1x1x16x16xf32> to vector<16x16xf32>
    %c15_i32_95 = arith.constant 15 : i32
    %161 = arith.addi %2, %c15_i32_95 : i32
    %c2_i32_96 = arith.constant 2 : i32
    %162 = arith.addi %161, %c2_i32_96 : i32
    %163 = arith.index_cast %162 : i32 to index
    %164 = memref.load %arg2[%163] : memref<100xf32, #tpu.memory_space<smem>>
    %165 = vector.broadcast %164 : f32 to vector<16x16xf32>
    %166 = arith.mulf %160, %165 : vector<16x16xf32>
    %167 = arith.addf %158, %166 : vector<16x16xf32>
    %c0_97 = arith.constant 0 : index
    %c0_98 = arith.constant 0 : index
    %c3_99 = arith.constant 3 : index
    %c3_100 = arith.constant 3 : index
    %168 = vector.load %arg4[%c0_97, %c0_98, %c3_99, %c3_100] : memref<1x4x20x20xf32, #tpu.memory_space<vmem>>, vector<1x1x16x16xf32>
    %169 = vector.shape_cast %168 : vector<1x1x16x16xf32> to vector<16x16xf32>
    %c15_i32_101 = arith.constant 15 : i32
    %170 = arith.addi %2, %c15_i32_101 : i32
    %c3_i32_102 = arith.constant 3 : i32
    %171 = arith.addi %170, %c3_i32_102 : i32
    %172 = arith.index_cast %171 : i32 to index
    %173 = memref.load %arg2[%172] : memref<100xf32, #tpu.memory_space<smem>>
    %174 = vector.broadcast %173 : f32 to vector<16x16xf32>
    %175 = arith.mulf %169, %174 : vector<16x16xf32>
    %176 = arith.addf %167, %175 : vector<16x16xf32>
    %c0_103 = arith.constant 0 : index
    %c0_104 = arith.constant 0 : index
    %c3_105 = arith.constant 3 : index
    %c4_106 = arith.constant 4 : index
    %177 = vector.load %arg4[%c0_103, %c0_104, %c3_105, %c4_106] : memref<1x4x20x20xf32, #tpu.memory_space<vmem>>, vector<1x1x16x16xf32>
    %178 = vector.shape_cast %177 : vector<1x1x16x16xf32> to vector<16x16xf32>
    %c15_i32_107 = arith.constant 15 : i32
    %179 = arith.addi %2, %c15_i32_107 : i32
    %c4_i32_108 = arith.constant 4 : i32
    %180 = arith.addi %179, %c4_i32_108 : i32
    %181 = arith.index_cast %180 : i32 to index
    %182 = memref.load %arg2[%181] : memref<100xf32, #tpu.memory_space<smem>>
    %183 = vector.broadcast %182 : f32 to vector<16x16xf32>
    %184 = arith.mulf %178, %183 : vector<16x16xf32>
    %185 = arith.addf %176, %184 : vector<16x16xf32>
    %c0_109 = arith.constant 0 : index
    %c0_110 = arith.constant 0 : index
    %c4_111 = arith.constant 4 : index
    %c0_112 = arith.constant 0 : index
    %186 = vector.load %arg4[%c0_109, %c0_110, %c4_111, %c0_112] : memref<1x4x20x20xf32, #tpu.memory_space<vmem>>, vector<1x1x16x16xf32>
    %187 = vector.shape_cast %186 : vector<1x1x16x16xf32> to vector<16x16xf32>
    %c20_i32 = arith.constant 20 : i32
    %188 = arith.addi %2, %c20_i32 : i32
    %c0_i32_113 = arith.constant 0 : i32
    %189 = arith.addi %188, %c0_i32_113 : i32
    %190 = arith.index_cast %189 : i32 to index
    %191 = memref.load %arg2[%190] : memref<100xf32, #tpu.memory_space<smem>>
    %192 = vector.broadcast %191 : f32 to vector<16x16xf32>
    %193 = arith.mulf %187, %192 : vector<16x16xf32>
    %194 = arith.addf %185, %193 : vector<16x16xf32>
    %c0_114 = arith.constant 0 : index
    %c0_115 = arith.constant 0 : index
    %c4_116 = arith.constant 4 : index
    %c1_117 = arith.constant 1 : index
    %195 = vector.load %arg4[%c0_114, %c0_115, %c4_116, %c1_117] : memref<1x4x20x20xf32, #tpu.memory_space<vmem>>, vector<1x1x16x16xf32>
    %196 = vector.shape_cast %195 : vector<1x1x16x16xf32> to vector<16x16xf32>
    %c20_i32_118 = arith.constant 20 : i32
    %197 = arith.addi %2, %c20_i32_118 : i32
    %c1_i32_119 = arith.constant 1 : i32
    %198 = arith.addi %197, %c1_i32_119 : i32
    %199 = arith.index_cast %198 : i32 to index
    %200 = memref.load %arg2[%199] : memref<100xf32, #tpu.memory_space<smem>>
    %201 = vector.broadcast %200 : f32 to vector<16x16xf32>
    %202 = arith.mulf %196, %201 : vector<16x16xf32>
    %203 = arith.addf %194, %202 : vector<16x16xf32>
    %c0_120 = arith.constant 0 : index
    %c0_121 = arith.constant 0 : index
    %c4_122 = arith.constant 4 : index
    %c2_123 = arith.constant 2 : index
    %204 = vector.load %arg4[%c0_120, %c0_121, %c4_122, %c2_123] : memref<1x4x20x20xf32, #tpu.memory_space<vmem>>, vector<1x1x16x16xf32>
    %205 = vector.shape_cast %204 : vector<1x1x16x16xf32> to vector<16x16xf32>
    %c20_i32_124 = arith.constant 20 : i32
    %206 = arith.addi %2, %c20_i32_124 : i32
    %c2_i32_125 = arith.constant 2 : i32
    %207 = arith.addi %206, %c2_i32_125 : i32
    %208 = arith.index_cast %207 : i32 to index
    %209 = memref.load %arg2[%208] : memref<100xf32, #tpu.memory_space<smem>>
    %210 = vector.broadcast %209 : f32 to vector<16x16xf32>
    %211 = arith.mulf %205, %210 : vector<16x16xf32>
    %212 = arith.addf %203, %211 : vector<16x16xf32>
    %c0_126 = arith.constant 0 : index
    %c0_127 = arith.constant 0 : index
    %c4_128 = arith.constant 4 : index
    %c3_129 = arith.constant 3 : index
    %213 = vector.load %arg4[%c0_126, %c0_127, %c4_128, %c3_129] : memref<1x4x20x20xf32, #tpu.memory_space<vmem>>, vector<1x1x16x16xf32>
    %214 = vector.shape_cast %213 : vector<1x1x16x16xf32> to vector<16x16xf32>
    %c20_i32_130 = arith.constant 20 : i32
    %215 = arith.addi %2, %c20_i32_130 : i32
    %c3_i32_131 = arith.constant 3 : i32
    %216 = arith.addi %215, %c3_i32_131 : i32
    %217 = arith.index_cast %216 : i32 to index
    %218 = memref.load %arg2[%217] : memref<100xf32, #tpu.memory_space<smem>>
    %219 = vector.broadcast %218 : f32 to vector<16x16xf32>
    %220 = arith.mulf %214, %219 : vector<16x16xf32>
    %221 = arith.addf %212, %220 : vector<16x16xf32>
    %c0_132 = arith.constant 0 : index
    %c0_133 = arith.constant 0 : index
    %c4_134 = arith.constant 4 : index
    %c4_135 = arith.constant 4 : index
    %222 = vector.load %arg4[%c0_132, %c0_133, %c4_134, %c4_135] : memref<1x4x20x20xf32, #tpu.memory_space<vmem>>, vector<1x1x16x16xf32>
    %223 = vector.shape_cast %222 : vector<1x1x16x16xf32> to vector<16x16xf32>
    %c20_i32_136 = arith.constant 20 : i32
    %224 = arith.addi %2, %c20_i32_136 : i32
    %c4_i32_137 = arith.constant 4 : i32
    %225 = arith.addi %224, %c4_i32_137 : i32
    %226 = arith.index_cast %225 : i32 to index
    %227 = memref.load %arg2[%226] : memref<100xf32, #tpu.memory_space<smem>>
    %228 = vector.broadcast %227 : f32 to vector<16x16xf32>
    %229 = arith.mulf %223, %228 : vector<16x16xf32>
    %230 = arith.addf %221, %229 : vector<16x16xf32>
    %c0_138 = arith.constant 0 : index
    %c0_139 = arith.constant 0 : index
    %c0_140 = arith.constant 0 : index
    %c0_141 = arith.constant 0 : index
    %231 = vector.load %arg5[%c0_138, %c0_139, %c0_140, %c0_141] : memref<1x4x16x16xf32, #tpu.memory_space<vmem>>, vector<1x1x16x16xf32>
    %232 = vector.shape_cast %231 : vector<1x1x16x16xf32> to vector<16x16xf32>
    %233 = vector.shape_cast %230 : vector<16x16xf32> to vector<1x1x16x16xf32>
    tpu.vector_store %arg5[%c0_138, %c0_139, %c0_140, %c0_141], %233 {strides = array<i32>} : memref<1x4x16x16xf32, #tpu.memory_space<vmem>>, vector<1x1x16x16xf32>,
    %c1_i32_142 = arith.constant 1 : i32
    %234 = arith.addi %0, %c1_i32_142 : i32
    %c25_i32_143 = arith.constant 25 : i32
    %235 = arith.muli %234, %c25_i32_143 : i32
    %236 = arith.index_cast %234 : i32 to index
    %237 = memref.load %arg3[%236] : memref<4xf32, #tpu.memory_space<smem>>
    %238 = vector.broadcast %237 : f32 to vector<16x16xf32>
    %c0_144 = arith.constant 0 : index
    %c1_145 = arith.constant 1 : index
    %c0_146 = arith.constant 0 : index
    %c0_147 = arith.constant 0 : index
    %239 = vector.load %arg4[%c0_144, %c1_145, %c0_146, %c0_147] : memref<1x4x20x20xf32, #tpu.memory_space<vmem>>, vector<1x1x16x16xf32>
    %240 = vector.shape_cast %239 : vector<1x1x16x16xf32> to vector<16x16xf32>
    %c0_i32_148 = arith.constant 0 : i32
    %241 = arith.addi %235, %c0_i32_148 : i32
    %c0_i32_149 = arith.constant 0 : i32
    %242 = arith.addi %241, %c0_i32_149 : i32
    %243 = arith.index_cast %242 : i32 to index
    %244 = memref.load %arg2[%243] : memref<100xf32, #tpu.memory_space<smem>>
    %245 = vector.broadcast %244 : f32 to vector<16x16xf32>
    %246 = arith.mulf %240, %245 : vector<16x16xf32>
    %247 = arith.addf %238, %246 : vector<16x16xf32>
    %c0_150 = arith.constant 0 : index
    %c1_151 = arith.constant 1 : index
    %c0_152 = arith.constant 0 : index
    %c1_153 = arith.constant 1 : index
    %248 = vector.load %arg4[%c0_150, %c1_151, %c0_152, %c1_153] : memref<1x4x20x20xf32, #tpu.memory_space<vmem>>, vector<1x1x16x16xf32>
    %249 = vector.shape_cast %248 : vector<1x1x16x16xf32> to vector<16x16xf32>
    %c0_i32_154 = arith.constant 0 : i32
    %250 = arith.addi %235, %c0_i32_154 : i32
    %c1_i32_155 = arith.constant 1 : i32
    %251 = arith.addi %250, %c1_i32_155 : i32
    %252 = arith.index_cast %251 : i32 to index
    %253 = memref.load %arg2[%252] : memref<100xf32, #tpu.memory_space<smem>>
    %254 = vector.broadcast %253 : f32 to vector<16x16xf32>
    %255 = arith.mulf %249, %254 : vector<16x16xf32>
    %256 = arith.addf %247, %255 : vector<16x16xf32>
    %c0_156 = arith.constant 0 : index
    %c1_157 = arith.constant 1 : index
    %c0_158 = arith.constant 0 : index
    %c2_159 = arith.constant 2 : index
    %257 = vector.load %arg4[%c0_156, %c1_157, %c0_158, %c2_159] : memref<1x4x20x20xf32, #tpu.memory_space<vmem>>, vector<1x1x16x16xf32>
    %258 = vector.shape_cast %257 : vector<1x1x16x16xf32> to vector<16x16xf32>
    %c0_i32_160 = arith.constant 0 : i32
    %259 = arith.addi %235, %c0_i32_160 : i32
    %c2_i32_161 = arith.constant 2 : i32
    %260 = arith.addi %259, %c2_i32_161 : i32
    %261 = arith.index_cast %260 : i32 to index
    %262 = memref.load %arg2[%261] : memref<100xf32, #tpu.memory_space<smem>>
    %263 = vector.broadcast %262 : f32 to vector<16x16xf32>
    %264 = arith.mulf %258, %263 : vector<16x16xf32>
    %265 = arith.addf %256, %264 : vector<16x16xf32>
    %c0_162 = arith.constant 0 : index
    %c1_163 = arith.constant 1 : index
    %c0_164 = arith.constant 0 : index
    %c3_165 = arith.constant 3 : index
    %266 = vector.load %arg4[%c0_162, %c1_163, %c0_164, %c3_165] : memref<1x4x20x20xf32, #tpu.memory_space<vmem>>, vector<1x1x16x16xf32>
    %267 = vector.shape_cast %266 : vector<1x1x16x16xf32> to vector<16x16xf32>
    %c0_i32_166 = arith.constant 0 : i32
    %268 = arith.addi %235, %c0_i32_166 : i32
    %c3_i32_167 = arith.constant 3 : i32
    %269 = arith.addi %268, %c3_i32_167 : i32
    %270 = arith.index_cast %269 : i32 to index
    %271 = memref.load %arg2[%270] : memref<100xf32, #tpu.memory_space<smem>>
    %272 = vector.broadcast %271 : f32 to vector<16x16xf32>
    %273 = arith.mulf %267, %272 : vector<16x16xf32>
    %274 = arith.addf %265, %273 : vector<16x16xf32>
    %c0_168 = arith.constant 0 : index
    %c1_169 = arith.constant 1 : index
    %c0_170 = arith.constant 0 : index
    %c4_171 = arith.constant 4 : index
    %275 = vector.load %arg4[%c0_168, %c1_169, %c0_170, %c4_171] : memref<1x4x20x20xf32, #tpu.memory_space<vmem>>, vector<1x1x16x16xf32>
    %276 = vector.shape_cast %275 : vector<1x1x16x16xf32> to vector<16x16xf32>
    %c0_i32_172 = arith.constant 0 : i32
    %277 = arith.addi %235, %c0_i32_172 : i32
    %c4_i32_173 = arith.constant 4 : i32
    %278 = arith.addi %277, %c4_i32_173 : i32
    %279 = arith.index_cast %278 : i32 to index
    %280 = memref.load %arg2[%279] : memref<100xf32, #tpu.memory_space<smem>>
    %281 = vector.broadcast %280 : f32 to vector<16x16xf32>
    %282 = arith.mulf %276, %281 : vector<16x16xf32>
    %283 = arith.addf %274, %282 : vector<16x16xf32>
    %c0_174 = arith.constant 0 : index
    %c1_175 = arith.constant 1 : index
    %c1_176 = arith.constant 1 : index
    %c0_177 = arith.constant 0 : index
    %284 = vector.load %arg4[%c0_174, %c1_175, %c1_176, %c0_177] : memref<1x4x20x20xf32, #tpu.memory_space<vmem>>, vector<1x1x16x16xf32>
    %285 = vector.shape_cast %284 : vector<1x1x16x16xf32> to vector<16x16xf32>
    %c5_i32_178 = arith.constant 5 : i32
    %286 = arith.addi %235, %c5_i32_178 : i32
    %c0_i32_179 = arith.constant 0 : i32
    %287 = arith.addi %286, %c0_i32_179 : i32
    %288 = arith.index_cast %287 : i32 to index
    %289 = memref.load %arg2[%288] : memref<100xf32, #tpu.memory_space<smem>>
    %290 = vector.broadcast %289 : f32 to vector<16x16xf32>
    %291 = arith.mulf %285, %290 : vector<16x16xf32>
    %292 = arith.addf %283, %291 : vector<16x16xf32>
    %c0_180 = arith.constant 0 : index
    %c1_181 = arith.constant 1 : index
    %c1_182 = arith.constant 1 : index
    %c1_183 = arith.constant 1 : index
    %293 = vector.load %arg4[%c0_180, %c1_181, %c1_182, %c1_183] : memref<1x4x20x20xf32, #tpu.memory_space<vmem>>, vector<1x1x16x16xf32>
    %294 = vector.shape_cast %293 : vector<1x1x16x16xf32> to vector<16x16xf32>
    %c5_i32_184 = arith.constant 5 : i32
    %295 = arith.addi %235, %c5_i32_184 : i32
    %c1_i32_185 = arith.constant 1 : i32
    %296 = arith.addi %295, %c1_i32_185 : i32
    %297 = arith.index_cast %296 : i32 to index
    %298 = memref.load %arg2[%297] : memref<100xf32, #tpu.memory_space<smem>>
    %299 = vector.broadcast %298 : f32 to vector<16x16xf32>
    %300 = arith.mulf %294, %299 : vector<16x16xf32>
    %301 = arith.addf %292, %300 : vector<16x16xf32>
    %c0_186 = arith.constant 0 : index
    %c1_187 = arith.constant 1 : index
    %c1_188 = arith.constant 1 : index
    %c2_189 = arith.constant 2 : index
    %302 = vector.load %arg4[%c0_186, %c1_187, %c1_188, %c2_189] : memref<1x4x20x20xf32, #tpu.memory_space<vmem>>, vector<1x1x16x16xf32>
    %303 = vector.shape_cast %302 : vector<1x1x16x16xf32> to vector<16x16xf32>
    %c5_i32_190 = arith.constant 5 : i32
    %304 = arith.addi %235, %c5_i32_190 : i32
    %c2_i32_191 = arith.constant 2 : i32
    %305 = arith.addi %304, %c2_i32_191 : i32
    %306 = arith.index_cast %305 : i32 to index
    %307 = memref.load %arg2[%306] : memref<100xf32, #tpu.memory_space<smem>>
    %308 = vector.broadcast %307 : f32 to vector<16x16xf32>
    %309 = arith.mulf %303, %308 : vector<16x16xf32>
    %310 = arith.addf %301, %309 : vector<16x16xf32>
    %c0_192 = arith.constant 0 : index
    %c1_193 = arith.constant 1 : index
    %c1_194 = arith.constant 1 : index
    %c3_195 = arith.constant 3 : index
    %311 = vector.load %arg4[%c0_192, %c1_193, %c1_194, %c3_195] : memref<1x4x20x20xf32, #tpu.memory_space<vmem>>, vector<1x1x16x16xf32>
    %312 = vector.shape_cast %311 : vector<1x1x16x16xf32> to vector<16x16xf32>
    %c5_i32_196 = arith.constant 5 : i32
    %313 = arith.addi %235, %c5_i32_196 : i32
    %c3_i32_197 = arith.constant 3 : i32
    %314 = arith.addi %313, %c3_i32_197 : i32
    %315 = arith.index_cast %314 : i32 to index
    %316 = memref.load %arg2[%315] : memref<100xf32, #tpu.memory_space<smem>>
    %317 = vector.broadcast %316 : f32 to vector<16x16xf32>
    %318 = arith.mulf %312, %317 : vector<16x16xf32>
    %319 = arith.addf %310, %318 : vector<16x16xf32>
    %c0_198 = arith.constant 0 : index
    %c1_199 = arith.constant 1 : index
    %c1_200 = arith.constant 1 : index
    %c4_201 = arith.constant 4 : index
    %320 = vector.load %arg4[%c0_198, %c1_199, %c1_200, %c4_201] : memref<1x4x20x20xf32, #tpu.memory_space<vmem>>, vector<1x1x16x16xf32>
    %321 = vector.shape_cast %320 : vector<1x1x16x16xf32> to vector<16x16xf32>
    %c5_i32_202 = arith.constant 5 : i32
    %322 = arith.addi %235, %c5_i32_202 : i32
    %c4_i32_203 = arith.constant 4 : i32
    %323 = arith.addi %322, %c4_i32_203 : i32
    %324 = arith.index_cast %323 : i32 to index
    %325 = memref.load %arg2[%324] : memref<100xf32, #tpu.memory_space<smem>>
    %326 = vector.broadcast %325 : f32 to vector<16x16xf32>
    %327 = arith.mulf %321, %326 : vector<16x16xf32>
    %328 = arith.addf %319, %327 : vector<16x16xf32>
    %c0_204 = arith.constant 0 : index
    %c1_205 = arith.constant 1 : index
    %c2_206 = arith.constant 2 : index
    %c0_207 = arith.constant 0 : index
    %329 = vector.load %arg4[%c0_204, %c1_205, %c2_206, %c0_207] : memref<1x4x20x20xf32, #tpu.memory_space<vmem>>, vector<1x1x16x16xf32>
    %330 = vector.shape_cast %329 : vector<1x1x16x16xf32> to vector<16x16xf32>
    %c10_i32_208 = arith.constant 10 : i32
    %331 = arith.addi %235, %c10_i32_208 : i32
    %c0_i32_209 = arith.constant 0 : i32
    %332 = arith.addi %331, %c0_i32_209 : i32
    %333 = arith.index_cast %332 : i32 to index
    %334 = memref.load %arg2[%333] : memref<100xf32, #tpu.memory_space<smem>>
    %335 = vector.broadcast %334 : f32 to vector<16x16xf32>
    %336 = arith.mulf %330, %335 : vector<16x16xf32>
    %337 = arith.addf %328, %336 : vector<16x16xf32>
    %c0_210 = arith.constant 0 : index
    %c1_211 = arith.constant 1 : index
    %c2_212 = arith.constant 2 : index
    %c1_213 = arith.constant 1 : index
    %338 = vector.load %arg4[%c0_210, %c1_211, %c2_212, %c1_213] : memref<1x4x20x20xf32, #tpu.memory_space<vmem>>, vector<1x1x16x16xf32>
    %339 = vector.shape_cast %338 : vector<1x1x16x16xf32> to vector<16x16xf32>
    %c10_i32_214 = arith.constant 10 : i32
    %340 = arith.addi %235, %c10_i32_214 : i32
    %c1_i32_215 = arith.constant 1 : i32
    %341 = arith.addi %340, %c1_i32_215 : i32
    %342 = arith.index_cast %341 : i32 to index
    %343 = memref.load %arg2[%342] : memref<100xf32, #tpu.memory_space<smem>>
    %344 = vector.broadcast %343 : f32 to vector<16x16xf32>
    %345 = arith.mulf %339, %344 : vector<16x16xf32>
    %346 = arith.addf %337, %345 : vector<16x16xf32>
    %c0_216 = arith.constant 0 : index
    %c1_217 = arith.constant 1 : index
    %c2_218 = arith.constant 2 : index
    %c2_219 = arith.constant 2 : index
    %347 = vector.load %arg4[%c0_216, %c1_217, %c2_218, %c2_219] : memref<1x4x20x20xf32, #tpu.memory_space<vmem>>, vector<1x1x16x16xf32>
    %348 = vector.shape_cast %347 : vector<1x1x16x16xf32> to vector<16x16xf32>
    %c10_i32_220 = arith.constant 10 : i32
    %349 = arith.addi %235, %c10_i32_220 : i32
    %c2_i32_221 = arith.constant 2 : i32
    %350 = arith.addi %349, %c2_i32_221 : i32
    %351 = arith.index_cast %350 : i32 to index
    %352 = memref.load %arg2[%351] : memref<100xf32, #tpu.memory_space<smem>>
    %353 = vector.broadcast %352 : f32 to vector<16x16xf32>
    %354 = arith.mulf %348, %353 : vector<16x16xf32>
    %355 = arith.addf %346, %354 : vector<16x16xf32>
    %c0_222 = arith.constant 0 : index
    %c1_223 = arith.constant 1 : index
    %c2_224 = arith.constant 2 : index
    %c3_225 = arith.constant 3 : index
    %356 = vector.load %arg4[%c0_222, %c1_223, %c2_224, %c3_225] : memref<1x4x20x20xf32, #tpu.memory_space<vmem>>, vector<1x1x16x16xf32>
    %357 = vector.shape_cast %356 : vector<1x1x16x16xf32> to vector<16x16xf32>
    %c10_i32_226 = arith.constant 10 : i32
    %358 = arith.addi %235, %c10_i32_226 : i32
    %c3_i32_227 = arith.constant 3 : i32
    %359 = arith.addi %358, %c3_i32_227 : i32
    %360 = arith.index_cast %359 : i32 to index
    %361 = memref.load %arg2[%360] : memref<100xf32, #tpu.memory_space<smem>>
    %362 = vector.broadcast %361 : f32 to vector<16x16xf32>
    %363 = arith.mulf %357, %362 : vector<16x16xf32>
    %364 = arith.addf %355, %363 : vector<16x16xf32>
    %c0_228 = arith.constant 0 : index
    %c1_229 = arith.constant 1 : index
    %c2_230 = arith.constant 2 : index
    %c4_231 = arith.constant 4 : index
    %365 = vector.load %arg4[%c0_228, %c1_229, %c2_230, %c4_231] : memref<1x4x20x20xf32, #tpu.memory_space<vmem>>, vector<1x1x16x16xf32>
    %366 = vector.shape_cast %365 : vector<1x1x16x16xf32> to vector<16x16xf32>
    %c10_i32_232 = arith.constant 10 : i32
    %367 = arith.addi %235, %c10_i32_232 : i32
    %c4_i32_233 = arith.constant 4 : i32
    %368 = arith.addi %367, %c4_i32_233 : i32
    %369 = arith.index_cast %368 : i32 to index
    %370 = memref.load %arg2[%369] : memref<100xf32, #tpu.memory_space<smem>>
    %371 = vector.broadcast %370 : f32 to vector<16x16xf32>
    %372 = arith.mulf %366, %371 : vector<16x16xf32>
    %373 = arith.addf %364, %372 : vector<16x16xf32>
    %c0_234 = arith.constant 0 : index
    %c1_235 = arith.constant 1 : index
    %c3_236 = arith.constant 3 : index
    %c0_237 = arith.constant 0 : index
    %374 = vector.load %arg4[%c0_234, %c1_235, %c3_236, %c0_237] : memref<1x4x20x20xf32, #tpu.memory_space<vmem>>, vector<1x1x16x16xf32>
    %375 = vector.shape_cast %374 : vector<1x1x16x16xf32> to vector<16x16xf32>
    %c15_i32_238 = arith.constant 15 : i32
    %376 = arith.addi %235, %c15_i32_238 : i32
    %c0_i32_239 = arith.constant 0 : i32
    %377 = arith.addi %376, %c0_i32_239 : i32
    %378 = arith.index_cast %377 : i32 to index
    %379 = memref.load %arg2[%378] : memref<100xf32, #tpu.memory_space<smem>>
    %380 = vector.broadcast %379 : f32 to vector<16x16xf32>
    %381 = arith.mulf %375, %380 : vector<16x16xf32>
    %382 = arith.addf %373, %381 : vector<16x16xf32>
    %c0_240 = arith.constant 0 : index
    %c1_241 = arith.constant 1 : index
    %c3_242 = arith.constant 3 : index
    %c1_243 = arith.constant 1 : index
    %383 = vector.load %arg4[%c0_240, %c1_241, %c3_242, %c1_243] : memref<1x4x20x20xf32, #tpu.memory_space<vmem>>, vector<1x1x16x16xf32>
    %384 = vector.shape_cast %383 : vector<1x1x16x16xf32> to vector<16x16xf32>
    %c15_i32_244 = arith.constant 15 : i32
    %385 = arith.addi %235, %c15_i32_244 : i32
    %c1_i32_245 = arith.constant 1 : i32
    %386 = arith.addi %385, %c1_i32_245 : i32
    %387 = arith.index_cast %386 : i32 to index
    %388 = memref.load %arg2[%387] : memref<100xf32, #tpu.memory_space<smem>>
    %389 = vector.broadcast %388 : f32 to vector<16x16xf32>
    %390 = arith.mulf %384, %389 : vector<16x16xf32>
    %391 = arith.addf %382, %390 : vector<16x16xf32>
    %c0_246 = arith.constant 0 : index
    %c1_247 = arith.constant 1 : index
    %c3_248 = arith.constant 3 : index
    %c2_249 = arith.constant 2 : index
    %392 = vector.load %arg4[%c0_246, %c1_247, %c3_248, %c2_249] : memref<1x4x20x20xf32, #tpu.memory_space<vmem>>, vector<1x1x16x16xf32>
    %393 = vector.shape_cast %392 : vector<1x1x16x16xf32> to vector<16x16xf32>
    %c15_i32_250 = arith.constant 15 : i32
    %394 = arith.addi %235, %c15_i32_250 : i32
    %c2_i32_251 = arith.constant 2 : i32
    %395 = arith.addi %394, %c2_i32_251 : i32
    %396 = arith.index_cast %395 : i32 to index
    %397 = memref.load %arg2[%396] : memref<100xf32, #tpu.memory_space<smem>>
    %398 = vector.broadcast %397 : f32 to vector<16x16xf32>
    %399 = arith.mulf %393, %398 : vector<16x16xf32>
    %400 = arith.addf %391, %399 : vector<16x16xf32>
    %c0_252 = arith.constant 0 : index
    %c1_253 = arith.constant 1 : index
    %c3_254 = arith.constant 3 : index
    %c3_255 = arith.constant 3 : index
    %401 = vector.load %arg4[%c0_252, %c1_253, %c3_254, %c3_255] : memref<1x4x20x20xf32, #tpu.memory_space<vmem>>, vector<1x1x16x16xf32>
    %402 = vector.shape_cast %401 : vector<1x1x16x16xf32> to vector<16x16xf32>
    %c15_i32_256 = arith.constant 15 : i32
    %403 = arith.addi %235, %c15_i32_256 : i32
    %c3_i32_257 = arith.constant 3 : i32
    %404 = arith.addi %403, %c3_i32_257 : i32
    %405 = arith.index_cast %404 : i32 to index
    %406 = memref.load %arg2[%405] : memref<100xf32, #tpu.memory_space<smem>>
    %407 = vector.broadcast %406 : f32 to vector<16x16xf32>
    %408 = arith.mulf %402, %407 : vector<16x16xf32>
    %409 = arith.addf %400, %408 : vector<16x16xf32>
    %c0_258 = arith.constant 0 : index
    %c1_259 = arith.constant 1 : index
    %c3_260 = arith.constant 3 : index
    %c4_261 = arith.constant 4 : index
    %410 = vector.load %arg4[%c0_258, %c1_259, %c3_260, %c4_261] : memref<1x4x20x20xf32, #tpu.memory_space<vmem>>, vector<1x1x16x16xf32>
    %411 = vector.shape_cast %410 : vector<1x1x16x16xf32> to vector<16x16xf32>
    %c15_i32_262 = arith.constant 15 : i32
    %412 = arith.addi %235, %c15_i32_262 : i32
    %c4_i32_263 = arith.constant 4 : i32
    %413 = arith.addi %412, %c4_i32_263 : i32
    %414 = arith.index_cast %413 : i32 to index
    %415 = memref.load %arg2[%414] : memref<100xf32, #tpu.memory_space<smem>>
    %416 = vector.broadcast %415 : f32 to vector<16x16xf32>
    %417 = arith.mulf %411, %416 : vector<16x16xf32>
    %418 = arith.addf %409, %417 : vector<16x16xf32>
    %c0_264 = arith.constant 0 : index
    %c1_265 = arith.constant 1 : index
    %c4_266 = arith.constant 4 : index
    %c0_267 = arith.constant 0 : index
    %419 = vector.load %arg4[%c0_264, %c1_265, %c4_266, %c0_267] : memref<1x4x20x20xf32, #tpu.memory_space<vmem>>, vector<1x1x16x16xf32>
    %420 = vector.shape_cast %419 : vector<1x1x16x16xf32> to vector<16x16xf32>
    %c20_i32_268 = arith.constant 20 : i32
    %421 = arith.addi %235, %c20_i32_268 : i32
    %c0_i32_269 = arith.constant 0 : i32
    %422 = arith.addi %421, %c0_i32_269 : i32
    %423 = arith.index_cast %422 : i32 to index
    %424 = memref.load %arg2[%423] : memref<100xf32, #tpu.memory_space<smem>>
    %425 = vector.broadcast %424 : f32 to vector<16x16xf32>
    %426 = arith.mulf %420, %425 : vector<16x16xf32>
    %427 = arith.addf %418, %426 : vector<16x16xf32>
    %c0_270 = arith.constant 0 : index
    %c1_271 = arith.constant 1 : index
    %c4_272 = arith.constant 4 : index
    %c1_273 = arith.constant 1 : index
    %428 = vector.load %arg4[%c0_270, %c1_271, %c4_272, %c1_273] : memref<1x4x20x20xf32, #tpu.memory_space<vmem>>, vector<1x1x16x16xf32>
    %429 = vector.shape_cast %428 : vector<1x1x16x16xf32> to vector<16x16xf32>
    %c20_i32_274 = arith.constant 20 : i32
    %430 = arith.addi %235, %c20_i32_274 : i32
    %c1_i32_275 = arith.constant 1 : i32
    %431 = arith.addi %430, %c1_i32_275 : i32
    %432 = arith.index_cast %431 : i32 to index
    %433 = memref.load %arg2[%432] : memref<100xf32, #tpu.memory_space<smem>>
    %434 = vector.broadcast %433 : f32 to vector<16x16xf32>
    %435 = arith.mulf %429, %434 : vector<16x16xf32>
    %436 = arith.addf %427, %435 : vector<16x16xf32>
    %c0_276 = arith.constant 0 : index
    %c1_277 = arith.constant 1 : index
    %c4_278 = arith.constant 4 : index
    %c2_279 = arith.constant 2 : index
    %437 = vector.load %arg4[%c0_276, %c1_277, %c4_278, %c2_279] : memref<1x4x20x20xf32, #tpu.memory_space<vmem>>, vector<1x1x16x16xf32>
    %438 = vector.shape_cast %437 : vector<1x1x16x16xf32> to vector<16x16xf32>
    %c20_i32_280 = arith.constant 20 : i32
    %439 = arith.addi %235, %c20_i32_280 : i32
    %c2_i32_281 = arith.constant 2 : i32
    %440 = arith.addi %439, %c2_i32_281 : i32
    %441 = arith.index_cast %440 : i32 to index
    %442 = memref.load %arg2[%441] : memref<100xf32, #tpu.memory_space<smem>>
    %443 = vector.broadcast %442 : f32 to vector<16x16xf32>
    %444 = arith.mulf %438, %443 : vector<16x16xf32>
    %445 = arith.addf %436, %444 : vector<16x16xf32>
    %c0_282 = arith.constant 0 : index
    %c1_283 = arith.constant 1 : index
    %c4_284 = arith.constant 4 : index
    %c3_285 = arith.constant 3 : index
    %446 = vector.load %arg4[%c0_282, %c1_283, %c4_284, %c3_285] : memref<1x4x20x20xf32, #tpu.memory_space<vmem>>, vector<1x1x16x16xf32>
    %447 = vector.shape_cast %446 : vector<1x1x16x16xf32> to vector<16x16xf32>
    %c20_i32_286 = arith.constant 20 : i32
    %448 = arith.addi %235, %c20_i32_286 : i32
    %c3_i32_287 = arith.constant 3 : i32
    %449 = arith.addi %448, %c3_i32_287 : i32
    %450 = arith.index_cast %449 : i32 to index
    %451 = memref.load %arg2[%450] : memref<100xf32, #tpu.memory_space<smem>>
    %452 = vector.broadcast %451 : f32 to vector<16x16xf32>
    %453 = arith.mulf %447, %452 : vector<16x16xf32>
    %454 = arith.addf %445, %453 : vector<16x16xf32>
    %c0_288 = arith.constant 0 : index
    %c1_289 = arith.constant 1 : index
    %c4_290 = arith.constant 4 : index
    %c4_291 = arith.constant 4 : index
    %455 = vector.load %arg4[%c0_288, %c1_289, %c4_290, %c4_291] : memref<1x4x20x20xf32, #tpu.memory_space<vmem>>, vector<1x1x16x16xf32>
    %456 = vector.shape_cast %455 : vector<1x1x16x16xf32> to vector<16x16xf32>
    %c20_i32_292 = arith.constant 20 : i32
    %457 = arith.addi %235, %c20_i32_292 : i32
    %c4_i32_293 = arith.constant 4 : i32
    %458 = arith.addi %457, %c4_i32_293 : i32
    %459 = arith.index_cast %458 : i32 to index
    %460 = memref.load %arg2[%459] : memref<100xf32, #tpu.memory_space<smem>>
    %461 = vector.broadcast %460 : f32 to vector<16x16xf32>
    %462 = arith.mulf %456, %461 : vector<16x16xf32>
    %463 = arith.addf %454, %462 : vector<16x16xf32>
    %c0_294 = arith.constant 0 : index
    %c1_295 = arith.constant 1 : index
    %c0_296 = arith.constant 0 : index
    %c0_297 = arith.constant 0 : index
    %464 = vector.load %arg5[%c0_294, %c1_295, %c0_296, %c0_297] : memref<1x4x16x16xf32, #tpu.memory_space<vmem>>, vector<1x1x16x16xf32>
    %465 = vector.shape_cast %464 : vector<1x1x16x16xf32> to vector<16x16xf32>
    %466 = vector.shape_cast %463 : vector<16x16xf32> to vector<1x1x16x16xf32>
    tpu.vector_store %arg5[%c0_294, %c1_295, %c0_296, %c0_297], %466 {strides = array<i32>} : memref<1x4x16x16xf32, #tpu.memory_space<vmem>>, vector<1x1x16x16xf32>,
    %c2_i32_298 = arith.constant 2 : i32
    %467 = arith.addi %0, %c2_i32_298 : i32
    %c25_i32_299 = arith.constant 25 : i32
    %468 = arith.muli %467, %c25_i32_299 : i32
    %469 = arith.index_cast %467 : i32 to index
    %470 = memref.load %arg3[%469] : memref<4xf32, #tpu.memory_space<smem>>
    %471 = vector.broadcast %470 : f32 to vector<16x16xf32>
    %c0_300 = arith.constant 0 : index
    %c2_301 = arith.constant 2 : index
    %c0_302 = arith.constant 0 : index
    %c0_303 = arith.constant 0 : index
    %472 = vector.load %arg4[%c0_300, %c2_301, %c0_302, %c0_303] : memref<1x4x20x20xf32, #tpu.memory_space<vmem>>, vector<1x1x16x16xf32>
    %473 = vector.shape_cast %472 : vector<1x1x16x16xf32> to vector<16x16xf32>
    %c0_i32_304 = arith.constant 0 : i32
    %474 = arith.addi %468, %c0_i32_304 : i32
    %c0_i32_305 = arith.constant 0 : i32
    %475 = arith.addi %474, %c0_i32_305 : i32
    %476 = arith.index_cast %475 : i32 to index
    %477 = memref.load %arg2[%476] : memref<100xf32, #tpu.memory_space<smem>>
    %478 = vector.broadcast %477 : f32 to vector<16x16xf32>
    %479 = arith.mulf %473, %478 : vector<16x16xf32>
    %480 = arith.addf %471, %479 : vector<16x16xf32>
    %c0_306 = arith.constant 0 : index
    %c2_307 = arith.constant 2 : index
    %c0_308 = arith.constant 0 : index
    %c1_309 = arith.constant 1 : index
    %481 = vector.load %arg4[%c0_306, %c2_307, %c0_308, %c1_309] : memref<1x4x20x20xf32, #tpu.memory_space<vmem>>, vector<1x1x16x16xf32>
    %482 = vector.shape_cast %481 : vector<1x1x16x16xf32> to vector<16x16xf32>
    %c0_i32_310 = arith.constant 0 : i32
    %483 = arith.addi %468, %c0_i32_310 : i32
    %c1_i32_311 = arith.constant 1 : i32
    %484 = arith.addi %483, %c1_i32_311 : i32
    %485 = arith.index_cast %484 : i32 to index
    %486 = memref.load %arg2[%485] : memref<100xf32, #tpu.memory_space<smem>>
    %487 = vector.broadcast %486 : f32 to vector<16x16xf32>
    %488 = arith.mulf %482, %487 : vector<16x16xf32>
    %489 = arith.addf %480, %488 : vector<16x16xf32>
    %c0_312 = arith.constant 0 : index
    %c2_313 = arith.constant 2 : index
    %c0_314 = arith.constant 0 : index
    %c2_315 = arith.constant 2 : index
    %490 = vector.load %arg4[%c0_312, %c2_313, %c0_314, %c2_315] : memref<1x4x20x20xf32, #tpu.memory_space<vmem>>, vector<1x1x16x16xf32>
    %491 = vector.shape_cast %490 : vector<1x1x16x16xf32> to vector<16x16xf32>
    %c0_i32_316 = arith.constant 0 : i32
    %492 = arith.addi %468, %c0_i32_316 : i32
    %c2_i32_317 = arith.constant 2 : i32
    %493 = arith.addi %492, %c2_i32_317 : i32
    %494 = arith.index_cast %493 : i32 to index
    %495 = memref.load %arg2[%494] : memref<100xf32, #tpu.memory_space<smem>>
    %496 = vector.broadcast %495 : f32 to vector<16x16xf32>
    %497 = arith.mulf %491, %496 : vector<16x16xf32>
    %498 = arith.addf %489, %497 : vector<16x16xf32>
    %c0_318 = arith.constant 0 : index
    %c2_319 = arith.constant 2 : index
    %c0_320 = arith.constant 0 : index
    %c3_321 = arith.constant 3 : index
    %499 = vector.load %arg4[%c0_318, %c2_319, %c0_320, %c3_321] : memref<1x4x20x20xf32, #tpu.memory_space<vmem>>, vector<1x1x16x16xf32>
    %500 = vector.shape_cast %499 : vector<1x1x16x16xf32> to vector<16x16xf32>
    %c0_i32_322 = arith.constant 0 : i32
    %501 = arith.addi %468, %c0_i32_322 : i32
    %c3_i32_323 = arith.constant 3 : i32
    %502 = arith.addi %501, %c3_i32_323 : i32
    %503 = arith.index_cast %502 : i32 to index
    %504 = memref.load %arg2[%503] : memref<100xf32, #tpu.memory_space<smem>>
    %505 = vector.broadcast %504 : f32 to vector<16x16xf32>
    %506 = arith.mulf %500, %505 : vector<16x16xf32>
    %507 = arith.addf %498, %506 : vector<16x16xf32>
    %c0_324 = arith.constant 0 : index
    %c2_325 = arith.constant 2 : index
    %c0_326 = arith.constant 0 : index
    %c4_327 = arith.constant 4 : index
    %508 = vector.load %arg4[%c0_324, %c2_325, %c0_326, %c4_327] : memref<1x4x20x20xf32, #tpu.memory_space<vmem>>, vector<1x1x16x16xf32>
    %509 = vector.shape_cast %508 : vector<1x1x16x16xf32> to vector<16x16xf32>
    %c0_i32_328 = arith.constant 0 : i32
    %510 = arith.addi %468, %c0_i32_328 : i32
    %c4_i32_329 = arith.constant 4 : i32
    %511 = arith.addi %510, %c4_i32_329 : i32
    %512 = arith.index_cast %511 : i32 to index
    %513 = memref.load %arg2[%512] : memref<100xf32, #tpu.memory_space<smem>>
    %514 = vector.broadcast %513 : f32 to vector<16x16xf32>
    %515 = arith.mulf %509, %514 : vector<16x16xf32>
    %516 = arith.addf %507, %515 : vector<16x16xf32>
    %c0_330 = arith.constant 0 : index
    %c2_331 = arith.constant 2 : index
    %c1_332 = arith.constant 1 : index
    %c0_333 = arith.constant 0 : index
    %517 = vector.load %arg4[%c0_330, %c2_331, %c1_332, %c0_333] : memref<1x4x20x20xf32, #tpu.memory_space<vmem>>, vector<1x1x16x16xf32>
    %518 = vector.shape_cast %517 : vector<1x1x16x16xf32> to vector<16x16xf32>
    %c5_i32_334 = arith.constant 5 : i32
    %519 = arith.addi %468, %c5_i32_334 : i32
    %c0_i32_335 = arith.constant 0 : i32
    %520 = arith.addi %519, %c0_i32_335 : i32
    %521 = arith.index_cast %520 : i32 to index
    %522 = memref.load %arg2[%521] : memref<100xf32, #tpu.memory_space<smem>>
    %523 = vector.broadcast %522 : f32 to vector<16x16xf32>
    %524 = arith.mulf %518, %523 : vector<16x16xf32>
    %525 = arith.addf %516, %524 : vector<16x16xf32>
    %c0_336 = arith.constant 0 : index
    %c2_337 = arith.constant 2 : index
    %c1_338 = arith.constant 1 : index
    %c1_339 = arith.constant 1 : index
    %526 = vector.load %arg4[%c0_336, %c2_337, %c1_338, %c1_339] : memref<1x4x20x20xf32, #tpu.memory_space<vmem>>, vector<1x1x16x16xf32>
    %527 = vector.shape_cast %526 : vector<1x1x16x16xf32> to vector<16x16xf32>
    %c5_i32_340 = arith.constant 5 : i32
    %528 = arith.addi %468, %c5_i32_340 : i32
    %c1_i32_341 = arith.constant 1 : i32
    %529 = arith.addi %528, %c1_i32_341 : i32
    %530 = arith.index_cast %529 : i32 to index
    %531 = memref.load %arg2[%530] : memref<100xf32, #tpu.memory_space<smem>>
    %532 = vector.broadcast %531 : f32 to vector<16x16xf32>
    %533 = arith.mulf %527, %532 : vector<16x16xf32>
    %534 = arith.addf %525, %533 : vector<16x16xf32>
    %c0_342 = arith.constant 0 : index
    %c2_343 = arith.constant 2 : index
    %c1_344 = arith.constant 1 : index
    %c2_345 = arith.constant 2 : index
    %535 = vector.load %arg4[%c0_342, %c2_343, %c1_344, %c2_345] : memref<1x4x20x20xf32, #tpu.memory_space<vmem>>, vector<1x1x16x16xf32>
    %536 = vector.shape_cast %535 : vector<1x1x16x16xf32> to vector<16x16xf32>
    %c5_i32_346 = arith.constant 5 : i32
    %537 = arith.addi %468, %c5_i32_346 : i32
    %c2_i32_347 = arith.constant 2 : i32
    %538 = arith.addi %537, %c2_i32_347 : i32
    %539 = arith.index_cast %538 : i32 to index
    %540 = memref.load %arg2[%539] : memref<100xf32, #tpu.memory_space<smem>>
    %541 = vector.broadcast %540 : f32 to vector<16x16xf32>
    %542 = arith.mulf %536, %541 : vector<16x16xf32>
    %543 = arith.addf %534, %542 : vector<16x16xf32>
    %c0_348 = arith.constant 0 : index
    %c2_349 = arith.constant 2 : index
    %c1_350 = arith.constant 1 : index
    %c3_351 = arith.constant 3 : index
    %544 = vector.load %arg4[%c0_348, %c2_349, %c1_350, %c3_351] : memref<1x4x20x20xf32, #tpu.memory_space<vmem>>, vector<1x1x16x16xf32>
    %545 = vector.shape_cast %544 : vector<1x1x16x16xf32> to vector<16x16xf32>
    %c5_i32_352 = arith.constant 5 : i32
    %546 = arith.addi %468, %c5_i32_352 : i32
    %c3_i32_353 = arith.constant 3 : i32
    %547 = arith.addi %546, %c3_i32_353 : i32
    %548 = arith.index_cast %547 : i32 to index
    %549 = memref.load %arg2[%548] : memref<100xf32, #tpu.memory_space<smem>>
    %550 = vector.broadcast %549 : f32 to vector<16x16xf32>
    %551 = arith.mulf %545, %550 : vector<16x16xf32>
    %552 = arith.addf %543, %551 : vector<16x16xf32>
    %c0_354 = arith.constant 0 : index
    %c2_355 = arith.constant 2 : index
    %c1_356 = arith.constant 1 : index
    %c4_357 = arith.constant 4 : index
    %553 = vector.load %arg4[%c0_354, %c2_355, %c1_356, %c4_357] : memref<1x4x20x20xf32, #tpu.memory_space<vmem>>, vector<1x1x16x16xf32>
    %554 = vector.shape_cast %553 : vector<1x1x16x16xf32> to vector<16x16xf32>
    %c5_i32_358 = arith.constant 5 : i32
    %555 = arith.addi %468, %c5_i32_358 : i32
    %c4_i32_359 = arith.constant 4 : i32
    %556 = arith.addi %555, %c4_i32_359 : i32
    %557 = arith.index_cast %556 : i32 to index
    %558 = memref.load %arg2[%557] : memref<100xf32, #tpu.memory_space<smem>>
    %559 = vector.broadcast %558 : f32 to vector<16x16xf32>
    %560 = arith.mulf %554, %559 : vector<16x16xf32>
    %561 = arith.addf %552, %560 : vector<16x16xf32>
    %c0_360 = arith.constant 0 : index
    %c2_361 = arith.constant 2 : index
    %c2_362 = arith.constant 2 : index
    %c0_363 = arith.constant 0 : index
    %562 = vector.load %arg4[%c0_360, %c2_361, %c2_362, %c0_363] : memref<1x4x20x20xf32, #tpu.memory_space<vmem>>, vector<1x1x16x16xf32>
    %563 = vector.shape_cast %562 : vector<1x1x16x16xf32> to vector<16x16xf32>
    %c10_i32_364 = arith.constant 10 : i32
    %564 = arith.addi %468, %c10_i32_364 : i32
    %c0_i32_365 = arith.constant 0 : i32
    %565 = arith.addi %564, %c0_i32_365 : i32
    %566 = arith.index_cast %565 : i32 to index
    %567 = memref.load %arg2[%566] : memref<100xf32, #tpu.memory_space<smem>>
    %568 = vector.broadcast %567 : f32 to vector<16x16xf32>
    %569 = arith.mulf %563, %568 : vector<16x16xf32>
    %570 = arith.addf %561, %569 : vector<16x16xf32>
    %c0_366 = arith.constant 0 : index
    %c2_367 = arith.constant 2 : index
    %c2_368 = arith.constant 2 : index
    %c1_369 = arith.constant 1 : index
    %571 = vector.load %arg4[%c0_366, %c2_367, %c2_368, %c1_369] : memref<1x4x20x20xf32, #tpu.memory_space<vmem>>, vector<1x1x16x16xf32>
    %572 = vector.shape_cast %571 : vector<1x1x16x16xf32> to vector<16x16xf32>
    %c10_i32_370 = arith.constant 10 : i32
    %573 = arith.addi %468, %c10_i32_370 : i32
    %c1_i32_371 = arith.constant 1 : i32
    %574 = arith.addi %573, %c1_i32_371 : i32
    %575 = arith.index_cast %574 : i32 to index
    %576 = memref.load %arg2[%575] : memref<100xf32, #tpu.memory_space<smem>>
    %577 = vector.broadcast %576 : f32 to vector<16x16xf32>
    %578 = arith.mulf %572, %577 : vector<16x16xf32>
    %579 = arith.addf %570, %578 : vector<16x16xf32>
    %c0_372 = arith.constant 0 : index
    %c2_373 = arith.constant 2 : index
    %c2_374 = arith.constant 2 : index
    %c2_375 = arith.constant 2 : index
    %580 = vector.load %arg4[%c0_372, %c2_373, %c2_374, %c2_375] : memref<1x4x20x20xf32, #tpu.memory_space<vmem>>, vector<1x1x16x16xf32>
    %581 = vector.shape_cast %580 : vector<1x1x16x16xf32> to vector<16x16xf32>
    %c10_i32_376 = arith.constant 10 : i32
    %582 = arith.addi %468, %c10_i32_376 : i32
    %c2_i32_377 = arith.constant 2 : i32
    %583 = arith.addi %582, %c2_i32_377 : i32
    %584 = arith.index_cast %583 : i32 to index
    %585 = memref.load %arg2[%584] : memref<100xf32, #tpu.memory_space<smem>>
    %586 = vector.broadcast %585 : f32 to vector<16x16xf32>
    %587 = arith.mulf %581, %586 : vector<16x16xf32>
    %588 = arith.addf %579, %587 : vector<16x16xf32>
    %c0_378 = arith.constant 0 : index
    %c2_379 = arith.constant 2 : index
    %c2_380 = arith.constant 2 : index
    %c3_381 = arith.constant 3 : index
    %589 = vector.load %arg4[%c0_378, %c2_379, %c2_380, %c3_381] : memref<1x4x20x20xf32, #tpu.memory_space<vmem>>, vector<1x1x16x16xf32>
    %590 = vector.shape_cast %589 : vector<1x1x16x16xf32> to vector<16x16xf32>
    %c10_i32_382 = arith.constant 10 : i32
    %591 = arith.addi %468, %c10_i32_382 : i32
    %c3_i32_383 = arith.constant 3 : i32
    %592 = arith.addi %591, %c3_i32_383 : i32
    %593 = arith.index_cast %592 : i32 to index
    %594 = memref.load %arg2[%593] : memref<100xf32, #tpu.memory_space<smem>>
    %595 = vector.broadcast %594 : f32 to vector<16x16xf32>
    %596 = arith.mulf %590, %595 : vector<16x16xf32>
    %597 = arith.addf %588, %596 : vector<16x16xf32>
    %c0_384 = arith.constant 0 : index
    %c2_385 = arith.constant 2 : index
    %c2_386 = arith.constant 2 : index
    %c4_387 = arith.constant 4 : index
    %598 = vector.load %arg4[%c0_384, %c2_385, %c2_386, %c4_387] : memref<1x4x20x20xf32, #tpu.memory_space<vmem>>, vector<1x1x16x16xf32>
    %599 = vector.shape_cast %598 : vector<1x1x16x16xf32> to vector<16x16xf32>
    %c10_i32_388 = arith.constant 10 : i32
    %600 = arith.addi %468, %c10_i32_388 : i32
    %c4_i32_389 = arith.constant 4 : i32
    %601 = arith.addi %600, %c4_i32_389 : i32
    %602 = arith.index_cast %601 : i32 to index
    %603 = memref.load %arg2[%602] : memref<100xf32, #tpu.memory_space<smem>>
    %604 = vector.broadcast %603 : f32 to vector<16x16xf32>
    %605 = arith.mulf %599, %604 : vector<16x16xf32>
    %606 = arith.addf %597, %605 : vector<16x16xf32>
    %c0_390 = arith.constant 0 : index
    %c2_391 = arith.constant 2 : index
    %c3_392 = arith.constant 3 : index
    %c0_393 = arith.constant 0 : index
    %607 = vector.load %arg4[%c0_390, %c2_391, %c3_392, %c0_393] : memref<1x4x20x20xf32, #tpu.memory_space<vmem>>, vector<1x1x16x16xf32>
    %608 = vector.shape_cast %607 : vector<1x1x16x16xf32> to vector<16x16xf32>
    %c15_i32_394 = arith.constant 15 : i32
    %609 = arith.addi %468, %c15_i32_394 : i32
    %c0_i32_395 = arith.constant 0 : i32
    %610 = arith.addi %609, %c0_i32_395 : i32
    %611 = arith.index_cast %610 : i32 to index
    %612 = memref.load %arg2[%611] : memref<100xf32, #tpu.memory_space<smem>>
    %613 = vector.broadcast %612 : f32 to vector<16x16xf32>
    %614 = arith.mulf %608, %613 : vector<16x16xf32>
    %615 = arith.addf %606, %614 : vector<16x16xf32>
    %c0_396 = arith.constant 0 : index
    %c2_397 = arith.constant 2 : index
    %c3_398 = arith.constant 3 : index
    %c1_399 = arith.constant 1 : index
    %616 = vector.load %arg4[%c0_396, %c2_397, %c3_398, %c1_399] : memref<1x4x20x20xf32, #tpu.memory_space<vmem>>, vector<1x1x16x16xf32>
    %617 = vector.shape_cast %616 : vector<1x1x16x16xf32> to vector<16x16xf32>
    %c15_i32_400 = arith.constant 15 : i32
    %618 = arith.addi %468, %c15_i32_400 : i32
    %c1_i32_401 = arith.constant 1 : i32
    %619 = arith.addi %618, %c1_i32_401 : i32
    %620 = arith.index_cast %619 : i32 to index
    %621 = memref.load %arg2[%620] : memref<100xf32, #tpu.memory_space<smem>>
    %622 = vector.broadcast %621 : f32 to vector<16x16xf32>
    %623 = arith.mulf %617, %622 : vector<16x16xf32>
    %624 = arith.addf %615, %623 : vector<16x16xf32>
    %c0_402 = arith.constant 0 : index
    %c2_403 = arith.constant 2 : index
    %c3_404 = arith.constant 3 : index
    %c2_405 = arith.constant 2 : index
    %625 = vector.load %arg4[%c0_402, %c2_403, %c3_404, %c2_405] : memref<1x4x20x20xf32, #tpu.memory_space<vmem>>, vector<1x1x16x16xf32>
    %626 = vector.shape_cast %625 : vector<1x1x16x16xf32> to vector<16x16xf32>
    %c15_i32_406 = arith.constant 15 : i32
    %627 = arith.addi %468, %c15_i32_406 : i32
    %c2_i32_407 = arith.constant 2 : i32
    %628 = arith.addi %627, %c2_i32_407 : i32
    %629 = arith.index_cast %628 : i32 to index
    %630 = memref.load %arg2[%629] : memref<100xf32, #tpu.memory_space<smem>>
    %631 = vector.broadcast %630 : f32 to vector<16x16xf32>
    %632 = arith.mulf %626, %631 : vector<16x16xf32>
    %633 = arith.addf %624, %632 : vector<16x16xf32>
    %c0_408 = arith.constant 0 : index
    %c2_409 = arith.constant 2 : index
    %c3_410 = arith.constant 3 : index
    %c3_411 = arith.constant 3 : index
    %634 = vector.load %arg4[%c0_408, %c2_409, %c3_410, %c3_411] : memref<1x4x20x20xf32, #tpu.memory_space<vmem>>, vector<1x1x16x16xf32>
    %635 = vector.shape_cast %634 : vector<1x1x16x16xf32> to vector<16x16xf32>
    %c15_i32_412 = arith.constant 15 : i32
    %636 = arith.addi %468, %c15_i32_412 : i32
    %c3_i32_413 = arith.constant 3 : i32
    %637 = arith.addi %636, %c3_i32_413 : i32
    %638 = arith.index_cast %637 : i32 to index
    %639 = memref.load %arg2[%638] : memref<100xf32, #tpu.memory_space<smem>>
    %640 = vector.broadcast %639 : f32 to vector<16x16xf32>
    %641 = arith.mulf %635, %640 : vector<16x16xf32>
    %642 = arith.addf %633, %641 : vector<16x16xf32>
    %c0_414 = arith.constant 0 : index
    %c2_415 = arith.constant 2 : index
    %c3_416 = arith.constant 3 : index
    %c4_417 = arith.constant 4 : index
    %643 = vector.load %arg4[%c0_414, %c2_415, %c3_416, %c4_417] : memref<1x4x20x20xf32, #tpu.memory_space<vmem>>, vector<1x1x16x16xf32>
    %644 = vector.shape_cast %643 : vector<1x1x16x16xf32> to vector<16x16xf32>
    %c15_i32_418 = arith.constant 15 : i32
    %645 = arith.addi %468, %c15_i32_418 : i32
    %c4_i32_419 = arith.constant 4 : i32
    %646 = arith.addi %645, %c4_i32_419 : i32
    %647 = arith.index_cast %646 : i32 to index
    %648 = memref.load %arg2[%647] : memref<100xf32, #tpu.memory_space<smem>>
    %649 = vector.broadcast %648 : f32 to vector<16x16xf32>
    %650 = arith.mulf %644, %649 : vector<16x16xf32>
    %651 = arith.addf %642, %650 : vector<16x16xf32>
    %c0_420 = arith.constant 0 : index
    %c2_421 = arith.constant 2 : index
    %c4_422 = arith.constant 4 : index
    %c0_423 = arith.constant 0 : index
    %652 = vector.load %arg4[%c0_420, %c2_421, %c4_422, %c0_423] : memref<1x4x20x20xf32, #tpu.memory_space<vmem>>, vector<1x1x16x16xf32>
    %653 = vector.shape_cast %652 : vector<1x1x16x16xf32> to vector<16x16xf32>
    %c20_i32_424 = arith.constant 20 : i32
    %654 = arith.addi %468, %c20_i32_424 : i32
    %c0_i32_425 = arith.constant 0 : i32
    %655 = arith.addi %654, %c0_i32_425 : i32
    %656 = arith.index_cast %655 : i32 to index
    %657 = memref.load %arg2[%656] : memref<100xf32, #tpu.memory_space<smem>>
    %658 = vector.broadcast %657 : f32 to vector<16x16xf32>
    %659 = arith.mulf %653, %658 : vector<16x16xf32>
    %660 = arith.addf %651, %659 : vector<16x16xf32>
    %c0_426 = arith.constant 0 : index
    %c2_427 = arith.constant 2 : index
    %c4_428 = arith.constant 4 : index
    %c1_429 = arith.constant 1 : index
    %661 = vector.load %arg4[%c0_426, %c2_427, %c4_428, %c1_429] : memref<1x4x20x20xf32, #tpu.memory_space<vmem>>, vector<1x1x16x16xf32>
    %662 = vector.shape_cast %661 : vector<1x1x16x16xf32> to vector<16x16xf32>
    %c20_i32_430 = arith.constant 20 : i32
    %663 = arith.addi %468, %c20_i32_430 : i32
    %c1_i32_431 = arith.constant 1 : i32
    %664 = arith.addi %663, %c1_i32_431 : i32
    %665 = arith.index_cast %664 : i32 to index
    %666 = memref.load %arg2[%665] : memref<100xf32, #tpu.memory_space<smem>>
    %667 = vector.broadcast %666 : f32 to vector<16x16xf32>
    %668 = arith.mulf %662, %667 : vector<16x16xf32>
    %669 = arith.addf %660, %668 : vector<16x16xf32>
    %c0_432 = arith.constant 0 : index
    %c2_433 = arith.constant 2 : index
    %c4_434 = arith.constant 4 : index
    %c2_435 = arith.constant 2 : index
    %670 = vector.load %arg4[%c0_432, %c2_433, %c4_434, %c2_435] : memref<1x4x20x20xf32, #tpu.memory_space<vmem>>, vector<1x1x16x16xf32>
    %671 = vector.shape_cast %670 : vector<1x1x16x16xf32> to vector<16x16xf32>
    %c20_i32_436 = arith.constant 20 : i32
    %672 = arith.addi %468, %c20_i32_436 : i32
    %c2_i32_437 = arith.constant 2 : i32
    %673 = arith.addi %672, %c2_i32_437 : i32
    %674 = arith.index_cast %673 : i32 to index
    %675 = memref.load %arg2[%674] : memref<100xf32, #tpu.memory_space<smem>>
    %676 = vector.broadcast %675 : f32 to vector<16x16xf32>
    %677 = arith.mulf %671, %676 : vector<16x16xf32>
    %678 = arith.addf %669, %677 : vector<16x16xf32>
    %c0_438 = arith.constant 0 : index
    %c2_439 = arith.constant 2 : index
    %c4_440 = arith.constant 4 : index
    %c3_441 = arith.constant 3 : index
    %679 = vector.load %arg4[%c0_438, %c2_439, %c4_440, %c3_441] : memref<1x4x20x20xf32, #tpu.memory_space<vmem>>, vector<1x1x16x16xf32>
    %680 = vector.shape_cast %679 : vector<1x1x16x16xf32> to vector<16x16xf32>
    %c20_i32_442 = arith.constant 20 : i32
    %681 = arith.addi %468, %c20_i32_442 : i32
    %c3_i32_443 = arith.constant 3 : i32
    %682 = arith.addi %681, %c3_i32_443 : i32
    %683 = arith.index_cast %682 : i32 to index
    %684 = memref.load %arg2[%683] : memref<100xf32, #tpu.memory_space<smem>>
    %685 = vector.broadcast %684 : f32 to vector<16x16xf32>
    %686 = arith.mulf %680, %685 : vector<16x16xf32>
    %687 = arith.addf %678, %686 : vector<16x16xf32>
    %c0_444 = arith.constant 0 : index
    %c2_445 = arith.constant 2 : index
    %c4_446 = arith.constant 4 : index
    %c4_447 = arith.constant 4 : index
    %688 = vector.load %arg4[%c0_444, %c2_445, %c4_446, %c4_447] : memref<1x4x20x20xf32, #tpu.memory_space<vmem>>, vector<1x1x16x16xf32>
    %689 = vector.shape_cast %688 : vector<1x1x16x16xf32> to vector<16x16xf32>
    %c20_i32_448 = arith.constant 20 : i32
    %690 = arith.addi %468, %c20_i32_448 : i32
    %c4_i32_449 = arith.constant 4 : i32
    %691 = arith.addi %690, %c4_i32_449 : i32
    %692 = arith.index_cast %691 : i32 to index
    %693 = memref.load %arg2[%692] : memref<100xf32, #tpu.memory_space<smem>>
    %694 = vector.broadcast %693 : f32 to vector<16x16xf32>
    %695 = arith.mulf %689, %694 : vector<16x16xf32>
    %696 = arith.addf %687, %695 : vector<16x16xf32>
    %c0_450 = arith.constant 0 : index
    %c2_451 = arith.constant 2 : index
    %c0_452 = arith.constant 0 : index
    %c0_453 = arith.constant 0 : index
    %697 = vector.load %arg5[%c0_450, %c2_451, %c0_452, %c0_453] : memref<1x4x16x16xf32, #tpu.memory_space<vmem>>, vector<1x1x16x16xf32>
    %698 = vector.shape_cast %697 : vector<1x1x16x16xf32> to vector<16x16xf32>
    %699 = vector.shape_cast %696 : vector<16x16xf32> to vector<1x1x16x16xf32>
    tpu.vector_store %arg5[%c0_450, %c2_451, %c0_452, %c0_453], %699 {strides = array<i32>} : memref<1x4x16x16xf32, #tpu.memory_space<vmem>>, vector<1x1x16x16xf32>,
    %c3_i32_454 = arith.constant 3 : i32
    %700 = arith.addi %0, %c3_i32_454 : i32
    %c25_i32_455 = arith.constant 25 : i32
    %701 = arith.muli %700, %c25_i32_455 : i32
    %702 = arith.index_cast %700 : i32 to index
    %703 = memref.load %arg3[%702] : memref<4xf32, #tpu.memory_space<smem>>
    %704 = vector.broadcast %703 : f32 to vector<16x16xf32>
    %c0_456 = arith.constant 0 : index
    %c3_457 = arith.constant 3 : index
    %c0_458 = arith.constant 0 : index
    %c0_459 = arith.constant 0 : index
    %705 = vector.load %arg4[%c0_456, %c3_457, %c0_458, %c0_459] : memref<1x4x20x20xf32, #tpu.memory_space<vmem>>, vector<1x1x16x16xf32>
    %706 = vector.shape_cast %705 : vector<1x1x16x16xf32> to vector<16x16xf32>
    %c0_i32_460 = arith.constant 0 : i32
    %707 = arith.addi %701, %c0_i32_460 : i32
    %c0_i32_461 = arith.constant 0 : i32
    %708 = arith.addi %707, %c0_i32_461 : i32
    %709 = arith.index_cast %708 : i32 to index
    %710 = memref.load %arg2[%709] : memref<100xf32, #tpu.memory_space<smem>>
    %711 = vector.broadcast %710 : f32 to vector<16x16xf32>
    %712 = arith.mulf %706, %711 : vector<16x16xf32>
    %713 = arith.addf %704, %712 : vector<16x16xf32>
    %c0_462 = arith.constant 0 : index
    %c3_463 = arith.constant 3 : index
    %c0_464 = arith.constant 0 : index
    %c1_465 = arith.constant 1 : index
    %714 = vector.load %arg4[%c0_462, %c3_463, %c0_464, %c1_465] : memref<1x4x20x20xf32, #tpu.memory_space<vmem>>, vector<1x1x16x16xf32>
    %715 = vector.shape_cast %714 : vector<1x1x16x16xf32> to vector<16x16xf32>
    %c0_i32_466 = arith.constant 0 : i32
    %716 = arith.addi %701, %c0_i32_466 : i32
    %c1_i32_467 = arith.constant 1 : i32
    %717 = arith.addi %716, %c1_i32_467 : i32
    %718 = arith.index_cast %717 : i32 to index
    %719 = memref.load %arg2[%718] : memref<100xf32, #tpu.memory_space<smem>>
    %720 = vector.broadcast %719 : f32 to vector<16x16xf32>
    %721 = arith.mulf %715, %720 : vector<16x16xf32>
    %722 = arith.addf %713, %721 : vector<16x16xf32>
    %c0_468 = arith.constant 0 : index
    %c3_469 = arith.constant 3 : index
    %c0_470 = arith.constant 0 : index
    %c2_471 = arith.constant 2 : index
    %723 = vector.load %arg4[%c0_468, %c3_469, %c0_470, %c2_471] : memref<1x4x20x20xf32, #tpu.memory_space<vmem>>, vector<1x1x16x16xf32>
    %724 = vector.shape_cast %723 : vector<1x1x16x16xf32> to vector<16x16xf32>
    %c0_i32_472 = arith.constant 0 : i32
    %725 = arith.addi %701, %c0_i32_472 : i32
    %c2_i32_473 = arith.constant 2 : i32
    %726 = arith.addi %725, %c2_i32_473 : i32
    %727 = arith.index_cast %726 : i32 to index
    %728 = memref.load %arg2[%727] : memref<100xf32, #tpu.memory_space<smem>>
    %729 = vector.broadcast %728 : f32 to vector<16x16xf32>
    %730 = arith.mulf %724, %729 : vector<16x16xf32>
    %731 = arith.addf %722, %730 : vector<16x16xf32>
    %c0_474 = arith.constant 0 : index
    %c3_475 = arith.constant 3 : index
    %c0_476 = arith.constant 0 : index
    %c3_477 = arith.constant 3 : index
    %732 = vector.load %arg4[%c0_474, %c3_475, %c0_476, %c3_477] : memref<1x4x20x20xf32, #tpu.memory_space<vmem>>, vector<1x1x16x16xf32>
    %733 = vector.shape_cast %732 : vector<1x1x16x16xf32> to vector<16x16xf32>
    %c0_i32_478 = arith.constant 0 : i32
    %734 = arith.addi %701, %c0_i32_478 : i32
    %c3_i32_479 = arith.constant 3 : i32
    %735 = arith.addi %734, %c3_i32_479 : i32
    %736 = arith.index_cast %735 : i32 to index
    %737 = memref.load %arg2[%736] : memref<100xf32, #tpu.memory_space<smem>>
    %738 = vector.broadcast %737 : f32 to vector<16x16xf32>
    %739 = arith.mulf %733, %738 : vector<16x16xf32>
    %740 = arith.addf %731, %739 : vector<16x16xf32>
    %c0_480 = arith.constant 0 : index
    %c3_481 = arith.constant 3 : index
    %c0_482 = arith.constant 0 : index
    %c4_483 = arith.constant 4 : index
    %741 = vector.load %arg4[%c0_480, %c3_481, %c0_482, %c4_483] : memref<1x4x20x20xf32, #tpu.memory_space<vmem>>, vector<1x1x16x16xf32>
    %742 = vector.shape_cast %741 : vector<1x1x16x16xf32> to vector<16x16xf32>
    %c0_i32_484 = arith.constant 0 : i32
    %743 = arith.addi %701, %c0_i32_484 : i32
    %c4_i32_485 = arith.constant 4 : i32
    %744 = arith.addi %743, %c4_i32_485 : i32
    %745 = arith.index_cast %744 : i32 to index
    %746 = memref.load %arg2[%745] : memref<100xf32, #tpu.memory_space<smem>>
    %747 = vector.broadcast %746 : f32 to vector<16x16xf32>
    %748 = arith.mulf %742, %747 : vector<16x16xf32>
    %749 = arith.addf %740, %748 : vector<16x16xf32>
    %c0_486 = arith.constant 0 : index
    %c3_487 = arith.constant 3 : index
    %c1_488 = arith.constant 1 : index
    %c0_489 = arith.constant 0 : index
    %750 = vector.load %arg4[%c0_486, %c3_487, %c1_488, %c0_489] : memref<1x4x20x20xf32, #tpu.memory_space<vmem>>, vector<1x1x16x16xf32>
    %751 = vector.shape_cast %750 : vector<1x1x16x16xf32> to vector<16x16xf32>
    %c5_i32_490 = arith.constant 5 : i32
    %752 = arith.addi %701, %c5_i32_490 : i32
    %c0_i32_491 = arith.constant 0 : i32
    %753 = arith.addi %752, %c0_i32_491 : i32
    %754 = arith.index_cast %753 : i32 to index
    %755 = memref.load %arg2[%754] : memref<100xf32, #tpu.memory_space<smem>>
    %756 = vector.broadcast %755 : f32 to vector<16x16xf32>
    %757 = arith.mulf %751, %756 : vector<16x16xf32>
    %758 = arith.addf %749, %757 : vector<16x16xf32>
    %c0_492 = arith.constant 0 : index
    %c3_493 = arith.constant 3 : index
    %c1_494 = arith.constant 1 : index
    %c1_495 = arith.constant 1 : index
    %759 = vector.load %arg4[%c0_492, %c3_493, %c1_494, %c1_495] : memref<1x4x20x20xf32, #tpu.memory_space<vmem>>, vector<1x1x16x16xf32>
    %760 = vector.shape_cast %759 : vector<1x1x16x16xf32> to vector<16x16xf32>
    %c5_i32_496 = arith.constant 5 : i32
    %761 = arith.addi %701, %c5_i32_496 : i32
    %c1_i32_497 = arith.constant 1 : i32
    %762 = arith.addi %761, %c1_i32_497 : i32
    %763 = arith.index_cast %762 : i32 to index
    %764 = memref.load %arg2[%763] : memref<100xf32, #tpu.memory_space<smem>>
    %765 = vector.broadcast %764 : f32 to vector<16x16xf32>
    %766 = arith.mulf %760, %765 : vector<16x16xf32>
    %767 = arith.addf %758, %766 : vector<16x16xf32>
    %c0_498 = arith.constant 0 : index
    %c3_499 = arith.constant 3 : index
    %c1_500 = arith.constant 1 : index
    %c2_501 = arith.constant 2 : index
    %768 = vector.load %arg4[%c0_498, %c3_499, %c1_500, %c2_501] : memref<1x4x20x20xf32, #tpu.memory_space<vmem>>, vector<1x1x16x16xf32>
    %769 = vector.shape_cast %768 : vector<1x1x16x16xf32> to vector<16x16xf32>
    %c5_i32_502 = arith.constant 5 : i32
    %770 = arith.addi %701, %c5_i32_502 : i32
    %c2_i32_503 = arith.constant 2 : i32
    %771 = arith.addi %770, %c2_i32_503 : i32
    %772 = arith.index_cast %771 : i32 to index
    %773 = memref.load %arg2[%772] : memref<100xf32, #tpu.memory_space<smem>>
    %774 = vector.broadcast %773 : f32 to vector<16x16xf32>
    %775 = arith.mulf %769, %774 : vector<16x16xf32>
    %776 = arith.addf %767, %775 : vector<16x16xf32>
    %c0_504 = arith.constant 0 : index
    %c3_505 = arith.constant 3 : index
    %c1_506 = arith.constant 1 : index
    %c3_507 = arith.constant 3 : index
    %777 = vector.load %arg4[%c0_504, %c3_505, %c1_506, %c3_507] : memref<1x4x20x20xf32, #tpu.memory_space<vmem>>, vector<1x1x16x16xf32>
    %778 = vector.shape_cast %777 : vector<1x1x16x16xf32> to vector<16x16xf32>
    %c5_i32_508 = arith.constant 5 : i32
    %779 = arith.addi %701, %c5_i32_508 : i32
    %c3_i32_509 = arith.constant 3 : i32
    %780 = arith.addi %779, %c3_i32_509 : i32
    %781 = arith.index_cast %780 : i32 to index
    %782 = memref.load %arg2[%781] : memref<100xf32, #tpu.memory_space<smem>>
    %783 = vector.broadcast %782 : f32 to vector<16x16xf32>
    %784 = arith.mulf %778, %783 : vector<16x16xf32>
    %785 = arith.addf %776, %784 : vector<16x16xf32>
    %c0_510 = arith.constant 0 : index
    %c3_511 = arith.constant 3 : index
    %c1_512 = arith.constant 1 : index
    %c4_513 = arith.constant 4 : index
    %786 = vector.load %arg4[%c0_510, %c3_511, %c1_512, %c4_513] : memref<1x4x20x20xf32, #tpu.memory_space<vmem>>, vector<1x1x16x16xf32>
    %787 = vector.shape_cast %786 : vector<1x1x16x16xf32> to vector<16x16xf32>
    %c5_i32_514 = arith.constant 5 : i32
    %788 = arith.addi %701, %c5_i32_514 : i32
    %c4_i32_515 = arith.constant 4 : i32
    %789 = arith.addi %788, %c4_i32_515 : i32
    %790 = arith.index_cast %789 : i32 to index
    %791 = memref.load %arg2[%790] : memref<100xf32, #tpu.memory_space<smem>>
    %792 = vector.broadcast %791 : f32 to vector<16x16xf32>
    %793 = arith.mulf %787, %792 : vector<16x16xf32>
    %794 = arith.addf %785, %793 : vector<16x16xf32>
    %c0_516 = arith.constant 0 : index
    %c3_517 = arith.constant 3 : index
    %c2_518 = arith.constant 2 : index
    %c0_519 = arith.constant 0 : index
    %795 = vector.load %arg4[%c0_516, %c3_517, %c2_518, %c0_519] : memref<1x4x20x20xf32, #tpu.memory_space<vmem>>, vector<1x1x16x16xf32>
    %796 = vector.shape_cast %795 : vector<1x1x16x16xf32> to vector<16x16xf32>
    %c10_i32_520 = arith.constant 10 : i32
    %797 = arith.addi %701, %c10_i32_520 : i32
    %c0_i32_521 = arith.constant 0 : i32
    %798 = arith.addi %797, %c0_i32_521 : i32
    %799 = arith.index_cast %798 : i32 to index
    %800 = memref.load %arg2[%799] : memref<100xf32, #tpu.memory_space<smem>>
    %801 = vector.broadcast %800 : f32 to vector<16x16xf32>
    %802 = arith.mulf %796, %801 : vector<16x16xf32>
    %803 = arith.addf %794, %802 : vector<16x16xf32>
    %c0_522 = arith.constant 0 : index
    %c3_523 = arith.constant 3 : index
    %c2_524 = arith.constant 2 : index
    %c1_525 = arith.constant 1 : index
    %804 = vector.load %arg4[%c0_522, %c3_523, %c2_524, %c1_525] : memref<1x4x20x20xf32, #tpu.memory_space<vmem>>, vector<1x1x16x16xf32>
    %805 = vector.shape_cast %804 : vector<1x1x16x16xf32> to vector<16x16xf32>
    %c10_i32_526 = arith.constant 10 : i32
    %806 = arith.addi %701, %c10_i32_526 : i32
    %c1_i32_527 = arith.constant 1 : i32
    %807 = arith.addi %806, %c1_i32_527 : i32
    %808 = arith.index_cast %807 : i32 to index
    %809 = memref.load %arg2[%808] : memref<100xf32, #tpu.memory_space<smem>>
    %810 = vector.broadcast %809 : f32 to vector<16x16xf32>
    %811 = arith.mulf %805, %810 : vector<16x16xf32>
    %812 = arith.addf %803, %811 : vector<16x16xf32>
    %c0_528 = arith.constant 0 : index
    %c3_529 = arith.constant 3 : index
    %c2_530 = arith.constant 2 : index
    %c2_531 = arith.constant 2 : index
    %813 = vector.load %arg4[%c0_528, %c3_529, %c2_530, %c2_531] : memref<1x4x20x20xf32, #tpu.memory_space<vmem>>, vector<1x1x16x16xf32>
    %814 = vector.shape_cast %813 : vector<1x1x16x16xf32> to vector<16x16xf32>
    %c10_i32_532 = arith.constant 10 : i32
    %815 = arith.addi %701, %c10_i32_532 : i32
    %c2_i32_533 = arith.constant 2 : i32
    %816 = arith.addi %815, %c2_i32_533 : i32
    %817 = arith.index_cast %816 : i32 to index
    %818 = memref.load %arg2[%817] : memref<100xf32, #tpu.memory_space<smem>>
    %819 = vector.broadcast %818 : f32 to vector<16x16xf32>
    %820 = arith.mulf %814, %819 : vector<16x16xf32>
    %821 = arith.addf %812, %820 : vector<16x16xf32>
    %c0_534 = arith.constant 0 : index
    %c3_535 = arith.constant 3 : index
    %c2_536 = arith.constant 2 : index
    %c3_537 = arith.constant 3 : index
    %822 = vector.load %arg4[%c0_534, %c3_535, %c2_536, %c3_537] : memref<1x4x20x20xf32, #tpu.memory_space<vmem>>, vector<1x1x16x16xf32>
    %823 = vector.shape_cast %822 : vector<1x1x16x16xf32> to vector<16x16xf32>
    %c10_i32_538 = arith.constant 10 : i32
    %824 = arith.addi %701, %c10_i32_538 : i32
    %c3_i32_539 = arith.constant 3 : i32
    %825 = arith.addi %824, %c3_i32_539 : i32
    %826 = arith.index_cast %825 : i32 to index
    %827 = memref.load %arg2[%826] : memref<100xf32, #tpu.memory_space<smem>>
    %828 = vector.broadcast %827 : f32 to vector<16x16xf32>
    %829 = arith.mulf %823, %828 : vector<16x16xf32>
    %830 = arith.addf %821, %829 : vector<16x16xf32>
    %c0_540 = arith.constant 0 : index
    %c3_541 = arith.constant 3 : index
    %c2_542 = arith.constant 2 : index
    %c4_543 = arith.constant 4 : index
    %831 = vector.load %arg4[%c0_540, %c3_541, %c2_542, %c4_543] : memref<1x4x20x20xf32, #tpu.memory_space<vmem>>, vector<1x1x16x16xf32>
    %832 = vector.shape_cast %831 : vector<1x1x16x16xf32> to vector<16x16xf32>
    %c10_i32_544 = arith.constant 10 : i32
    %833 = arith.addi %701, %c10_i32_544 : i32
    %c4_i32_545 = arith.constant 4 : i32
    %834 = arith.addi %833, %c4_i32_545 : i32
    %835 = arith.index_cast %834 : i32 to index
    %836 = memref.load %arg2[%835] : memref<100xf32, #tpu.memory_space<smem>>
    %837 = vector.broadcast %836 : f32 to vector<16x16xf32>
    %838 = arith.mulf %832, %837 : vector<16x16xf32>
    %839 = arith.addf %830, %838 : vector<16x16xf32>
    %c0_546 = arith.constant 0 : index
    %c3_547 = arith.constant 3 : index
    %c3_548 = arith.constant 3 : index
    %c0_549 = arith.constant 0 : index
    %840 = vector.load %arg4[%c0_546, %c3_547, %c3_548, %c0_549] : memref<1x4x20x20xf32, #tpu.memory_space<vmem>>, vector<1x1x16x16xf32>
    %841 = vector.shape_cast %840 : vector<1x1x16x16xf32> to vector<16x16xf32>
    %c15_i32_550 = arith.constant 15 : i32
    %842 = arith.addi %701, %c15_i32_550 : i32
    %c0_i32_551 = arith.constant 0 : i32
    %843 = arith.addi %842, %c0_i32_551 : i32
    %844 = arith.index_cast %843 : i32 to index
    %845 = memref.load %arg2[%844] : memref<100xf32, #tpu.memory_space<smem>>
    %846 = vector.broadcast %845 : f32 to vector<16x16xf32>
    %847 = arith.mulf %841, %846 : vector<16x16xf32>
    %848 = arith.addf %839, %847 : vector<16x16xf32>
    %c0_552 = arith.constant 0 : index
    %c3_553 = arith.constant 3 : index
    %c3_554 = arith.constant 3 : index
    %c1_555 = arith.constant 1 : index
    %849 = vector.load %arg4[%c0_552, %c3_553, %c3_554, %c1_555] : memref<1x4x20x20xf32, #tpu.memory_space<vmem>>, vector<1x1x16x16xf32>
    %850 = vector.shape_cast %849 : vector<1x1x16x16xf32> to vector<16x16xf32>
    %c15_i32_556 = arith.constant 15 : i32
    %851 = arith.addi %701, %c15_i32_556 : i32
    %c1_i32_557 = arith.constant 1 : i32
    %852 = arith.addi %851, %c1_i32_557 : i32
    %853 = arith.index_cast %852 : i32 to index
    %854 = memref.load %arg2[%853] : memref<100xf32, #tpu.memory_space<smem>>
    %855 = vector.broadcast %854 : f32 to vector<16x16xf32>
    %856 = arith.mulf %850, %855 : vector<16x16xf32>
    %857 = arith.addf %848, %856 : vector<16x16xf32>
    %c0_558 = arith.constant 0 : index
    %c3_559 = arith.constant 3 : index
    %c3_560 = arith.constant 3 : index
    %c2_561 = arith.constant 2 : index
    %858 = vector.load %arg4[%c0_558, %c3_559, %c3_560, %c2_561] : memref<1x4x20x20xf32, #tpu.memory_space<vmem>>, vector<1x1x16x16xf32>
    %859 = vector.shape_cast %858 : vector<1x1x16x16xf32> to vector<16x16xf32>
    %c15_i32_562 = arith.constant 15 : i32
    %860 = arith.addi %701, %c15_i32_562 : i32
    %c2_i32_563 = arith.constant 2 : i32
    %861 = arith.addi %860, %c2_i32_563 : i32
    %862 = arith.index_cast %861 : i32 to index
    %863 = memref.load %arg2[%862] : memref<100xf32, #tpu.memory_space<smem>>
    %864 = vector.broadcast %863 : f32 to vector<16x16xf32>
    %865 = arith.mulf %859, %864 : vector<16x16xf32>
    %866 = arith.addf %857, %865 : vector<16x16xf32>
    %c0_564 = arith.constant 0 : index
    %c3_565 = arith.constant 3 : index
    %c3_566 = arith.constant 3 : index
    %c3_567 = arith.constant 3 : index
    %867 = vector.load %arg4[%c0_564, %c3_565, %c3_566, %c3_567] : memref<1x4x20x20xf32, #tpu.memory_space<vmem>>, vector<1x1x16x16xf32>
    %868 = vector.shape_cast %867 : vector<1x1x16x16xf32> to vector<16x16xf32>
    %c15_i32_568 = arith.constant 15 : i32
    %869 = arith.addi %701, %c15_i32_568 : i32
    %c3_i32_569 = arith.constant 3 : i32
    %870 = arith.addi %869, %c3_i32_569 : i32
    %871 = arith.index_cast %870 : i32 to index
    %872 = memref.load %arg2[%871] : memref<100xf32, #tpu.memory_space<smem>>
    %873 = vector.broadcast %872 : f32 to vector<16x16xf32>
    %874 = arith.mulf %868, %873 : vector<16x16xf32>
    %875 = arith.addf %866, %874 : vector<16x16xf32>
    %c0_570 = arith.constant 0 : index
    %c3_571 = arith.constant 3 : index
    %c3_572 = arith.constant 3 : index
    %c4_573 = arith.constant 4 : index
    %876 = vector.load %arg4[%c0_570, %c3_571, %c3_572, %c4_573] : memref<1x4x20x20xf32, #tpu.memory_space<vmem>>, vector<1x1x16x16xf32>
    %877 = vector.shape_cast %876 : vector<1x1x16x16xf32> to vector<16x16xf32>
    %c15_i32_574 = arith.constant 15 : i32
    %878 = arith.addi %701, %c15_i32_574 : i32
    %c4_i32_575 = arith.constant 4 : i32
    %879 = arith.addi %878, %c4_i32_575 : i32
    %880 = arith.index_cast %879 : i32 to index
    %881 = memref.load %arg2[%880] : memref<100xf32, #tpu.memory_space<smem>>
    %882 = vector.broadcast %881 : f32 to vector<16x16xf32>
    %883 = arith.mulf %877, %882 : vector<16x16xf32>
    %884 = arith.addf %875, %883 : vector<16x16xf32>
    %c0_576 = arith.constant 0 : index
    %c3_577 = arith.constant 3 : index
    %c4_578 = arith.constant 4 : index
    %c0_579 = arith.constant 0 : index
    %885 = vector.load %arg4[%c0_576, %c3_577, %c4_578, %c0_579] : memref<1x4x20x20xf32, #tpu.memory_space<vmem>>, vector<1x1x16x16xf32>
    %886 = vector.shape_cast %885 : vector<1x1x16x16xf32> to vector<16x16xf32>
    %c20_i32_580 = arith.constant 20 : i32
    %887 = arith.addi %701, %c20_i32_580 : i32
    %c0_i32_581 = arith.constant 0 : i32
    %888 = arith.addi %887, %c0_i32_581 : i32
    %889 = arith.index_cast %888 : i32 to index
    %890 = memref.load %arg2[%889] : memref<100xf32, #tpu.memory_space<smem>>
    %891 = vector.broadcast %890 : f32 to vector<16x16xf32>
    %892 = arith.mulf %886, %891 : vector<16x16xf32>
    %893 = arith.addf %884, %892 : vector<16x16xf32>
    %c0_582 = arith.constant 0 : index
    %c3_583 = arith.constant 3 : index
    %c4_584 = arith.constant 4 : index
    %c1_585 = arith.constant 1 : index
    %894 = vector.load %arg4[%c0_582, %c3_583, %c4_584, %c1_585] : memref<1x4x20x20xf32, #tpu.memory_space<vmem>>, vector<1x1x16x16xf32>
    %895 = vector.shape_cast %894 : vector<1x1x16x16xf32> to vector<16x16xf32>
    %c20_i32_586 = arith.constant 20 : i32
    %896 = arith.addi %701, %c20_i32_586 : i32
    %c1_i32_587 = arith.constant 1 : i32
    %897 = arith.addi %896, %c1_i32_587 : i32
    %898 = arith.index_cast %897 : i32 to index
    %899 = memref.load %arg2[%898] : memref<100xf32, #tpu.memory_space<smem>>
    %900 = vector.broadcast %899 : f32 to vector<16x16xf32>
    %901 = arith.mulf %895, %900 : vector<16x16xf32>
    %902 = arith.addf %893, %901 : vector<16x16xf32>
    %c0_588 = arith.constant 0 : index
    %c3_589 = arith.constant 3 : index
    %c4_590 = arith.constant 4 : index
    %c2_591 = arith.constant 2 : index
    %903 = vector.load %arg4[%c0_588, %c3_589, %c4_590, %c2_591] : memref<1x4x20x20xf32, #tpu.memory_space<vmem>>, vector<1x1x16x16xf32>
    %904 = vector.shape_cast %903 : vector<1x1x16x16xf32> to vector<16x16xf32>
    %c20_i32_592 = arith.constant 20 : i32
    %905 = arith.addi %701, %c20_i32_592 : i32
    %c2_i32_593 = arith.constant 2 : i32
    %906 = arith.addi %905, %c2_i32_593 : i32
    %907 = arith.index_cast %906 : i32 to index
    %908 = memref.load %arg2[%907] : memref<100xf32, #tpu.memory_space<smem>>
    %909 = vector.broadcast %908 : f32 to vector<16x16xf32>
    %910 = arith.mulf %904, %909 : vector<16x16xf32>
    %911 = arith.addf %902, %910 : vector<16x16xf32>
    %c0_594 = arith.constant 0 : index
    %c3_595 = arith.constant 3 : index
    %c4_596 = arith.constant 4 : index
    %c3_597 = arith.constant 3 : index
    %912 = vector.load %arg4[%c0_594, %c3_595, %c4_596, %c3_597] : memref<1x4x20x20xf32, #tpu.memory_space<vmem>>, vector<1x1x16x16xf32>
    %913 = vector.shape_cast %912 : vector<1x1x16x16xf32> to vector<16x16xf32>
    %c20_i32_598 = arith.constant 20 : i32
    %914 = arith.addi %701, %c20_i32_598 : i32
    %c3_i32_599 = arith.constant 3 : i32
    %915 = arith.addi %914, %c3_i32_599 : i32
    %916 = arith.index_cast %915 : i32 to index
    %917 = memref.load %arg2[%916] : memref<100xf32, #tpu.memory_space<smem>>
    %918 = vector.broadcast %917 : f32 to vector<16x16xf32>
    %919 = arith.mulf %913, %918 : vector<16x16xf32>
    %920 = arith.addf %911, %919 : vector<16x16xf32>
    %c0_600 = arith.constant 0 : index
    %c3_601 = arith.constant 3 : index
    %c4_602 = arith.constant 4 : index
    %c4_603 = arith.constant 4 : index
    %921 = vector.load %arg4[%c0_600, %c3_601, %c4_602, %c4_603] : memref<1x4x20x20xf32, #tpu.memory_space<vmem>>, vector<1x1x16x16xf32>
    %922 = vector.shape_cast %921 : vector<1x1x16x16xf32> to vector<16x16xf32>
    %c20_i32_604 = arith.constant 20 : i32
    %923 = arith.addi %701, %c20_i32_604 : i32
    %c4_i32_605 = arith.constant 4 : i32
    %924 = arith.addi %923, %c4_i32_605 : i32
    %925 = arith.index_cast %924 : i32 to index
    %926 = memref.load %arg2[%925] : memref<100xf32, #tpu.memory_space<smem>>
    %927 = vector.broadcast %926 : f32 to vector<16x16xf32>
    %928 = arith.mulf %922, %927 : vector<16x16xf32>
    %929 = arith.addf %920, %928 : vector<16x16xf32>
    %c0_606 = arith.constant 0 : index
    %c3_607 = arith.constant 3 : index
    %c0_608 = arith.constant 0 : index
    %c0_609 = arith.constant 0 : index
    %930 = vector.load %arg5[%c0_606, %c3_607, %c0_608, %c0_609] : memref<1x4x16x16xf32, #tpu.memory_space<vmem>>, vector<1x1x16x16xf32>
    %931 = vector.shape_cast %930 : vector<1x1x16x16xf32> to vector<16x16xf32>
    %932 = vector.shape_cast %929 : vector<16x16xf32> to vector<1x1x16x16xf32>
    tpu.vector_store %arg5[%c0_606, %c3_607, %c0_608, %c0_609], %932 {strides = array<i32>} : memref<1x4x16x16xf32, #tpu.memory_space<vmem>>, vector<1x1x16x16xf32>,
    return
  }
  func.func @transform_0(%arg0: i32, %arg1: i32) -> i32 {
    %c0_i32 = arith.constant 0 : i32
    %c0_i32_0 = arith.constant 0 : i32
    return %c0_i32 : i32
  }
  func.func @transform_1(%arg0: i32, %arg1: i32) -> i32 {
    %c0_i32 = arith.constant 0 : i32
    %c0_i32_0 = arith.constant 0 : i32
    return %c0_i32 : i32
  }
  func.func @transform_2(%arg0: i32, %arg1: i32) -> (i32, i32, i32, i32) {
    %c0_i32 = arith.constant 0 : i32
    %c0_i32_0 = arith.constant 0 : i32
    %c0_i32_1 = arith.constant 0 : i32
    return %arg0, %arg1, %c0_i32, %c0_i32_0 : i32, i32, i32, i32
  }
  func.func @transform_3(%arg0: i32, %arg1: i32) -> (i32, i32, i32, i32) {
    %c0_i32 = arith.constant 0 : i32
    %c0_i32_0 = arith.constant 0 : i32
    %c0_i32_1 = arith.constant 0 : i32
    return %arg0, %arg1, %c0_i32, %c0_i32_0 : i32, i32, i32, i32
  }
}

</mosaic_0001>

<llo_original>
// kernel: tpu_custom_call.1
$region0: #{tpu_custom_call.1}
  #allocation0 [shape = 'u32[]', space=smem, size = 0x4, offset = 0x4, fixed_abs, tag = 'smem constant byte address 0x4 - core index']
  #allocation1 [shape = 'u32[144,128]{1,0:T(1,128)}', space=vmem, size = 0x12000, scoped, tag = 'internal scratch']
  %s0 = inlined_call_operand.vmem [shape: f32[100], index: 0, kind: input, shape index: {}]
  %s1 = inlined_call_operand.vmem [shape: f32[4], index: 1, kind: input, shape index: {}]
  %s2 = inlined_call_operand.vmem [shape: f32[2,4,20,20], index: 2, kind: input, shape index: {}]
  %s3 = inlined_call_operand.hbm [shape: f32[2,4,16,16], index: 3, kind: output, shape index: {}]
  %s4 = sld [smem:[#allocation0]]
  $region53: #{tpu_custom_call.1} parent=0
    _
  %s6 = ssub.s32 1, %s4
  %s7 = scalar_select 0, %s6, %s4
  $region1: #{tpu_custom_call.1} parent=0
    #allocation2 [shape = 'u8[512]{0}', space=smem, size = 0x200, scoped, tag = 'input window, operand 0, single buffered']
    #allocation3 [shape = 's32[2]{0}', space=sflag, size = 0x8, scoped, tag = 'scoped memory for tpu_custom_call.1']
    #allocation4 [shape = 's32[2]{0}', space=sflag, size = 0x8, scoped, tag = 'scoped memory for tpu_custom_call.1']
    #allocation5 [shape = 'u8[512]{0}', space=smem, size = 0x200, scoped, tag = 'input window, operand 1, single buffered']
    #allocation6 [shape = 's32[1]{0}', space=sflag, size = 0x4, scoped, tag = 'scoped memory for tpu_custom_call.1']
    #allocation7 [shape = 'u8[65536]{0}', space=vmem, size = 0x10000, scoped, tag = 'output window, operand 0']
    %8 = vsyncpa [#allocation4], 0
    %9 = vsyncpa [#allocation6], 0
    %10 = vsyncpa [#allocation3], 0
    %s11 = scalar_lea.sflag [#allocation3], 1
    %12 = vsyncpa %s11, 0
    loop: start=0, step=1, limit=4
    $region2: #{tpu_custom_call.1} parent=1 // loop_pre_header
      _
    $region3: #{tpu_custom_call.1} parent=1 // loop_header
      %s14 = sphi 0, %s18
      %p15 = scmp.ge.s32.totalorder %s14, 4
      %s21 = sphi 0, %s33
      %s22 = sphi 0, %s29
      %s23 = sphi 0, %s21
      %s24 = sphi 0, %s22
      %s25 = sphi 0, %s23
      %s26 = sphi 0, %s24
      %s34 = sphi 0, %s34
      %s36 = sphi 0, %s34
      %s37 = sphi 0, %s36
      %s51 = sphi 0, %s37
      %s55 = sphi 0, %s55
      %s57 = sphi 0, %s55
      %s58 = sphi 0, %s57
      %s72 = sphi 0, %s58
      %s80 = sphi 0, %s82
      %s83 = sphi 0, %s80
      %s84 = sphi 0, %s83
      %s100 = sphi 0, %s84
      %s108 = sphi 0, %s110
      %s111 = sphi 0, %s108
      %s112 = sphi 0, %s111
      %s128 = sphi 0, %s112
    $region4: #{tpu_custom_call.1} parent=1 // loop_header_branch
      %17 = sbr.rel (%p15) target = $region8
    $region5: #{tpu_custom_call.1} parent=1 // loop_body
      %s19 = ssub.s32 %s14, 1
      %s20 = ssub.s32 %s14, 2
      %s27 = sadd.s32 1, %s22
      %p28 = scmp.ge.s32.totalorder %s27, 1
      %s29 = scalar_select %p28, 0, %s27
      %s30 = sadd.s32 1, %s21
      %s31 = scalar_select %p28, %s30, %s21
      %p32 = scmp.ge.s32.totalorder %s31, 2
      %s33 = scalar_select %p32, 0, %s31
      %s35 = sadd.s32 %s34, 1
      %p38 = scmp.eq.s32.totalorder %s14, 1
      %p39 = scmp.ne.s32.totalorder %s34, %s36
      %p40 = scmp.eq.s32.totalorder %s14, 0
      %p41 = por %p39, %p40
      %p42 = scmp.ne.s32.totalorder %s34, %s36
      %p43 = scmp.eq.s32.totalorder %s19, 1
      %p44 = por %p42, %p43
      %p45 = scmp.ne.s32.totalorder %s36, %s37
      %p46 = scmp.eq.s32.totalorder %s19, 0
      %p47 = por %p45, %p46
      %p48 = scmp.ne.s32.totalorder %s36, %s37
      %p49 = scmp.eq.s32.totalorder %s20, 1
      %p50 = por %p48, %p49
      %p52 = scmp.ne.s32.totalorder %s37, %s51
      %p53 = scmp.eq.s32.totalorder %s20, 0
      %p54 = por %p52, %p53
      %s56 = sadd.s32 %s55, 1
      %p59 = scmp.eq.s32.totalorder %s14, 1
      %p60 = scmp.ne.s32.totalorder %s55, %s57
      %p61 = scmp.eq.s32.totalorder %s14, 0
      %p62 = por %p60, %p61
      %p63 = scmp.ne.s32.totalorder %s55, %s57
      %p64 = scmp.eq.s32.totalorder %s19, 1
      %p65 = por %p63, %p64
      %p66 = scmp.ne.s32.totalorder %s57, %s58
      %p67 = scmp.eq.s32.totalorder %s19, 0
      %p68 = por %p66, %p67
      %p69 = scmp.ne.s32.totalorder %s57, %s58
      %p70 = scmp.eq.s32.totalorder %s20, 1
      %p71 = por %p69, %p70
      %p73 = scmp.ne.s32.totalorder %s58, %s72
      %p74 = scmp.eq.s32.totalorder %s20, 0
      %p75 = por %p73, %p74
      %s76 = ssub.s32 %s21, %s33
      %s77 = ssub.s32 %s22, %s29
      %s78 = sor.u32 %s76, %s77
      %p79 = scmp.eq.s32.totalorder %s78, 0
      %s81 = sadd.s32 %s80, 1
      %s82 = scalar_select %p79, %s80, %s81
      %p85 = pneg %p79
      %p86 = scmp.eq.s32.totalorder %s14, 1
      %p87 = por %p85, %p86
      %p88 = scmp.ne.s32.totalorder %s80, %s83
      %p89 = scmp.eq.s32.totalorder %s14, 0
      %p90 = por %p88, %p89
      %p91 = scmp.ne.s32.totalorder %s80, %s83
      %p92 = scmp.eq.s32.totalorder %s19, 1
      %p93 = por %p91, %p92
      %p94 = scmp.ne.s32.totalorder %s83, %s84
      %p95 = scmp.eq.s32.totalorder %s19, 0
      %p96 = por %p94, %p95
      %p97 = scmp.ne.s32.totalorder %s83, %s84
      %p98 = scmp.eq.s32.totalorder %s20, 1
      %p99 = por %p97, %p98
      %p101 = scmp.ne.s32.totalorder %s84, %s100
      %p102 = scmp.eq.s32.totalorder %s20, 0
      %p103 = por %p101, %p102
      %s104 = ssub.s32 %s21, %s33
      %s105 = ssub.s32 %s22, %s29
      %s106 = sor.u32 %s104, %s105
      %p107 = scmp.eq.s32.totalorder %s106, 0
      %s109 = sadd.s32 %s108, 1
      %s110 = scalar_select %p107, %s108, %s109
      %p113 = pneg %p107
      %p114 = scmp.eq.s32.totalorder %s14, 1
      %p115 = por %p113, %p114
      %p116 = scmp.ne.s32.totalorder %s108, %s111
      %p117 = scmp.eq.s32.totalorder %s14, 0
      %p118 = por %p116, %p117
      %p119 = scmp.ne.s32.totalorder %s108, %s111
      %p120 = scmp.eq.s32.totalorder %s19, 1
      %p121 = por %p119, %p120
      %p122 = scmp.ne.s32.totalorder %s111, %s112
      %p123 = scmp.eq.s32.totalorder %s19, 0
      %p124 = por %p122, %p123
      %p125 = scmp.ne.s32.totalorder %s111, %s112
      %p126 = scmp.eq.s32.totalorder %s20, 1
      %p127 = por %p125, %p126
      %p129 = scmp.ne.s32.totalorder %s112, %s128
      %p130 = scmp.eq.s32.totalorder %s20, 0
      %p131 = por %p129, %p130
      %p132 = scmp.le.s32.totalorder 1, %s14
      %p133 = scmp.lt.s32.totalorder %s14, 3
      %p134 = pnand %p132, %p133
      %p135 = pneg %p134
      // Predicated region
      $region9: #{tpu_custom_call.1} parent=5 // pred_check
        _
      $region10: #{tpu_custom_call.1} parent=5 // pred_check_branch
        %137 = sbr.rel (%p134) target = $region12
      $region11: #{tpu_custom_call.1} parent=5 // pred_region
        %s138 = ssub.s32 %s14, 1
        // Predicated region
        $region13: #{tpu_custom_call.1} parent=11 // pred_check
          %p139 = pneg %p47
        $region14: #{tpu_custom_call.1} parent=11 // pred_check_branch
          %141 = sbr.rel (%p139) target = $region16
        $region15: #{tpu_custom_call.1} parent=11 // pred_region
          %s143 = ssub.s32 16, 16
          %144 = vsyncadd [#allocation4], %s143
          %s146 = sshll.u32 %s0, 4
          %s147 = int_to_ptr.vmem [resolvable:$true] %s146
          %149 = dma.vmem_to_smem %s147, 16, [#allocation2], [#allocation4]
        $region16: #{tpu_custom_call.1} parent=11 // pred_fallthru
          _
        // Predicated region
        $region17: #{tpu_custom_call.1} parent=11 // pred_check
          %p150 = pneg %p68
        $region18: #{tpu_custom_call.1} parent=11 // pred_check_branch
          %152 = sbr.rel (%p150) target = $region20
        $region19: #{tpu_custom_call.1} parent=11 // pred_region
          %s154 = ssub.s32 16, 16
          %155 = vsyncadd [#allocation6], %s154
          %s157 = sshll.u32 %s1, 4
          %s158 = int_to_ptr.vmem [resolvable:$true] %s157
          %160 = dma.vmem_to_smem %s158, 16, [#allocation5], [#allocation6]
        $region20: #{tpu_custom_call.1} parent=11 // pred_fallthru
          _
      $region12: #{tpu_custom_call.1} parent=5 // pred_fallthru
        _
      %p161 = scmp.lt.s32.totalorder %s14, 2
      // Predicated region
      $region21: #{tpu_custom_call.1} parent=5 // pred_check
        %p162 = pneg %p161
      $region22: #{tpu_custom_call.1} parent=5 // pred_check_branch
        %164 = sbr.rel (%p162) target = $region24
      $region23: #{tpu_custom_call.1} parent=5 // pred_region
        // Predicated region
        $region25: #{tpu_custom_call.1} parent=23 // pred_check
          %p165 = pneg %p90
        $region26: #{tpu_custom_call.1} parent=23 // pred_check_branch
          %167 = sbr.rel (%p165) target = $region28
        $region27: #{tpu_custom_call.1} parent=23 // pred_region
          %s168 = smul.u32 4, %s22
          %p169 = scmp.lt.s32.totalorder %s21, 1
          %s170 = scalar_select %p169, %s21, 1
          %p171 = scmp.lt.s32.totalorder %s168, 3
          %s172 = scalar_select %p171, %s168, 3
          %s173 = smul.addr %s172, 3
          %s174 = smul.addr %s170, 12
          %s175 = sadd.s32 %s173, %s174
          %s176 = smul.addr %s175, 8
          %s177 = scalar_lea.vmem %s2, %s176
          %s178 = smul.u32 4, %s22
        $region28: #{tpu_custom_call.1} parent=23 // pred_fallthru
          _
      $region24: #{tpu_custom_call.1} parent=5 // pred_fallthru
        _
      %p179 = scmp.le.s32.totalorder 1, %s14
      %p180 = scmp.lt.s32.totalorder %s14, 3
      %p181 = pnand %p179, %p180
      %p182 = pneg %p181
      // Predicated region
      $region29: #{tpu_custom_call.1} parent=5 // pred_check
        _
      $region30: #{tpu_custom_call.1} parent=5 // pred_check_branch
        %184 = sbr.rel (%p181) target = $region32
      $region31: #{tpu_custom_call.1} parent=5 // pred_region
        %s185 = ssub.s32 %s14, 1
        // Predicated region
        $region33: #{tpu_custom_call.1} parent=31 // pred_check
          %p186 = pneg %p47
        $region34: #{tpu_custom_call.1} parent=31 // pred_check_branch
          %188 = sbr.rel (%p186) target = $region36
        $region35: #{tpu_custom_call.1} parent=31 // pred_region
          %189 = dma.done [#allocation4], 16
        $region36: #{tpu_custom_call.1} parent=31 // pred_fallthru
          _
        // Predicated region
        $region37: #{tpu_custom_call.1} parent=31 // pred_check
          %p190 = pneg %p68
        $region38: #{tpu_custom_call.1} parent=31 // pred_check_branch
          %192 = sbr.rel (%p190) target = $region40
        $region39: #{tpu_custom_call.1} parent=31 // pred_region
          %193 = dma.done [#allocation6], 16
        $region40: #{tpu_custom_call.1} parent=31 // pred_fallthru
          _
        %194 = sfence
        %p195 = pneg %p47
        %p196 = pneg %p44
        %p197 = pneg %p68
        %p198 = pneg %p65
        %s199 = smul.u32 4, %s24
        %p200 = scmp.lt.s32.totalorder %s23, 1
        %s201 = scalar_select %p200, %s23, 1
        %p202 = scmp.lt.s32.totalorder %s199, 3
        %s203 = scalar_select %p202, %s199, 3
        %s204 = smul.addr %s203, 3
        %s205 = smul.addr %s201, 12
        %s206 = sadd.s32 %s204, %s205
        %s207 = smul.addr %s206, 8
        %s208 = scalar_lea.vmem %s2, %s207
        %p209 = pneg %p96
        %p210 = pneg %p93
        %p211 = pneg %p124
        %p212 = pneg %p121
        %s213 = sand.u32 %s111, 1
        %s214 = scalar_lea.sflag [#allocation3], %s213
        %s215 = sand.u32 %s111, 1
        %s216 = smul.addr %s215, 64
        %s217 = scalar_lea.vmem [#allocation7], %s216
        %s218 = smul.u32 4, %s24
        %p219 = scmp.lt.s32.totalorder %s23, 1
        %s220 = scalar_select %p219, %s23, 1
        %p221 = scmp.lt.s32.totalorder %s218, 3
        %s222 = scalar_select %p221, %s218, 3
        %s223 = smul.addr %s222, 3
        %s224 = smul.addr %s220, 12
        %s225 = sadd.s32 %s223, %s224
        %s226 = smul.addr %s225, 8
        %s227 = scalar_lea.vmem %s2, %s226
        %s228 = smul.u32 4, %s24
        %s229 = smul.u32 4, %s24
        %s230 = smul.u32 %s24, 4
        %s231 = smul.u32 %s24, 100
        %s232 = sld [smem:[#allocation5 + %s230]]
        %v233 = vstv %s232
        %v234 = vld [vmem:[%s227] sm:$0xff]
        %v235 = vld [vmem:[%s227 + $0x8] sm:$0xff]
        %s236 = sld [smem:[#allocation2 + %s231]]
        %v237 = vstv %s236
        %v238 = vmul.f32 %v234, %v237
        %v239 = vmul.f32 %v235, %v237
        %v240 = vadd.f32 %v233, %v238
        %v241 = vadd.f32 %v233, %v239
        %s242 = sadd.s32 %s231, 1
        %s243 = sld [smem:[#allocation2 + %s242]]
        %v244 = vstv %s243
        %v245 = vmul.f32 %v234, %v244
        %v246 = vmul.f32 %v235, %v244
        %249 = vrot.lane.b32.xlu0 %v245, 127
        %v250 = vpop.permute.xlu0 %249
        %251 = vrot.lane.b32.xlu0 %v246, 127
        %v252 = vpop.permute.xlu0 %251
        %v255 = vadd.f32 %v240, %v250
        %v256 = vadd.f32 %v241, %v252
        %s257 = sadd.s32 %s231, 2
        %s258 = sld [smem:[#allocation2 + %s257]]
        %v259 = vstv %s258
        %v260 = vmul.f32 %v234, %v259
        %v261 = vmul.f32 %v235, %v259
        %264 = vrot.lane.b32.xlu0 %v260, 126
        %v265 = vpop.permute.xlu0 %264
        %266 = vrot.lane.b32.xlu0 %v261, 126
        %v267 = vpop.permute.xlu0 %266
        %v270 = vadd.f32 %v255, %v265
        %v271 = vadd.f32 %v256, %v267
        %s272 = sadd.s32 %s231, 3
        %s273 = sld [smem:[#allocation2 + %s272]]
        %v274 = vstv %s273
        %v275 = vmul.f32 %v234, %v274
        %v276 = vmul.f32 %v235, %v274
        %279 = vrot.lane.b32.xlu0 %v275, 125
        %v280 = vpop.permute.xlu0 %279
        %281 = vrot.lane.b32.xlu0 %v276, 125
        %v282 = vpop.permute.xlu0 %281
        %v285 = vadd.f32 %v270, %v280
        %v286 = vadd.f32 %v271, %v282
        %s287 = sadd.s32 %s231, 4
        %s288 = sld [smem:[#allocation2 + %s287]]
        %v289 = vstv %s288
        %v290 = vmul.f32 %v234, %v289
        %v291 = vmul.f32 %v235, %v289
        %294 = vrot.lane.b32.xlu0 %v290, 124
        %v295 = vpop.permute.xlu0 %294
        %296 = vrot.lane.b32.xlu0 %v291, 124
        %v297 = vpop.permute.xlu0 %296
        %v300 = vadd.f32 %v285, %v295
        %v301 = vadd.f32 %v286, %v297
        %v302 = vld [vmem:[%s227 + $0x1] sm:$0xff]
        %v303 = vld [vmem:[%s227 + $0x9] sm:$0xff]
        %s304 = sadd.s32 %s231, 5
        %s305 = sld [smem:[#allocation2 + %s304]]
        %v306 = vstv %s305
        %v307 = vmul.f32 %v302, %v306
        %v308 = vmul.f32 %v303, %v306
        %v309 = vadd.f32 %v300, %v307
        %v310 = vadd.f32 %v301, %v308
        %s311 = sadd.s32 %s231, 6
        %s312 = sld [smem:[#allocation2 + %s311]]
        %v313 = vstv %s312
        %v314 = vmul.f32 %v302, %v313
        %v315 = vmul.f32 %v303, %v313
        %318 = vrot.lane.b32.xlu0 %v314, 127
        %v319 = vpop.permute.xlu0 %318
        %320 = vrot.lane.b32.xlu0 %v315, 127
        %v321 = vpop.permute.xlu0 %320
        %v324 = vadd.f32 %v309, %v319
        %v325 = vadd.f32 %v310, %v321
        %s326 = sadd.s32 %s231, 7
        %s327 = sld [smem:[#allocation2 + %s326]]
        %v328 = vstv %s327
        %v329 = vmul.f32 %v302, %v328
        %v330 = vmul.f32 %v303, %v328
        %333 = vrot.lane.b32.xlu0 %v329, 126
        %v334 = vpop.permute.xlu0 %333
        %335 = vrot.lane.b32.xlu0 %v330, 126
        %v336 = vpop.permute.xlu0 %335
        %v339 = vadd.f32 %v324, %v334
        %v340 = vadd.f32 %v325, %v336
        %s341 = sadd.s32 %s231, 8
        %s342 = sld [smem:[#allocation2 + %s341]]
        %v343 = vstv %s342
        %v344 = vmul.f32 %v302, %v343
        %v345 = vmul.f32 %v303, %v343
        %348 = vrot.lane.b32.xlu0 %v344, 125
        %v349 = vpop.permute.xlu0 %348
        %350 = vrot.lane.b32.xlu0 %v345, 125
        %v351 = vpop.permute.xlu0 %350
        %v354 = vadd.f32 %v339, %v349
        %v355 = vadd.f32 %v340, %v351
        %s356 = sadd.s32 %s231, 9
        %s357 = sld [smem:[#allocation2 + %s356]]
        %v358 = vstv %s357
        %v359 = vmul.f32 %v302, %v358
        %v360 = vmul.f32 %v303, %v358
        %363 = vrot.lane.b32.xlu0 %v359, 124
        %v364 = vpop.permute.xlu0 %363
        %365 = vrot.lane.b32.xlu0 %v360, 124
        %v366 = vpop.permute.xlu0 %365
        %v369 = vadd.f32 %v354, %v364
        %v370 = vadd.f32 %v355, %v366
        %v371 = vld [vmem:[%s227 + $0x2] sm:$0xff]
        %v372 = vld [vmem:[%s227 + $0xa] sm:$0xff]
        %s373 = sadd.s32 %s231, 10
        %s374 = sld [smem:[#allocation2 + %s373]]
        %v375 = vstv %s374
        %v376 = vmul.f32 %v371, %v375
        %v377 = vmul.f32 %v372, %v375
        %v378 = vadd.f32 %v369, %v376
        %v379 = vadd.f32 %v370, %v377
        %s380 = sadd.s32 %s231, 11
        %s381 = sld [smem:[#allocation2 + %s380]]
        %v382 = vstv %s381
        %v383 = vmul.f32 %v371, %v382
        %v384 = vmul.f32 %v372, %v382
        %387 = vrot.lane.b32.xlu0 %v383, 127
        %v388 = vpop.permute.xlu0 %387
        %389 = vrot.lane.b32.xlu0 %v384, 127
        %v390 = vpop.permute.xlu0 %389
        %v393 = vadd.f32 %v378, %v388
        %v394 = vadd.f32 %v379, %v390
        %s395 = sadd.s32 %s231, 12
        %s396 = sld [smem:[#allocation2 + %s395]]
        %v397 = vstv %s396
        %v398 = vmul.f32 %v371, %v397
        %v399 = vmul.f32 %v372, %v397
        %402 = vrot.lane.b32.xlu0 %v398, 126
        %v403 = vpop.permute.xlu0 %402
        %404 = vrot.lane.b32.xlu0 %v399, 126
        %v405 = vpop.permute.xlu0 %404
        %v408 = vadd.f32 %v393, %v403
        %v409 = vadd.f32 %v394, %v405
        %s410 = sadd.s32 %s231, 13
        %s411 = sld [smem:[#allocation2 + %s410]]
        %v412 = vstv %s411
        %v413 = vmul.f32 %v371, %v412
        %v414 = vmul.f32 %v372, %v412
        %417 = vrot.lane.b32.xlu0 %v413, 125
        %v418 = vpop.permute.xlu0 %417
        %419 = vrot.lane.b32.xlu0 %v414, 125
        %v420 = vpop.permute.xlu0 %419
        %v423 = vadd.f32 %v408, %v418
        %v424 = vadd.f32 %v409, %v420
        %s425 = sadd.s32 %s231, 14
        %s426 = sld [smem:[#allocation2 + %s425]]
        %v427 = vstv %s426
        %v428 = vmul.f32 %v371, %v427
        %v429 = vmul.f32 %v372, %v427
        %432 = vrot.lane.b32.xlu0 %v428, 124
        %v433 = vpop.permute.xlu0 %432
        %434 = vrot.lane.b32.xlu0 %v429, 124
        %v435 = vpop.permute.xlu0 %434
        %v438 = vadd.f32 %v423, %v433
        %v439 = vadd.f32 %v424, %v435
        %v440 = vld [vmem:[%s227 + $0x3] sm:$0xff]
        %v441 = vld [vmem:[%s227 + $0xb] sm:$0xff]
        %s442 = sadd.s32 %s231, 15
        %s443 = sld [smem:[#allocation2 + %s442]]
        %v444 = vstv %s443
        %v445 = vmul.f32 %v440, %v444
        %v446 = vmul.f32 %v441, %v444
        %v447 = vadd.f32 %v438, %v445
        %v448 = vadd.f32 %v439, %v446
        %s449 = sadd.s32 %s231, 16
        %s450 = sld [smem:[#allocation2 + %s449]]
        %v451 = vstv %s450
        %v452 = vmul.f32 %v440, %v451
        %v453 = vmul.f32 %v441, %v451
        %456 = vrot.lane.b32.xlu0 %v452, 127
        %v457 = vpop.permute.xlu0 %456
        %458 = vrot.lane.b32.xlu0 %v453, 127
        %v459 = vpop.permute.xlu0 %458
        %v462 = vadd.f32 %v447, %v457
        %v463 = vadd.f32 %v448, %v459
        %s464 = sadd.s32 %s231, 17
        %s465 = sld [smem:[#allocation2 + %s464]]
        %v466 = vstv %s465
        %v467 = vmul.f32 %v440, %v466
        %v468 = vmul.f32 %v441, %v466
        %471 = vrot.lane.b32.xlu0 %v467, 126
        %v472 = vpop.permute.xlu0 %471
        %473 = vrot.lane.b32.xlu0 %v468, 126
        %v474 = vpop.permute.xlu0 %473
        %v477 = vadd.f32 %v462, %v472
        %v478 = vadd.f32 %v463, %v474
        %s479 = sadd.s32 %s231, 18
        %s480 = sld [smem:[#allocation2 + %s479]]
        %v481 = vstv %s480
        %v482 = vmul.f32 %v440, %v481
        %v483 = vmul.f32 %v441, %v481
        %486 = vrot.lane.b32.xlu0 %v482, 125
        %v487 = vpop.permute.xlu0 %486
        %488 = vrot.lane.b32.xlu0 %v483, 125
        %v489 = vpop.permute.xlu0 %488
        %v492 = vadd.f32 %v477, %v487
        %v493 = vadd.f32 %v478, %v489
        %s494 = sadd.s32 %s231, 19
        %s495 = sld [smem:[#allocation2 + %s494]]
        %v496 = vstv %s495
        %v497 = vmul.f32 %v440, %v496
        %v498 = vmul.f32 %v441, %v496
        %501 = vrot.lane.b32.xlu0 %v497, 124
        %v502 = vpop.permute.xlu0 %501
        %503 = vrot.lane.b32.xlu0 %v498, 124
        %v504 = vpop.permute.xlu0 %503
        %v507 = vadd.f32 %v492, %v502
        %v508 = vadd.f32 %v493, %v504
        %v509 = vld [vmem:[%s227 + $0x4] sm:$0xff]
        %v510 = vld [vmem:[%s227 + $0xc] sm:$0xff]
        %s511 = sadd.s32 %s231, 20
        %s512 = sld [smem:[#allocation2 + %s511]]
        %v513 = vstv %s512
        %v514 = vmul.f32 %v509, %v513
        %v515 = vmul.f32 %v510, %v513
        %v516 = vadd.f32 %v507, %v514
        %v517 = vadd.f32 %v508, %v515
        %s518 = sadd.s32 %s231, 21
        %s519 = sld [smem:[#allocation2 + %s518]]
        %v520 = vstv %s519
        %v521 = vmul.f32 %v509, %v520
        %v522 = vmul.f32 %v510, %v520
        %525 = vrot.lane.b32.xlu0 %v521, 127
        %v526 = vpop.permute.xlu0 %525
        %527 = vrot.lane.b32.xlu0 %v522, 127
        %v528 = vpop.permute.xlu0 %527
        %v531 = vadd.f32 %v516, %v526
        %v532 = vadd.f32 %v517, %v528
        %s533 = sadd.s32 %s231, 22
        %s534 = sld [smem:[#allocation2 + %s533]]
        %v535 = vstv %s534
        %v536 = vmul.f32 %v509, %v535
        %v537 = vmul.f32 %v510, %v535
        %540 = vrot.lane.b32.xlu0 %v536, 126
        %v541 = vpop.permute.xlu0 %540
        %542 = vrot.lane.b32.xlu0 %v537, 126
        %v543 = vpop.permute.xlu0 %542
        %v546 = vadd.f32 %v531, %v541
        %v547 = vadd.f32 %v532, %v543
        %s548 = sadd.s32 %s231, 23
        %s549 = sld [smem:[#allocation2 + %s548]]
        %v550 = vstv %s549
        %v551 = vmul.f32 %v509, %v550
        %v552 = vmul.f32 %v510, %v550
        %555 = vrot.lane.b32.xlu0 %v551, 125
        %v556 = vpop.permute.xlu0 %555
        %557 = vrot.lane.b32.xlu0 %v552, 125
        %v558 = vpop.permute.xlu0 %557
        %v561 = vadd.f32 %v546, %v556
        %v562 = vadd.f32 %v547, %v558
        %s563 = sadd.s32 %s231, 24
        %s564 = sld [smem:[#allocation2 + %s563]]
        %v565 = vstv %s564
        %v566 = vmul.f32 %v509, %v565
        %v567 = vmul.f32 %v510, %v565
        %570 = vrot.lane.b32.xlu0 %v566, 124
        %v571 = vpop.permute.xlu0 %570
        %572 = vrot.lane.b32.xlu0 %v567, 124
        %v573 = vpop.permute.xlu0 %572
        %v576 = vadd.f32 %v561, %v571
        %v577 = vadd.f32 %v562, %v573
        %vm578 = vcmask 130048
        %579 = vst.msk [vmem:[%s217] sm:$0xff] %vm578, %v576
        %580 = vst.msk [vmem:[%s217 + $0x8] sm:$0xff] %vm578, %v577
        %s581 = sadd.s32 %s230, 1
        %s582 = smul.u32 %s581, 25
        %s583 = sld [smem:[#allocation5 + %s581]]
        %v584 = vstv %s583
        %s585 = scalar_lea.vmem %s227, 24
        %v586 = vld [vmem:[%s585] sm:$0xff]
        %v587 = vld [vmem:[%s585 + $0x8] sm:$0xff]
        %s588 = sld [smem:[#allocation2 + %s582]]
        %v589 = vstv %s588
        %v590 = vmul.f32 %v586, %v589
        %v591 = vmul.f32 %v587, %v589
        %v592 = vadd.f32 %v584, %v590
        %v593 = vadd.f32 %v584, %v591
        %s594 = sadd.s32 %s582, 1
        %s595 = sld [smem:[#allocation2 + %s594]]
        %v596 = vstv %s595
        %v597 = vmul.f32 %v586, %v596
        %v598 = vmul.f32 %v587, %v596
        %601 = vrot.lane.b32.xlu0 %v597, 127
        %v602 = vpop.permute.xlu0 %601
        %603 = vrot.lane.b32.xlu0 %v598, 127
        %v604 = vpop.permute.xlu0 %603
        %v607 = vadd.f32 %v592, %v602
        %v608 = vadd.f32 %v593, %v604
        %s609 = sadd.s32 %s582, 2
        %s610 = sld [smem:[#allocation2 + %s609]]
        %v611 = vstv %s610
        %v612 = vmul.f32 %v586, %v611
        %v613 = vmul.f32 %v587, %v611
        %616 = vrot.lane.b32.xlu0 %v612, 126
        %v617 = vpop.permute.xlu0 %616
        %618 = vrot.lane.b32.xlu0 %v613, 126
        %v619 = vpop.permute.xlu0 %618
        %v622 = vadd.f32 %v607, %v617
        %v623 = vadd.f32 %v608, %v619
        %s624 = sadd.s32 %s582, 3
        %s625 = sld [smem:[#allocation2 + %s624]]
        %v626 = vstv %s625
        %v627 = vmul.f32 %v586, %v626
        %v628 = vmul.f32 %v587, %v626
        %631 = vrot.lane.b32.xlu0 %v627, 125
        %v632 = vpop.permute.xlu0 %631
        %633 = vrot.lane.b32.xlu0 %v628, 125
        %v634 = vpop.permute.xlu0 %633
        %v637 = vadd.f32 %v622, %v632
        %v638 = vadd.f32 %v623, %v634
        %s639 = sadd.s32 %s582, 4
        %s640 = sld [smem:[#allocation2 + %s639]]
        %v641 = vstv %s640
        %v642 = vmul.f32 %v586, %v641
        %v643 = vmul.f32 %v587, %v641
        %646 = vrot.lane.b32.xlu0 %v642, 124
        %v647 = vpop.permute.xlu0 %646
        %648 = vrot.lane.b32.xlu0 %v643, 124
        %v649 = vpop.permute.xlu0 %648
        %v652 = vadd.f32 %v637, %v647
        %v653 = vadd.f32 %v638, %v649
        %v654 = vld [vmem:[%s585 + $0x1] sm:$0xff]
        %v655 = vld [vmem:[%s585 + $0x9] sm:$0xff]
        %s656 = sadd.s32 %s582, 5
        %s657 = sld [smem:[#allocation2 + %s656]]
        %v658 = vstv %s657
        %v659 = vmul.f32 %v654, %v658
        %v660 = vmul.f32 %v655, %v658
        %v661 = vadd.f32 %v652, %v659
        %v662 = vadd.f32 %v653, %v660
        %s663 = sadd.s32 %s582, 6
        %s664 = sld [smem:[#allocation2 + %s663]]
        %v665 = vstv %s664
        %v666 = vmul.f32 %v654, %v665
        %v667 = vmul.f32 %v655, %v665
        %670 = vrot.lane.b32.xlu0 %v666, 127
        %v671 = vpop.permute.xlu0 %670
        %672 = vrot.lane.b32.xlu0 %v667, 127
        %v673 = vpop.permute.xlu0 %672
        %v676 = vadd.f32 %v661, %v671
        %v677 = vadd.f32 %v662, %v673
        %s678 = sadd.s32 %s582, 7
        %s679 = sld [smem:[#allocation2 + %s678]]
        %v680 = vstv %s679
        %v681 = vmul.f32 %v654, %v680
        %v682 = vmul.f32 %v655, %v680
        %685 = vrot.lane.b32.xlu0 %v681, 126
        %v686 = vpop.permute.xlu0 %685
        %687 = vrot.lane.b32.xlu0 %v682, 126
        %v688 = vpop.permute.xlu0 %687
        %v691 = vadd.f32 %v676, %v686
        %v692 = vadd.f32 %v677, %v688
        %s693 = sadd.s32 %s582, 8
        %s694 = sld [smem:[#allocation2 + %s693]]
        %v695 = vstv %s694
        %v696 = vmul.f32 %v654, %v695
        %v697 = vmul.f32 %v655, %v695
        %700 = vrot.lane.b32.xlu0 %v696, 125
        %v701 = vpop.permute.xlu0 %700
        %702 = vrot.lane.b32.xlu0 %v697, 125
        %v703 = vpop.permute.xlu0 %702
        %v706 = vadd.f32 %v691, %v701
        %v707 = vadd.f32 %v692, %v703
        %s708 = sadd.s32 %s582, 9
        %s709 = sld [smem:[#allocation2 + %s708]]
        %v710 = vstv %s709
        %v711 = vmul.f32 %v654, %v710
        %v712 = vmul.f32 %v655, %v710
        %715 = vrot.lane.b32.xlu0 %v711, 124
        %v716 = vpop.permute.xlu0 %715
        %717 = vrot.lane.b32.xlu0 %v712, 124
        %v718 = vpop.permute.xlu0 %717
        %v721 = vadd.f32 %v706, %v716
        %v722 = vadd.f32 %v707, %v718
        %v723 = vld [vmem:[%s585 + $0x2] sm:$0xff]
        %v724 = vld [vmem:[%s585 + $0xa] sm:$0xff]
        %s725 = sadd.s32 %s582, 10
        %s726 = sld [smem:[#allocation2 + %s725]]
        %v727 = vstv %s726
        %v728 = vmul.f32 %v723, %v727
        %v729 = vmul.f32 %v724, %v727
        %v730 = vadd.f32 %v721, %v728
        %v731 = vadd.f32 %v722, %v729
        %s732 = sadd.s32 %s582, 11
        %s733 = sld [smem:[#allocation2 + %s732]]
        %v734 = vstv %s733
        %v735 = vmul.f32 %v723, %v734
        %v736 = vmul.f32 %v724, %v734
        %739 = vrot.lane.b32.xlu0 %v735, 127
        %v740 = vpop.permute.xlu0 %739
        %741 = vrot.lane.b32.xlu0 %v736, 127
        %v742 = vpop.permute.xlu0 %741
        %v745 = vadd.f32 %v730, %v740
        %v746 = vadd.f32 %v731, %v742
        %s747 = sadd.s32 %s582, 12
        %s748 = sld [smem:[#allocation2 + %s747]]
        %v749 = vstv %s748
        %v750 = vmul.f32 %v723, %v749
        %v751 = vmul.f32 %v724, %v749
        %754 = vrot.lane.b32.xlu0 %v750, 126
        %v755 = vpop.permute.xlu0 %754
        %756 = vrot.lane.b32.xlu0 %v751, 126
        %v757 = vpop.permute.xlu0 %756
        %v760 = vadd.f32 %v745, %v755
        %v761 = vadd.f32 %v746, %v757
        %s762 = sadd.s32 %s582, 13
        %s763 = sld [smem:[#allocation2 + %s762]]
        %v764 = vstv %s763
        %v765 = vmul.f32 %v723, %v764
        %v766 = vmul.f32 %v724, %v764
        %769 = vrot.lane.b32.xlu0 %v765, 125
        %v770 = vpop.permute.xlu0 %769
        %771 = vrot.lane.b32.xlu0 %v766, 125
        %v772 = vpop.permute.xlu0 %771
        %v775 = vadd.f32 %v760, %v770
        %v776 = vadd.f32 %v761, %v772
        %s777 = sadd.s32 %s582, 14
        %s778 = sld [smem:[#allocation2 + %s777]]
        %v779 = vstv %s778
        %v780 = vmul.f32 %v723, %v779
        %v781 = vmul.f32 %v724, %v779
        %784 = vrot.lane.b32.xlu0 %v780, 124
        %v785 = vpop.permute.xlu0 %784
        %786 = vrot.lane.b32.xlu0 %v781, 124
        %v787 = vpop.permute.xlu0 %786
        %v790 = vadd.f32 %v775, %v785
        %v791 = vadd.f32 %v776, %v787
        %v792 = vld [vmem:[%s585 + $0x3] sm:$0xff]
        %v793 = vld [vmem:[%s585 + $0xb] sm:$0xff]
        %s794 = sadd.s32 %s582, 15
        %s795 = sld [smem:[#allocation2 + %s794]]
        %v796 = vstv %s795
        %v797 = vmul.f32 %v792, %v796
        %v798 = vmul.f32 %v793, %v796
        %v799 = vadd.f32 %v790, %v797
        %v800 = vadd.f32 %v791, %v798
        %s801 = sadd.s32 %s582, 16
        %s802 = sld [smem:[#allocation2 + %s801]]
        %v803 = vstv %s802
        %v804 = vmul.f32 %v792, %v803
        %v805 = vmul.f32 %v793, %v803
        %808 = vrot.lane.b32.xlu0 %v804, 127
        %v809 = vpop.permute.xlu0 %808
        %810 = vrot.lane.b32.xlu0 %v805, 127
        %v811 = vpop.permute.xlu0 %810
        %v814 = vadd.f32 %v799, %v809
        %v815 = vadd.f32 %v800, %v811
        %s816 = sadd.s32 %s582, 17
        %s817 = sld [smem:[#allocation2 + %s816]]
        %v818 = vstv %s817
        %v819 = vmul.f32 %v792, %v818
        %v820 = vmul.f32 %v793, %v818
        %823 = vrot.lane.b32.xlu0 %v819, 126
        %v824 = vpop.permute.xlu0 %823
        %825 = vrot.lane.b32.xlu0 %v820, 126
        %v826 = vpop.permute.xlu0 %825
        %v829 = vadd.f32 %v814, %v824
        %v830 = vadd.f32 %v815, %v826
        %s831 = sadd.s32 %s582, 18
        %s832 = sld [smem:[#allocation2 + %s831]]
        %v833 = vstv %s832
        %v834 = vmul.f32 %v792, %v833
        %v835 = vmul.f32 %v793, %v833
        %838 = vrot.lane.b32.xlu0 %v834, 125
        %v839 = vpop.permute.xlu0 %838
        %840 = vrot.lane.b32.xlu0 %v835, 125
        %v841 = vpop.permute.xlu0 %840
        %v844 = vadd.f32 %v829, %v839
        %v845 = vadd.f32 %v830, %v841
        %s846 = sadd.s32 %s582, 19
        %s847 = sld [smem:[#allocation2 + %s846]]
        %v848 = vstv %s847
        %v849 = vmul.f32 %v792, %v848
        %v850 = vmul.f32 %v793, %v848
        %853 = vrot.lane.b32.xlu0 %v849, 124
        %v854 = vpop.permute.xlu0 %853
        %855 = vrot.lane.b32.xlu0 %v850, 124
        %v856 = vpop.permute.xlu0 %855
        %v859 = vadd.f32 %v844, %v854
        %v860 = vadd.f32 %v845, %v856
        %v861 = vld [vmem:[%s585 + $0x4] sm:$0xff]
        %v862 = vld [vmem:[%s585 + $0xc] sm:$0xff]
        %s863 = sadd.s32 %s582, 20
        %s864 = sld [smem:[#allocation2 + %s863]]
        %v865 = vstv %s864
        %v866 = vmul.f32 %v861, %v865
        %v867 = vmul.f32 %v862, %v865
        %v868 = vadd.f32 %v859, %v866
        %v869 = vadd.f32 %v860, %v867
        %s870 = sadd.s32 %s582, 21
        %s871 = sld [smem:[#allocation2 + %s870]]
        %v872 = vstv %s871
        %v873 = vmul.f32 %v861, %v872
        %v874 = vmul.f32 %v862, %v872
        %877 = vrot.lane.b32.xlu0 %v873, 127
        %v878 = vpop.permute.xlu0 %877
        %879 = vrot.lane.b32.xlu0 %v874, 127
        %v880 = vpop.permute.xlu0 %879
        %v883 = vadd.f32 %v868, %v878
        %v884 = vadd.f32 %v869, %v880
        %s885 = sadd.s32 %s582, 22
        %s886 = sld [smem:[#allocation2 + %s885]]
        %v887 = vstv %s886
        %v888 = vmul.f32 %v861, %v887
        %v889 = vmul.f32 %v862, %v887
        %892 = vrot.lane.b32.xlu0 %v888, 126
        %v893 = vpop.permute.xlu0 %892
        %894 = vrot.lane.b32.xlu0 %v889, 126
        %v895 = vpop.permute.xlu0 %894
        %v898 = vadd.f32 %v883, %v893
        %v899 = vadd.f32 %v884, %v895
        %s900 = sadd.s32 %s582, 23
        %s901 = sld [smem:[#allocation2 + %s900]]
        %v902 = vstv %s901
        %v903 = vmul.f32 %v861, %v902
        %v904 = vmul.f32 %v862, %v902
        %907 = vrot.lane.b32.xlu0 %v903, 125
        %v908 = vpop.permute.xlu0 %907
        %909 = vrot.lane.b32.xlu0 %v904, 125
        %v910 = vpop.permute.xlu0 %909
        %v913 = vadd.f32 %v898, %v908
        %v914 = vadd.f32 %v899, %v910
        %s915 = sadd.s32 %s582, 24
        %s916 = sld [smem:[#allocation2 + %s915]]
        %v917 = vstv %s916
        %v918 = vmul.f32 %v861, %v917
        %v919 = vmul.f32 %v862, %v917
        %922 = vrot.lane.b32.xlu0 %v918, 124
        %v923 = vpop.permute.xlu0 %922
        %924 = vrot.lane.b32.xlu0 %v919, 124
        %v925 = vpop.permute.xlu0 %924
        %v928 = vadd.f32 %v913, %v923
        %v929 = vadd.f32 %v914, %v925
        %s930 = scalar_lea.vmem %s217, 16 [#allocation7]
        %931 = vst.msk [vmem:[%s930] sm:$0xff] %vm578, %v928
        %932 = vst.msk [vmem:[%s930 + $0x8] sm:$0xff] %vm578, %v929
        %s933 = sadd.s32 %s230, 2
        %s934 = smul.u32 %s933, 25
        %s935 = sld [smem:[#allocation5 + %s933]]
        %v936 = vstv %s935
        %s937 = scalar_lea.vmem %s227, 48
        %v938 = vld [vmem:[%s937] sm:$0xff]
        %v939 = vld [vmem:[%s937 + $0x8] sm:$0xff]
        %s940 = sld [smem:[#allocation2 + %s934]]
        %v941 = vstv %s940
        %v942 = vmul.f32 %v938, %v941
        %v943 = vmul.f32 %v939, %v941
        %v944 = vadd.f32 %v936, %v942
        %v945 = vadd.f32 %v936, %v943
        %s946 = sadd.s32 %s934, 1
        %s947 = sld [smem:[#allocation2 + %s946]]
        %v948 = vstv %s947
        %v949 = vmul.f32 %v938, %v948
        %v950 = vmul.f32 %v939, %v948
        %953 = vrot.lane.b32.xlu0 %v949, 127
        %v954 = vpop.permute.xlu0 %953
        %955 = vrot.lane.b32.xlu0 %v950, 127
        %v956 = vpop.permute.xlu0 %955
        %v959 = vadd.f32 %v944, %v954
        %v960 = vadd.f32 %v945, %v956
        %s961 = sadd.s32 %s934, 2
        %s962 = sld [smem:[#allocation2 + %s961]]
        %v963 = vstv %s962
        %v964 = vmul.f32 %v938, %v963
        %v965 = vmul.f32 %v939, %v963
        %968 = vrot.lane.b32.xlu0 %v964, 126
        %v969 = vpop.permute.xlu0 %968
        %970 = vrot.lane.b32.xlu0 %v965, 126
        %v971 = vpop.permute.xlu0 %970
        %v974 = vadd.f32 %v959, %v969
        %v975 = vadd.f32 %v960, %v971
        %s976 = sadd.s32 %s934, 3
        %s977 = sld [smem:[#allocation2 + %s976]]
        %v978 = vstv %s977
        %v979 = vmul.f32 %v938, %v978
        %v980 = vmul.f32 %v939, %v978
        %983 = vrot.lane.b32.xlu0 %v979, 125
        %v984 = vpop.permute.xlu0 %983
        %985 = vrot.lane.b32.xlu0 %v980, 125
        %v986 = vpop.permute.xlu0 %985
        %v989 = vadd.f32 %v974, %v984
        %v990 = vadd.f32 %v975, %v986
        %s991 = sadd.s32 %s934, 4
        %s992 = sld [smem:[#allocation2 + %s991]]
        %v993 = vstv %s992
        %v994 = vmul.f32 %v938, %v993
        %v995 = vmul.f32 %v939, %v993
        %998 = vrot.lane.b32.xlu0 %v994, 124
        %v999 = vpop.permute.xlu0 %998
        %1000 = vrot.lane.b32.xlu0 %v995, 124
        %v1001 = vpop.permute.xlu0 %1000
        %v1004 = vadd.f32 %v989, %v999
        %v1005 = vadd.f32 %v990, %v1001
        %v1006 = vld [vmem:[%s937 + $0x1] sm:$0xff]
        %v1007 = vld [vmem:[%s937 + $0x9] sm:$0xff]
        %s1008 = sadd.s32 %s934, 5
        %s1009 = sld [smem:[#allocation2 + %s1008]]
        %v1010 = vstv %s1009
        %v1011 = vmul.f32 %v1006, %v1010
        %v1012 = vmul.f32 %v1007, %v1010
        %v1013 = vadd.f32 %v1004, %v1011
        %v1014 = vadd.f32 %v1005, %v1012
        %s1015 = sadd.s32 %s934, 6
        %s1016 = sld [smem:[#allocation2 + %s1015]]
        %v1017 = vstv %s1016
        %v1018 = vmul.f32 %v1006, %v1017
        %v1019 = vmul.f32 %v1007, %v1017
        %1022 = vrot.lane.b32.xlu0 %v1018, 127
        %v1023 = vpop.permute.xlu0 %1022
        %1024 = vrot.lane.b32.xlu0 %v1019, 127
        %v1025 = vpop.permute.xlu0 %1024
        %v1028 = vadd.f32 %v1013, %v1023
        %v1029 = vadd.f32 %v1014, %v1025
        %s1030 = sadd.s32 %s934, 7
        %s1031 = sld [smem:[#allocation2 + %s1030]]
        %v1032 = vstv %s1031
        %v1033 = vmul.f32 %v1006, %v1032
        %v1034 = vmul.f32 %v1007, %v1032
        %1037 = vrot.lane.b32.xlu0 %v1033, 126
        %v1038 = vpop.permute.xlu0 %1037
        %1039 = vrot.lane.b32.xlu0 %v1034, 126
        %v1040 = vpop.permute.xlu0 %1039
        %v1043 = vadd.f32 %v1028, %v1038
        %v1044 = vadd.f32 %v1029, %v1040
        %s1045 = sadd.s32 %s934, 8
        %s1046 = sld [smem:[#allocation2 + %s1045]]
        %v1047 = vstv %s1046
        %v1048 = vmul.f32 %v1006, %v1047
        %v1049 = vmul.f32 %v1007, %v1047
        %1052 = vrot.lane.b32.xlu0 %v1048, 125
        %v1053 = vpop.permute.xlu0 %1052
        %1054 = vrot.lane.b32.xlu0 %v1049, 125
        %v1055 = vpop.permute.xlu0 %1054
        %v1058 = vadd.f32 %v1043, %v1053
        %v1059 = vadd.f32 %v1044, %v1055
        %s1060 = sadd.s32 %s934, 9
        %s1061 = sld [smem:[#allocation2 + %s1060]]
        %v1062 = vstv %s1061
        %v1063 = vmul.f32 %v1006, %v1062
        %v1064 = vmul.f32 %v1007, %v1062
        %1067 = vrot.lane.b32.xlu0 %v1063, 124
        %v1068 = vpop.permute.xlu0 %1067
        %1069 = vrot.lane.b32.xlu0 %v1064, 124
        %v1070 = vpop.permute.xlu0 %1069
        %v1073 = vadd.f32 %v1058, %v1068
        %v1074 = vadd.f32 %v1059, %v1070
        %v1075 = vld [vmem:[%s937 + $0x2] sm:$0xff]
        %v1076 = vld [vmem:[%s937 + $0xa] sm:$0xff]
        %s1077 = sadd.s32 %s934, 10
        %s1078 = sld [smem:[#allocation2 + %s1077]]
        %v1079 = vstv %s1078
        %v1080 = vmul.f32 %v1075, %v1079
        %v1081 = vmul.f32 %v1076, %v1079
        %v1082 = vadd.f32 %v1073, %v1080
        %v1083 = vadd.f32 %v1074, %v1081
        %s1084 = sadd.s32 %s934, 11
        %s1085 = sld [smem:[#allocation2 + %s1084]]
        %v1086 = vstv %s1085
        %v1087 = vmul.f32 %v1075, %v1086
        %v1088 = vmul.f32 %v1076, %v1086
        %1091 = vrot.lane.b32.xlu0 %v1087, 127
        %v1092 = vpop.permute.xlu0 %1091
        %1093 = vrot.lane.b32.xlu0 %v1088, 127
        %v1094 = vpop.permute.xlu0 %1093
        %v1097 = vadd.f32 %v1082, %v1092
        %v1098 = vadd.f32 %v1083, %v1094
        %s1099 = sadd.s32 %s934, 12
        %s1100 = sld [smem:[#allocation2 + %s1099]]
        %v1101 = vstv %s1100
        %v1102 = vmul.f32 %v1075, %v1101
        %v1103 = vmul.f32 %v1076, %v1101
        %1106 = vrot.lane.b32.xlu0 %v1102, 126
        %v1107 = vpop.permute.xlu0 %1106
        %1108 = vrot.lane.b32.xlu0 %v1103, 126
        %v1109 = vpop.permute.xlu0 %1108
        %v1112 = vadd.f32 %v1097, %v1107
        %v1113 = vadd.f32 %v1098, %v1109
        %s1114 = sadd.s32 %s934, 13
        %s1115 = sld [smem:[#allocation2 + %s1114]]
        %v1116 = vstv %s1115
        %v1117 = vmul.f32 %v1075, %v1116
        %v1118 = vmul.f32 %v1076, %v1116
        %1121 = vrot.lane.b32.xlu0 %v1117, 125
        %v1122 = vpop.permute.xlu0 %1121
        %1123 = vrot.lane.b32.xlu0 %v1118, 125
        %v1124 = vpop.permute.xlu0 %1123
        %v1127 = vadd.f32 %v1112, %v1122
        %v1128 = vadd.f32 %v1113, %v1124
        %s1129 = sadd.s32 %s934, 14
        %s1130 = sld [smem:[#allocation2 + %s1129]]
        %v1131 = vstv %s1130
        %v1132 = vmul.f32 %v1075, %v1131
        %v1133 = vmul.f32 %v1076, %v1131
        %1136 = vrot.lane.b32.xlu0 %v1132, 124
        %v1137 = vpop.permute.xlu0 %1136
        %1138 = vrot.lane.b32.xlu0 %v1133, 124
        %v1139 = vpop.permute.xlu0 %1138
        %v1142 = vadd.f32 %v1127, %v1137
        %v1143 = vadd.f32 %v1128, %v1139
        %v1144 = vld [vmem:[%s937 + $0x3] sm:$0xff]
        %v1145 = vld [vmem:[%s937 + $0xb] sm:$0xff]
        %s1146 = sadd.s32 %s934, 15
        %s1147 = sld [smem:[#allocation2 + %s1146]]
        %v1148 = vstv %s1147
        %v1149 = vmul.f32 %v1144, %v1148
        %v1150 = vmul.f32 %v1145, %v1148
        %v1151 = vadd.f32 %v1142, %v1149
        %v1152 = vadd.f32 %v1143, %v1150
        %s1153 = sadd.s32 %s934, 16
        %s1154 = sld [smem:[#allocation2 + %s1153]]
        %v1155 = vstv %s1154
        %v1156 = vmul.f32 %v1144, %v1155
        %v1157 = vmul.f32 %v1145, %v1155
        %1160 = vrot.lane.b32.xlu0 %v1156, 127
        %v1161 = vpop.permute.xlu0 %1160
        %1162 = vrot.lane.b32.xlu0 %v1157, 127
        %v1163 = vpop.permute.xlu0 %1162
        %v1166 = vadd.f32 %v1151, %v1161
        %v1167 = vadd.f32 %v1152, %v1163
        %s1168 = sadd.s32 %s934, 17
        %s1169 = sld [smem:[#allocation2 + %s1168]]
        %v1170 = vstv %s1169
        %v1171 = vmul.f32 %v1144, %v1170
        %v1172 = vmul.f32 %v1145, %v1170
        %1175 = vrot.lane.b32.xlu0 %v1171, 126
        %v1176 = vpop.permute.xlu0 %1175
        %1177 = vrot.lane.b32.xlu0 %v1172, 126
        %v1178 = vpop.permute.xlu0 %1177
        %v1181 = vadd.f32 %v1166, %v1176
        %v1182 = vadd.f32 %v1167, %v1178
        %s1183 = sadd.s32 %s934, 18
        %s1184 = sld [smem:[#allocation2 + %s1183]]
        %v1185 = vstv %s1184
        %v1186 = vmul.f32 %v1144, %v1185
        %v1187 = vmul.f32 %v1145, %v1185
        %1190 = vrot.lane.b32.xlu0 %v1186, 125
        %v1191 = vpop.permute.xlu0 %1190
        %1192 = vrot.lane.b32.xlu0 %v1187, 125
        %v1193 = vpop.permute.xlu0 %1192
        %v1196 = vadd.f32 %v1181, %v1191
        %v1197 = vadd.f32 %v1182, %v1193
        %s1198 = sadd.s32 %s934, 19
        %s1199 = sld [smem:[#allocation2 + %s1198]]
        %v1200 = vstv %s1199
        %v1201 = vmul.f32 %v1144, %v1200
        %v1202 = vmul.f32 %v1145, %v1200
        %1205 = vrot.lane.b32.xlu0 %v1201, 124
        %v1206 = vpop.permute.xlu0 %1205
        %1207 = vrot.lane.b32.xlu0 %v1202, 124
        %v1208 = vpop.permute.xlu0 %1207
        %v1211 = vadd.f32 %v1196, %v1206
        %v1212 = vadd.f32 %v1197, %v1208
        %v1213 = vld [vmem:[%s937 + $0x4] sm:$0xff]
        %v1214 = vld [vmem:[%s937 + $0xc] sm:$0xff]
        %s1215 = sadd.s32 %s934, 20
        %s1216 = sld [smem:[#allocation2 + %s1215]]
        %v1217 = vstv %s1216
        %v1218 = vmul.f32 %v1213, %v1217
        %v1219 = vmul.f32 %v1214, %v1217
        %v1220 = vadd.f32 %v1211, %v1218
        %v1221 = vadd.f32 %v1212, %v1219
        %s1222 = sadd.s32 %s934, 21
        %s1223 = sld [smem:[#allocation2 + %s1222]]
        %v1224 = vstv %s1223
        %v1225 = vmul.f32 %v1213, %v1224
        %v1226 = vmul.f32 %v1214, %v1224
        %1229 = vrot.lane.b32.xlu0 %v1225, 127
        %v1230 = vpop.permute.xlu0 %1229
        %1231 = vrot.lane.b32.xlu0 %v1226, 127
        %v1232 = vpop.permute.xlu0 %1231
        %v1235 = vadd.f32 %v1220, %v1230
        %v1236 = vadd.f32 %v1221, %v1232
        %s1237 = sadd.s32 %s934, 22
        %s1238 = sld [smem:[#allocation2 + %s1237]]
        %v1239 = vstv %s1238
        %v1240 = vmul.f32 %v1213, %v1239
        %v1241 = vmul.f32 %v1214, %v1239
        %1244 = vrot.lane.b32.xlu0 %v1240, 126
        %v1245 = vpop.permute.xlu0 %1244
        %1246 = vrot.lane.b32.xlu0 %v1241, 126
        %v1247 = vpop.permute.xlu0 %1246
        %v1250 = vadd.f32 %v1235, %v1245
        %v1251 = vadd.f32 %v1236, %v1247
        %s1252 = sadd.s32 %s934, 23
        %s1253 = sld [smem:[#allocation2 + %s1252]]
        %v1254 = vstv %s1253
        %v1255 = vmul.f32 %v1213, %v1254
        %v1256 = vmul.f32 %v1214, %v1254
        %1259 = vrot.lane.b32.xlu0 %v1255, 125
        %v1260 = vpop.permute.xlu0 %1259
        %1261 = vrot.lane.b32.xlu0 %v1256, 125
        %v1262 = vpop.permute.xlu0 %1261
        %v1265 = vadd.f32 %v1250, %v1260
        %v1266 = vadd.f32 %v1251, %v1262
        %s1267 = sadd.s32 %s934, 24
        %s1268 = sld [smem:[#allocation2 + %s1267]]
        %v1269 = vstv %s1268
        %v1270 = vmul.f32 %v1213, %v1269
        %v1271 = vmul.f32 %v1214, %v1269
        %1274 = vrot.lane.b32.xlu0 %v1270, 124
        %v1275 = vpop.permute.xlu0 %1274
        %1276 = vrot.lane.b32.xlu0 %v1271, 124
        %v1277 = vpop.permute.xlu0 %1276
        %v1280 = vadd.f32 %v1265, %v1275
        %v1281 = vadd.f32 %v1266, %v1277
        %s1282 = scalar_lea.vmem %s217, 32 [#allocation7]
        %1283 = vst.msk [vmem:[%s1282] sm:$0xff] %vm578, %v1280
        %1284 = vst.msk [vmem:[%s1282 + $0x8] sm:$0xff] %vm578, %v1281
        %s1285 = sadd.s32 %s230, 3
        %s1286 = smul.u32 %s1285, 25
        %s1287 = sld [smem:[#allocation5 + %s1285]]
        %v1288 = vstv %s1287
        %s1289 = scalar_lea.vmem %s227, 72
        %v1290 = vld [vmem:[%s1289] sm:$0xff]
        %v1291 = vld [vmem:[%s1289 + $0x8] sm:$0xff]
        %s1292 = sld [smem:[#allocation2 + %s1286]]
        %v1293 = vstv %s1292
        %v1294 = vmul.f32 %v1290, %v1293
        %v1295 = vmul.f32 %v1291, %v1293
        %v1296 = vadd.f32 %v1288, %v1294
        %v1297 = vadd.f32 %v1288, %v1295
        %s1298 = sadd.s32 %s1286, 1
        %s1299 = sld [smem:[#allocation2 + %s1298]]
        %v1300 = vstv %s1299
        %v1301 = vmul.f32 %v1290, %v1300
        %v1302 = vmul.f32 %v1291, %v1300
        %1305 = vrot.lane.b32.xlu0 %v1301, 127
        %v1306 = vpop.permute.xlu0 %1305
        %1307 = vrot.lane.b32.xlu0 %v1302, 127
        %v1308 = vpop.permute.xlu0 %1307
        %v1311 = vadd.f32 %v1296, %v1306
        %v1312 = vadd.f32 %v1297, %v1308
        %s1313 = sadd.s32 %s1286, 2
        %s1314 = sld [smem:[#allocation2 + %s1313]]
        %v1315 = vstv %s1314
        %v1316 = vmul.f32 %v1290, %v1315
        %v1317 = vmul.f32 %v1291, %v1315
        %1320 = vrot.lane.b32.xlu0 %v1316, 126
        %v1321 = vpop.permute.xlu0 %1320
        %1322 = vrot.lane.b32.xlu0 %v1317, 126
        %v1323 = vpop.permute.xlu0 %1322
        %v1326 = vadd.f32 %v1311, %v1321
        %v1327 = vadd.f32 %v1312, %v1323
        %s1328 = sadd.s32 %s1286, 3
        %s1329 = sld [smem:[#allocation2 + %s1328]]
        %v1330 = vstv %s1329
        %v1331 = vmul.f32 %v1290, %v1330
        %v1332 = vmul.f32 %v1291, %v1330
        %1335 = vrot.lane.b32.xlu0 %v1331, 125
        %v1336 = vpop.permute.xlu0 %1335
        %1337 = vrot.lane.b32.xlu0 %v1332, 125
        %v1338 = vpop.permute.xlu0 %1337
        %v1341 = vadd.f32 %v1326, %v1336
        %v1342 = vadd.f32 %v1327, %v1338
        %s1343 = sadd.s32 %s1286, 4
        %s1344 = sld [smem:[#allocation2 + %s1343]]
        %v1345 = vstv %s1344
        %v1346 = vmul.f32 %v1290, %v1345
        %v1347 = vmul.f32 %v1291, %v1345
        %1350 = vrot.lane.b32.xlu0 %v1346, 124
        %v1351 = vpop.permute.xlu0 %1350
        %1352 = vrot.lane.b32.xlu0 %v1347, 124
        %v1353 = vpop.permute.xlu0 %1352
        %v1356 = vadd.f32 %v1341, %v1351
        %v1357 = vadd.f32 %v1342, %v1353
        %v1358 = vld [vmem:[%s1289 + $0x1] sm:$0xff]
        %v1359 = vld [vmem:[%s1289 + $0x9] sm:$0xff]
        %s1360 = sadd.s32 %s1286, 5
        %s1361 = sld [smem:[#allocation2 + %s1360]]
        %v1362 = vstv %s1361
        %v1363 = vmul.f32 %v1358, %v1362
        %v1364 = vmul.f32 %v1359, %v1362
        %v1365 = vadd.f32 %v1356, %v1363
        %v1366 = vadd.f32 %v1357, %v1364
        %s1367 = sadd.s32 %s1286, 6
        %s1368 = sld [smem:[#allocation2 + %s1367]]
        %v1369 = vstv %s1368
        %v1370 = vmul.f32 %v1358, %v1369
        %v1371 = vmul.f32 %v1359, %v1369
        %1374 = vrot.lane.b32.xlu0 %v1370, 127
        %v1375 = vpop.permute.xlu0 %1374
        %1376 = vrot.lane.b32.xlu0 %v1371, 127
        %v1377 = vpop.permute.xlu0 %1376
        %v1380 = vadd.f32 %v1365, %v1375
        %v1381 = vadd.f32 %v1366, %v1377
        %s1382 = sadd.s32 %s1286, 7
        %s1383 = sld [smem:[#allocation2 + %s1382]]
        %v1384 = vstv %s1383
        %v1385 = vmul.f32 %v1358, %v1384
        %v1386 = vmul.f32 %v1359, %v1384
        %1389 = vrot.lane.b32.xlu0 %v1385, 126
        %v1390 = vpop.permute.xlu0 %1389
        %1391 = vrot.lane.b32.xlu0 %v1386, 126
        %v1392 = vpop.permute.xlu0 %1391
        %v1395 = vadd.f32 %v1380, %v1390
        %v1396 = vadd.f32 %v1381, %v1392
        %s1397 = sadd.s32 %s1286, 8
        %s1398 = sld [smem:[#allocation2 + %s1397]]
        %v1399 = vstv %s1398
        %v1400 = vmul.f32 %v1358, %v1399
        %v1401 = vmul.f32 %v1359, %v1399
        %1404 = vrot.lane.b32.xlu0 %v1400, 125
        %v1405 = vpop.permute.xlu0 %1404
        %1406 = vrot.lane.b32.xlu0 %v1401, 125
        %v1407 = vpop.permute.xlu0 %1406
        %v1410 = vadd.f32 %v1395, %v1405
        %v1411 = vadd.f32 %v1396, %v1407
        %s1412 = sadd.s32 %s1286, 9
        %s1413 = sld [smem:[#allocation2 + %s1412]]
        %v1414 = vstv %s1413
        %v1415 = vmul.f32 %v1358, %v1414
        %v1416 = vmul.f32 %v1359, %v1414
        %1419 = vrot.lane.b32.xlu0 %v1415, 124
        %v1420 = vpop.permute.xlu0 %1419
        %1421 = vrot.lane.b32.xlu0 %v1416, 124
        %v1422 = vpop.permute.xlu0 %1421
        %v1425 = vadd.f32 %v1410, %v1420
        %v1426 = vadd.f32 %v1411, %v1422
        %v1427 = vld [vmem:[%s1289 + $0x2] sm:$0xff]
        %v1428 = vld [vmem:[%s1289 + $0xa] sm:$0xff]
        %s1429 = sadd.s32 %s1286, 10
        %s1430 = sld [smem:[#allocation2 + %s1429]]
        %v1431 = vstv %s1430
        %v1432 = vmul.f32 %v1427, %v1431
        %v1433 = vmul.f32 %v1428, %v1431
        %v1434 = vadd.f32 %v1425, %v1432
        %v1435 = vadd.f32 %v1426, %v1433
        %s1436 = sadd.s32 %s1286, 11
        %s1437 = sld [smem:[#allocation2 + %s1436]]
        %v1438 = vstv %s1437
        %v1439 = vmul.f32 %v1427, %v1438
        %v1440 = vmul.f32 %v1428, %v1438
        %1443 = vrot.lane.b32.xlu0 %v1439, 127
        %v1444 = vpop.permute.xlu0 %1443
        %1445 = vrot.lane.b32.xlu0 %v1440, 127
        %v1446 = vpop.permute.xlu0 %1445
        %v1449 = vadd.f32 %v1434, %v1444
        %v1450 = vadd.f32 %v1435, %v1446
        %s1451 = sadd.s32 %s1286, 12
        %s1452 = sld [smem:[#allocation2 + %s1451]]
        %v1453 = vstv %s1452
        %v1454 = vmul.f32 %v1427, %v1453
        %v1455 = vmul.f32 %v1428, %v1453
        %1458 = vrot.lane.b32.xlu0 %v1454, 126
        %v1459 = vpop.permute.xlu0 %1458
        %1460 = vrot.lane.b32.xlu0 %v1455, 126
        %v1461 = vpop.permute.xlu0 %1460
        %v1464 = vadd.f32 %v1449, %v1459
        %v1465 = vadd.f32 %v1450, %v1461
        %s1466 = sadd.s32 %s1286, 13
        %s1467 = sld [smem:[#allocation2 + %s1466]]
        %v1468 = vstv %s1467
        %v1469 = vmul.f32 %v1427, %v1468
        %v1470 = vmul.f32 %v1428, %v1468
        %1473 = vrot.lane.b32.xlu0 %v1469, 125
        %v1474 = vpop.permute.xlu0 %1473
        %1475 = vrot.lane.b32.xlu0 %v1470, 125
        %v1476 = vpop.permute.xlu0 %1475
        %v1479 = vadd.f32 %v1464, %v1474
        %v1480 = vadd.f32 %v1465, %v1476
        %s1481 = sadd.s32 %s1286, 14
        %s1482 = sld [smem:[#allocation2 + %s1481]]
        %v1483 = vstv %s1482
        %v1484 = vmul.f32 %v1427, %v1483
        %v1485 = vmul.f32 %v1428, %v1483
        %1488 = vrot.lane.b32.xlu0 %v1484, 124
        %v1489 = vpop.permute.xlu0 %1488
        %1490 = vrot.lane.b32.xlu0 %v1485, 124
        %v1491 = vpop.permute.xlu0 %1490
        %v1494 = vadd.f32 %v1479, %v1489
        %v1495 = vadd.f32 %v1480, %v1491
        %v1496 = vld [vmem:[%s1289 + $0x3] sm:$0xff]
        %v1497 = vld [vmem:[%s1289 + $0xb] sm:$0xff]
        %s1498 = sadd.s32 %s1286, 15
        %s1499 = sld [smem:[#allocation2 + %s1498]]
        %v1500 = vstv %s1499
        %v1501 = vmul.f32 %v1496, %v1500
        %v1502 = vmul.f32 %v1497, %v1500
        %v1503 = vadd.f32 %v1494, %v1501
        %v1504 = vadd.f32 %v1495, %v1502
        %s1505 = sadd.s32 %s1286, 16
        %s1506 = sld [smem:[#allocation2 + %s1505]]
        %v1507 = vstv %s1506
        %v1508 = vmul.f32 %v1496, %v1507
        %v1509 = vmul.f32 %v1497, %v1507
        %1512 = vrot.lane.b32.xlu0 %v1508, 127
        %v1513 = vpop.permute.xlu0 %1512
        %1514 = vrot.lane.b32.xlu0 %v1509, 127
        %v1515 = vpop.permute.xlu0 %1514
        %v1518 = vadd.f32 %v1503, %v1513
        %v1519 = vadd.f32 %v1504, %v1515
        %s1520 = sadd.s32 %s1286, 17
        %s1521 = sld [smem:[#allocation2 + %s1520]]
        %v1522 = vstv %s1521
        %v1523 = vmul.f32 %v1496, %v1522
        %v1524 = vmul.f32 %v1497, %v1522
        %1527 = vrot.lane.b32.xlu0 %v1523, 126
        %v1528 = vpop.permute.xlu0 %1527
        %1529 = vrot.lane.b32.xlu0 %v1524, 126
        %v1530 = vpop.permute.xlu0 %1529
        %v1533 = vadd.f32 %v1518, %v1528
        %v1534 = vadd.f32 %v1519, %v1530
        %s1535 = sadd.s32 %s1286, 18
        %s1536 = sld [smem:[#allocation2 + %s1535]]
        %v1537 = vstv %s1536
        %v1538 = vmul.f32 %v1496, %v1537
        %v1539 = vmul.f32 %v1497, %v1537
        %1542 = vrot.lane.b32.xlu0 %v1538, 125
        %v1543 = vpop.permute.xlu0 %1542
        %1544 = vrot.lane.b32.xlu0 %v1539, 125
        %v1545 = vpop.permute.xlu0 %1544
        %v1548 = vadd.f32 %v1533, %v1543
        %v1549 = vadd.f32 %v1534, %v1545
        %s1550 = sadd.s32 %s1286, 19
        %s1551 = sld [smem:[#allocation2 + %s1550]]
        %v1552 = vstv %s1551
        %v1553 = vmul.f32 %v1496, %v1552
        %v1554 = vmul.f32 %v1497, %v1552
        %1557 = vrot.lane.b32.xlu0 %v1553, 124
        %v1558 = vpop.permute.xlu0 %1557
        %1559 = vrot.lane.b32.xlu0 %v1554, 124
        %v1560 = vpop.permute.xlu0 %1559
        %v1563 = vadd.f32 %v1548, %v1558
        %v1564 = vadd.f32 %v1549, %v1560
        %v1565 = vld [vmem:[%s1289 + $0x4] sm:$0xff]
        %v1566 = vld [vmem:[%s1289 + $0xc] sm:$0xff]
        %s1567 = sadd.s32 %s1286, 20
        %s1568 = sld [smem:[#allocation2 + %s1567]]
        %v1569 = vstv %s1568
        %v1570 = vmul.f32 %v1565, %v1569
        %v1571 = vmul.f32 %v1566, %v1569
        %v1572 = vadd.f32 %v1563, %v1570
        %v1573 = vadd.f32 %v1564, %v1571
        %s1574 = sadd.s32 %s1286, 21
        %s1575 = sld [smem:[#allocation2 + %s1574]]
        %v1576 = vstv %s1575
        %v1577 = vmul.f32 %v1565, %v1576
        %v1578 = vmul.f32 %v1566, %v1576
        %1581 = vrot.lane.b32.xlu0 %v1577, 127
        %v1582 = vpop.permute.xlu0 %1581
        %1583 = vrot.lane.b32.xlu0 %v1578, 127
        %v1584 = vpop.permute.xlu0 %1583
        %v1587 = vadd.f32 %v1572, %v1582
        %v1588 = vadd.f32 %v1573, %v1584
        %s1589 = sadd.s32 %s1286, 22
        %s1590 = sld [smem:[#allocation2 + %s1589]]
        %v1591 = vstv %s1590
        %v1592 = vmul.f32 %v1565, %v1591
        %v1593 = vmul.f32 %v1566, %v1591
        %1596 = vrot.lane.b32.xlu0 %v1592, 126
        %v1597 = vpop.permute.xlu0 %1596
        %1598 = vrot.lane.b32.xlu0 %v1593, 126
        %v1599 = vpop.permute.xlu0 %1598
        %v1602 = vadd.f32 %v1587, %v1597
        %v1603 = vadd.f32 %v1588, %v1599
        %s1604 = sadd.s32 %s1286, 23
        %s1605 = sld [smem:[#allocation2 + %s1604]]
        %v1606 = vstv %s1605
        %v1607 = vmul.f32 %v1565, %v1606
        %v1608 = vmul.f32 %v1566, %v1606
        %1611 = vrot.lane.b32.xlu0 %v1607, 125
        %v1612 = vpop.permute.xlu0 %1611
        %1613 = vrot.lane.b32.xlu0 %v1608, 125
        %v1614 = vpop.permute.xlu0 %1613
        %v1617 = vadd.f32 %v1602, %v1612
        %v1618 = vadd.f32 %v1603, %v1614
        %s1619 = sadd.s32 %s1286, 24
        %s1620 = sld [smem:[#allocation2 + %s1619]]
        %v1621 = vstv %s1620
        %v1622 = vmul.f32 %v1565, %v1621
        %v1623 = vmul.f32 %v1566, %v1621
        %1626 = vrot.lane.b32.xlu0 %v1622, 124
        %v1627 = vpop.permute.xlu0 %1626
        %1628 = vrot.lane.b32.xlu0 %v1623, 124
        %v1629 = vpop.permute.xlu0 %1628
        %v1632 = vadd.f32 %v1617, %v1627
        %v1633 = vadd.f32 %v1618, %v1629
        %s1634 = scalar_lea.vmem %s217, 48 [#allocation7]
        %1635 = vst.msk [vmem:[%s1634] sm:$0xff] %vm578, %v1632
        %1636 = vst.msk [vmem:[%s1634 + $0x8] sm:$0xff] %vm578, %v1633
        %s1637 = sand.u32 %s111, 1
        %s1638 = scalar_lea.sflag [#allocation3], %s1637
        %s1639 = sand.u32 %s111, 1
        %s1640 = smul.addr %s1639, 64
        %s1641 = scalar_lea.vmem [#allocation7], %s1640
        // Predicated region
        $region41: #{tpu_custom_call.1} parent=31 // pred_check
          %p1642 = pneg %p121
        $region42: #{tpu_custom_call.1} parent=31 // pred_check_branch
          %1644 = sbr.rel (%p1642) target = $region44
        $region43: #{tpu_custom_call.1} parent=31 // pred_region
          %s1645 = smul.u32 4, %s24
          %s1647 = ssub.s32 1024, 1024
          %1648 = vsyncadd %s1638, %s1647
          %s1649 = smul.addr %s1645, 2
          %s1650 = smul.addr %s23, 8
          %s1651 = sadd.s32 %s1649, %s1650
          %s1652 = smul.addr %s1651, 128
          %s1653 = scalar_lea.hbm %s3, %s1652
          %s1654 = sshll.u32 %s1641, 4
          %s1655 = int_to_ptr.vmem [resolvable:$true] %s1654
          %1660 = dma.vmem_to_hbm [thread:$0]  %s1655, 1024, %s1653, %s1638, 128, 128, 8
        $region44: #{tpu_custom_call.1} parent=31 // pred_fallthru
          _
      $region32: #{tpu_custom_call.1} parent=5 // pred_fallthru
        _
      %p1661 = scmp.le.s32.totalorder 2, %s14
      // Predicated region
      $region45: #{tpu_custom_call.1} parent=5 // pred_check
        %p1662 = pneg %p1661
      $region46: #{tpu_custom_call.1} parent=5 // pred_check_branch
        %1664 = sbr.rel (%p1662) target = $region48
      $region47: #{tpu_custom_call.1} parent=5 // pred_region
        %s1665 = ssub.s32 %s14, 2
        // Predicated region
        $region49: #{tpu_custom_call.1} parent=47 // pred_check
          %p1666 = pneg %p127
        $region50: #{tpu_custom_call.1} parent=47 // pred_check_branch
          %1668 = sbr.rel (%p1666) target = $region52
        $region51: #{tpu_custom_call.1} parent=47 // pred_region
          %s1669 = sand.u32 %s112, 1
          %s1670 = scalar_lea.sflag [#allocation3], %s1669
          %s1671 = sand.u32 %s112, 1
          %s1672 = smul.addr %s1671, 64
          %s1673 = scalar_lea.vmem [#allocation7], %s1672
          %1674 = dma.done %s1670, 1024
        $region52: #{tpu_custom_call.1} parent=47 // pred_fallthru
          _
      $region48: #{tpu_custom_call.1} parent=5 // pred_fallthru
        _
    $region6: #{tpu_custom_call.1} parent=1 // loop_footer
      %s18 = sadd.s32 1, %s14
    $region7: #{tpu_custom_call.1} parent=1 // loop_footer_branch
      %13 = sbr.rel target = $region3
    $region8: #{tpu_custom_call.1} parent=1 // loop_exit
      _
    %1675 = vsyncpa [#allocation3], 1
    %s1676 = scalar_lea.sflag [#allocation3], 1
    %1677 = vsyncpa %s1676, 1
    %1678 = vsyncpa [#allocation4], 1
    %s1679 = scalar_lea.sflag [#allocation4], 1
    %1680 = vsyncpa %s1679, 1
    %1681 = vsyncpa [#allocation6], 1

</llo_original>
